<compile_context>
chip_gen: v6e
topology: v6e:2x2x1
jax: 0.10.0
libtpu: 0.0.40
codegen_flags: <defaults>
</compile_context>

<pallas_src>
import functools

import jax
import jax.numpy as jnp
import numpy as np
from jax.experimental import pallas as pl
from jax.experimental.pallas import tpu as pltpu

NEG_SLOPE = 0.01          # F.leaky_relu default
BN_EPS = 1e-5             # nn.BatchNorm2d default

IDENT_TENSORS = {'affine': [1, 0, 0, 0, 1, 0], 'rotation': [0],
                 'rotation_scale': [0, 1, 1], 'rotation_scale_symmetric': [0, 1],
                 'rotation_translation': [0, 0, 0],
                 'rotation_translation_scale': [0, 0, 0, 1, 1],
                 'rotation_translation_scale_symmetric': [0, 0, 0, 1],
                 'scale': [1, 1], 'scale_symmetric': [1], 'translation': [0, 0],
                 'translation_scale': [0, 0, 1, 1],
                 'translation_scale_symmetric': [0, 0, 1]}
N_PARAMS = {k: len(v) for k, v in IDENT_TENSORS.items()}


# ------------------------------ Pallas kernel --------------------------------

def _backbone_kernel(x_ref, w1_ref, b1_ref, w2_ref, b2_ref, out_ref,
                     s1_ref, p1_ref, *, B, Len1, Len2, Wp, Wmp, Hm, Wm, R1):
    """Fused LocBackbone for B samples (flat-slab layout, all VMEM-resident).

    Row layout: sample b's zero-padded conv1 input occupies x_ref rows
    [b*Len1, b*Len1 + Hp*Wp); conv1 output pixel (i, x) of sample b lands at
    accumulator row b*Len1 + i*Wp + x (columns x >= Wo1 are junk but finite);
    conv2 output pixel (i, x) lands at out row b*Len2 + i*Wmp + x.  Junk
    rows/columns are multiplied by zero rows of w0 on the head side.
    """
    f32 = jnp.float32
    bf16 = jnp.bfloat16

    def lrelu(v):
        return jnp.where(v > 0, v, NEG_SLOPE * v)

    # ---- conv1 + bn1 + leaky_relu: 9 full-plane tap dots over all B samples
    acc1 = None
    for dy in range(3):
        for dx in range(3):
            lhs = x_ref[pl.ds(dy * Wp + dx, R1), :].astype(bf16)
            part = jnp.dot(lhs, w1_ref[dy * 3 + dx], preferred_element_type=f32)
            acc1 = part if acc1 is None else acc1 + part
    s1_ref[...] = lrelu(acc1 + b1_ref[...])                     # (R1, C1) f32

    # ---- 2x2 max-pool (pure VPU): stride-2 ref reads + jnp.maximum, written
    # into the zero-padded conv2 input slab (halo / junk regions stay zero).
    p1_ref[...] = jnp.zeros_like(p1_ref)
    for b in range(B):
        for m in range(Hm):
            src = b * Len1 + 2 * m * Wp
            a00 = s1_ref[pl.ds(src, Wm, stride=2), :]
            a01 = s1_ref[pl.ds(src + 1, Wm, stride=2), :]
            a10 = s1_ref[pl.ds(src + Wp, Wm, stride=2), :]
            a11 = s1_ref[pl.ds(src + Wp + 1, Wm, stride=2), :]
            pooled = jnp.maximum(jnp.maximum(a00, a01), jnp.maximum(a10, a11))
            dst = b * Len2 + (2 + m) * Wmp + 2
            p1_ref[pl.ds(dst, Wm), :] = pooled

    # ---- conv2 + bn2 + leaky_relu: 9 full-plane tap dots, one output store
    R2 = out_ref.shape[0]                                       # == B * Len2
    acc2 = None
    for dy in range(3):
        for dx in range(3):
            lhs = p1_ref[pl.ds(dy * Wmp + dx, R2), :].astype(bf16)
            part = jnp.dot(lhs, w2_ref[dy * 3 + dx], preferred_element_type=f32)
            acc2 = part if acc2 is None else acc2 + part
    out_ref[...] = lrelu(acc2 + b2_ref[...]).astype(out_ref.dtype)


# ------------------------------ glue ------------------------------------------

def _round_up(v, m):
    return -(-v // m) * m


def _samples_per_step(n):
    # Amortize per-grid-step overhead, keep >= 2 grid steps for v7x's 2 TCs,
    # and cap at 4 so the value-accumulated conv planes stay register-friendly.
    best = 1
    for cand in range(2, min(4, n) + 1):
        if n % cand == 0 and n // cand >= 2:
            best = cand
    return best


def _fold_conv_bn(w_oihw, b, gamma, beta, mean, var):
    """Fold eval-mode BatchNorm into the conv (f32), then cast weights to bf16."""
    cout, cin, kh, kw = w_oihw.shape
    scale = gamma / jnp.sqrt(var + BN_EPS)
    w = jnp.transpose(w_oihw, (2, 3, 1, 0)).reshape(kh * kw, cin, cout) * scale
    bias = ((b - mean) * scale + beta).reshape(1, cout)
    return w.astype(jnp.bfloat16), bias.astype(jnp.float32)


def _backbone_features(x_nchw, p):
    """Run one LocBackbone; returns the flat feature slab (N, Len2*C2) + meta."""
    # TODO(synk): BatchNorm is applied in inference mode (running statistics
    # folded into the conv weights); training-mode batch stats are not computed.
    N, Cin, H, W = x_nchw.shape
    C1 = p["conv1_w"].shape[0]
    C2 = p["conv2_w"].shape[0]
    Hp, Wp = H + 4, W + 4              # pad=2 halo
    Ho1, Wo1 = H + 2, W + 2            # conv1 3x3, padding=2
    Hm, Wm = Ho1 // 2, Wo1 // 2        # MaxPool2d(2, 2) (floor)
    Hmp, Wmp = Hm + 4, Wm + 4
    Ho2, Wo2 = Hm + 2, Wm + 2          # conv2 3x3, padding=2

    Len1 = _round_up(Hp * Wp + 2, 8)   # per-sample flat stride, conv1 input
    Len2 = _round_up(Hmp * Wmp, 8)     # per-sample flat stride, conv2 in/out
    B = _samples_per_step(N)
    R1 = (B - 1) * Len1 + Ho1 * Wp     # conv1 output rows actually needed
    pad2 = _round_up(2 * Wmp + 2, 8)   # tap-overrun tail of the conv2 slab

    w1, b1 = _fold_conv_bn(p["conv1_w"], p["conv1_b"],
                           p["bn1_g"], p["bn1_b"], p["bn1_m"], p["bn1_v"])
    w2, b2 = _fold_conv_bn(p["conv2_w"], p["conv2_b"],
                           p["bn2_g"], p["bn2_b"], p["bn2_m"], p["bn2_v"])

    # Pad + flatten the input once in XLA so every conv tap in the kernel is a
    # single contiguous (rows, Cin) slice -> one MXU dot (no in-kernel staging).
    x_nhwc = jnp.transpose(x_nchw, (0, 2, 3, 1)).astype(jnp.float32)
    xp = jnp.pad(x_nhwc, ((0, 0), (2, 2), (2, 2), (0, 0)))
    xflat = jnp.pad(xp.reshape(N, Hp * Wp, Cin),
                    ((0, 0), (0, Len1 - Hp * Wp), (0, 0)))
    xflat = xflat.reshape(N * Len1, Cin)

    kernel = functools.partial(_backbone_kernel, B=B, Len1=Len1, Len2=Len2,
                               Wp=Wp, Wmp=Wmp, Hm=Hm, Wm=Wm, R1=R1)
    feat = pl.pallas_call(
        kernel,
        out_shape=jax.ShapeDtypeStruct((N * Len2, C2), jnp.float32),
        grid=(N // B,),
        in_specs=[
            pl.BlockSpec((B * Len1, Cin), lambda n: (n, 0)),
            pl.BlockSpec((9, Cin, C1), lambda n: (0, 0, 0)),
            pl.BlockSpec((1, C1), lambda n: (0, 0)),
            pl.BlockSpec((9, C1, C2), lambda n: (0, 0, 0)),
            pl.BlockSpec((1, C2), lambda n: (0, 0)),
        ],
        out_specs=pl.BlockSpec((B * Len2, C2), lambda n: (n, 0)),
        scratch_shapes=[
            pltpu.VMEM((R1, C1), jnp.float32),               # conv1 activations
            pltpu.VMEM((B * Len2 + pad2, C1), jnp.float32),  # padded pooled act.
        ],
        compiler_params=pltpu.CompilerParams(dimension_semantics=("parallel",)),
    )(xflat, w1, b1, w2, b2)
    # Free row-major reshape; feature index of pixel (i, x, c) is (i*Wmp+x)*C2+c.
    feat2d = feat.reshape(N, Len2 * C2)
    return feat2d, (C2, Ho2, Wo2, Wmp, Len2)


def _adaptive_pool_matrix(size_in, size_out):
    m = np.zeros((size_out, size_in), dtype=np.float32)
    for i in range(size_out):
        s = (i * size_in) // size_out
        e = -(-((i + 1) * size_in) // size_out)
        m[i, s:e] = 1.0 / (e - s)
    return m


def _fold_pool_into_w0(w0, C2, Ho2, Wo2, Wmp, Len2):
    """Fold AdaptiveAvgPool2d((8,8)) (a linear op) and torch's NCHW flatten
    into linear0's weight so the heads read the kernel's flat feature slab
    directly.  Rows corresponding to junk feature positions stay zero."""
    D0 = w0.shape[1]
    ph = jnp.asarray(_adaptive_pool_matrix(Ho2, 8))          # (8, Ho2)
    pw = jnp.asarray(_adaptive_pool_matrix(Wo2, 8))          # (8, Wo2)
    w0_sp = w0.reshape(C2, 8, 8, D0)                         # (c, o1, o2, d)
    w_sp = jnp.einsum("ai,bx,cabd->ixcd", ph, pw, w0_sp,
                      precision=jax.lax.Precision.HIGHEST)   # (Ho2, Wo2, C2, D0)
    rows = np.asarray([(i * Wmp + x) * C2 + c
                       for i in range(Ho2) for x in range(Wo2)
                       for c in range(C2)], dtype=np.int32)
    w0_eff = jnp.zeros((Len2 * C2, D0), jnp.float32)
    return w0_eff.at[rows].set(w_sp.reshape(-1, D0))


def _apply_head(feat2d, head, meta):
    """LocHead as three tiny XLA dots (no separate pallas_call launch)."""
    C2, Ho2, Wo2, Wmp, Len2 = meta
    hp = jax.lax.Precision.HIGHEST
    w0 = _fold_pool_into_w0(head["w0"], C2, Ho2, Wo2, Wmp, Len2)
    z = jnp.dot(feat2d, w0, precision=hp) + head["b0"]
    z = jnp.where(z > 0, z, NEG_SLOPE * z)
    z = jnp.dot(z, head["w1"], precision=hp) + head["b1"]
    z = jnp.where(z > 0, z, NEG_SLOPE * z)
    return jnp.dot(z, head["w2"], precision=hp) + head["b2"]


def loc_net_forward(x_nchw, params):
    """LocNet.forward (invert_gradient=False; grad_reverse is identity fwd)."""
    backbones, heads = params["backbone"], params["heads"]
    feats = [_backbone_features(x_nchw, b) for b in backbones]
    outs = []
    for i, h in enumerate(heads):
        feat2d, meta = feats[i] if len(feats) > 1 else feats[0]
        outs.append(_apply_head(feat2d, h, meta))
    return outs


# ------------------------------ parameters ------------------------------------

def init_locnet_params(key, mode="affine", num_heads=2, conv1=32, conv2=32):
    n_params = N_PARAMS[mode]
    feature_dim = conv2 * 8 * 8
    k = jax.random.split(key, 13)
    backbone = dict(
        conv1_w=0.10 * jax.random.normal(k[0], (conv1, 3, 3, 3), jnp.float32),
        conv1_b=0.10 * jax.random.normal(k[1], (conv1,), jnp.float32),
        bn1_g=1.0 + 0.10 * jax.random.normal(k[2], (conv1,), jnp.float32),
        bn1_b=0.10 * jax.random.normal(k[3], (conv1,), jnp.float32),
        bn1_m=0.10 * jax.random.normal(k[4], (conv1,), jnp.float32),
        bn1_v=0.5 + jax.random.uniform(k[5], (conv1,), jnp.float32),
        conv2_w=0.05 * jax.random.normal(k[6], (conv2, conv1, 3, 3), jnp.float32),
        conv2_b=0.10 * jax.random.normal(k[7], (conv2,), jnp.float32),
        bn2_g=1.0 + 0.10 * jax.random.normal(k[8], (conv2,), jnp.float32),
        bn2_b=0.10 * jax.random.normal(k[9], (conv2,), jnp.float32),
        bn2_m=0.10 * jax.random.normal(k[10], (conv2,), jnp.float32),
        bn2_v=0.5 + jax.random.uniform(k[11], (conv2,), jnp.float32),
    )
    heads = []
    for hk in jax.random.split(k[12], num_heads):
        h0, h1, h2, h3 = jax.random.split(hk, 4)
        heads.append(dict(
            w0=0.05 * jax.random.normal(h0, (feature_dim, 128), jnp.float32),
            b0=0.05 * jax.random.normal(h1, (128,), jnp.float32),
            w1=0.05 * jax.random.normal(h2, (128, 64), jnp.float32),
            b1=0.05 * jax.random.normal(h3, (64,), jnp.float32),
            w2=jnp.zeros((64, n_params), jnp.float32),           # linear2.weight.zero_()
            b2=jnp.asarray(IDENT_TENSORS[mode], jnp.float32),    # identity transform bias
        ))
    return {"backbone": [backbone], "heads": heads}


# ------------------------------ pure-JAX reference ----------------------------

def _reference_forward(x, params):
    """Plain XLA reference of LocNet.forward (for validation only)."""
    hp = jax.lax.Precision.HIGHEST

    def lrelu(v):
        return jnp.where(v > 0, v, NEG_SLOPE * v)

    def bn(y, g, b, m, v):
        return (y - m[None, :, None, None]) * (
            g[None, :, None, None] / jnp.sqrt(v[None, :, None, None] + BN_EPS)
        ) + b[None, :, None, None]

    def backbone(xi, p):
        y = jax.lax.conv_general_dilated(
            xi, p["conv1_w"], (1, 1), ((2, 2), (2, 2)),
            dimension_numbers=("NCHW", "OIHW", "NCHW"), precision=hp)
        y = lrelu(bn(y + p["conv1_b"][None, :, None, None],
                     p["bn1_g"], p["bn1_b"], p["bn1_m"], p["bn1_v"]))
        y = jax.lax.reduce_window(y, -jnp.inf, jax.lax.max,
                                  (1, 1, 2, 2), (1, 1, 2, 2), "VALID")
        y = jax.lax.conv_general_dilated(
            y, p["conv2_w"], (1, 1), ((2, 2), (2, 2)),
            dimension_numbers=("NCHW", "OIHW", "NCHW"), precision=hp)
        y = lrelu(bn(y + p["conv2_b"][None, :, None, None],
                     p["bn2_g"], p["bn2_b"], p["bn2_m"], p["bn2_v"]))
        ph = jnp.asarray(_adaptive_pool_matrix(y.shape[2], 8))
        pw = jnp.asarray(_adaptive_pool_matrix(y.shape[3], 8))
        y = jnp.einsum("oh,nchw,pw->ncop", ph, y, pw, precision=hp)
        return y.reshape(y.shape[0], -1)

    def head(f, h):
        z = lrelu(jnp.dot(f, h["w0"], precision=hp) + h["b0"])
        z = lrelu(jnp.dot(z, h["w1"], precision=hp) + h["b1"])
        return jnp.dot(z, h["w2"], precision=hp) + h["b2"]

    backbones, heads = params["backbone"], params["heads"]
    if len(backbones) > 1:
        return [head(backbone(x, b), h) for b, h in zip(backbones, heads)]
    f = backbone(x, backbones[0])
    return [head(f, h) for h in heads]


# ------------------------------ main -------------------------------------------

if __name__ == "__main__":
    key = jax.random.PRNGKey(0)
    pkey, xkey = jax.random.split(key)
    params = init_locnet_params(pkey, mode="affine", num_heads=2)

    # NCHW input, 3 channels, 10x10 spatial:
    #   conv1 -> 12x12, maxpool -> 6x6, conv2 -> 8x8, adaptive pool -> identity.
    x = jax.random.normal(xkey, (2, 3, 10, 10), dtype=jnp.float32)

    fwd = jax.jit(loc_net_forward)
    outs = fwd(x, params)
    jax.block_until_ready(outs)
    assert len(outs) == 2 and all(o.shape == (2, 6) for o in outs)

    # linear2 weight is zero -> every head must output its identity bias exactly.
    ident = jnp.asarray(IDENT_TENSORS["affine"], jnp.float32)[None, :]
    for o in outs:
        assert jnp.allclose(o, jnp.broadcast_to(ident, o.shape), atol=1e-5)

    # End-to-end numeric check vs. the pure-JAX reference using a non-zero
    # linear2 weight (exercises the fused backbone and all three head matmuls).
    heads_rand = []
    for i, h in enumerate(params["heads"]):
        hr = dict(h)
        hr["w2"] = 0.05 * jax.random.normal(jax.random.fold_in(xkey, i),
                                            h["w2"].shape, jnp.float32)
        heads_rand.append(hr)
    params_rand = {"backbone": params["backbone"], "heads": heads_rand}
    outs_rand = fwd(x, params_rand)
    refs = jax.jit(_reference_forward)(x, params_rand)
    for o, r in zip(outs_rand, refs):
        assert jnp.allclose(o, r, atol=3e-2, rtol=3e-2)

    print("KERNEL_OK")
</pallas_src>

<mosaic_0001>
module attributes {stable_mosaic.version = 11 : i64} {
  func.func @_backbone_kernel(%arg0: i32, %arg1: memref<200x3xf32, #tpu.memory_space<vmem>>, %arg2: memref<9x3x32xbf16, #tpu.memory_space<vmem>>, %arg3: memref<1x32xf32, #tpu.memory_space<vmem>>, %arg4: memref<9x32x32xbf16, #tpu.memory_space<vmem>>, %arg5: memref<1x32xf32, #tpu.memory_space<vmem>>, %arg6: memref<104x32xf32, #tpu.memory_space<vmem>>, %arg7: memref<168x32xf32, #tpu.memory_space<vmem>>, %arg8: memref<128x32xf32, #tpu.memory_space<vmem>>) attributes {dimension_semantics = [#tpu.dimension_semantics<parallel>], iteration_bounds = array<i64: 2>, scalar_prefetch = 0 : i64, scratch_operands = 2 : i64, tpu.core_type = #tpu.core_type<tc>, window_params = [{transform_indices = @transform_0, window_bounds = array<i64: 200, 3>}, {pipeline_mode = #tpu.pipeline_mode<synchronous>, transform_indices = @transform_1, window_bounds = array<i64: 9, 3, 32>}, {pipeline_mode = #tpu.pipeline_mode<synchronous>, transform_indices = @transform_2, window_bounds = array<i64: 1, 32>}, {pipeline_mode = #tpu.pipeline_mode<synchronous>, transform_indices = @transform_3, window_bounds = array<i64: 9, 32, 32>}, {pipeline_mode = #tpu.pipeline_mode<synchronous>, transform_indices = @transform_4, window_bounds = array<i64: 1, 32>}, {transform_indices = @transform_5, window_bounds = array<i64: 104, 32>}]} {
    %c0 = arith.constant 0 : index
    %c0_0 = arith.constant 0 : index
    %0 = vector.load %arg1[%c0, %c0_0] : memref<200x3xf32, #tpu.memory_space<vmem>>, vector<168x3xf32>
    %1 = arith.truncf %0 : vector<168x3xf32> to vector<168x3xbf16>
    %c0_1 = arith.constant 0 : index
    %c0_2 = arith.constant 0 : index
    %c0_3 = arith.constant 0 : index
    %2 = vector.load %arg2[%c0_1, %c0_2, %c0_3] : memref<9x3x32xbf16, #tpu.memory_space<vmem>>, vector<1x3x32xbf16>
    %3 = vector.shape_cast %2 : vector<1x3x32xbf16> to vector<3x32xbf16>
    %cst = arith.constant dense<0.000000e+00> : vector<168x32xf32>
    %4 = tpu.matmul %1, %3, %cst {dimension_numbers = #tpu.dot_dimension_numbers<[1], [0], [0], [1], [0, 0, 1, 1], [], []>} : vector<168x3xbf16>, vector<3x32xbf16>, vector<168x32xf32> -> vector<168x32xf32>
    %c1 = arith.constant 1 : index
    %c0_4 = arith.constant 0 : index
    %5 = vector.load %arg1[%c1, %c0_4] : memref<200x3xf32, #tpu.memory_space<vmem>>, vector<168x3xf32>
    %6 = arith.truncf %5 : vector<168x3xf32> to vector<168x3xbf16>
    %c1_5 = arith.constant 1 : index
    %c0_6 = arith.constant 0 : index
    %c0_7 = arith.constant 0 : index
    %7 = vector.load %arg2[%c1_5, %c0_6, %c0_7] : memref<9x3x32xbf16, #tpu.memory_space<vmem>>, vector<1x3x32xbf16>
    %8 = vector.shape_cast %7 : vector<1x3x32xbf16> to vector<3x32xbf16>
    %cst_8 = arith.constant dense<0.000000e+00> : vector<168x32xf32>
    %9 = tpu.matmul %6, %8, %cst_8 {dimension_numbers = #tpu.dot_dimension_numbers<[1], [0], [0], [1], [0, 0, 1, 1], [], []>} : vector<168x3xbf16>, vector<3x32xbf16>, vector<168x32xf32> -> vector<168x32xf32>
    %10 = arith.addf %4, %9 : vector<168x32xf32>
    %c2 = arith.constant 2 : index
    %c0_9 = arith.constant 0 : index
    %11 = vector.load %arg1[%c2, %c0_9] : memref<200x3xf32, #tpu.memory_space<vmem>>, vector<168x3xf32>
    %12 = arith.truncf %11 : vector<168x3xf32> to vector<168x3xbf16>
    %c2_10 = arith.constant 2 : index
    %c0_11 = arith.constant 0 : index
    %c0_12 = arith.constant 0 : index
    %13 = vector.load %arg2[%c2_10, %c0_11, %c0_12] : memref<9x3x32xbf16, #tpu.memory_space<vmem>>, vector<1x3x32xbf16>
    %14 = vector.shape_cast %13 : vector<1x3x32xbf16> to vector<3x32xbf16>
    %cst_13 = arith.constant dense<0.000000e+00> : vector<168x32xf32>
    %15 = tpu.matmul %12, %14, %cst_13 {dimension_numbers = #tpu.dot_dimension_numbers<[1], [0], [0], [1], [0, 0, 1, 1], [], []>} : vector<168x3xbf16>, vector<3x32xbf16>, vector<168x32xf32> -> vector<168x32xf32>
    %16 = arith.addf %10, %15 : vector<168x32xf32>
    %c14 = arith.constant 14 : index
    %c0_14 = arith.constant 0 : index
    %17 = vector.load %arg1[%c14, %c0_14] : memref<200x3xf32, #tpu.memory_space<vmem>>, vector<168x3xf32>
    %18 = arith.truncf %17 : vector<168x3xf32> to vector<168x3xbf16>
    %c3 = arith.constant 3 : index
    %c0_15 = arith.constant 0 : index
    %c0_16 = arith.constant 0 : index
    %19 = vector.load %arg2[%c3, %c0_15, %c0_16] : memref<9x3x32xbf16, #tpu.memory_space<vmem>>, vector<1x3x32xbf16>
    %20 = vector.shape_cast %19 : vector<1x3x32xbf16> to vector<3x32xbf16>
    %cst_17 = arith.constant dense<0.000000e+00> : vector<168x32xf32>
    %21 = tpu.matmul %18, %20, %cst_17 {dimension_numbers = #tpu.dot_dimension_numbers<[1], [0], [0], [1], [0, 0, 1, 1], [], []>} : vector<168x3xbf16>, vector<3x32xbf16>, vector<168x32xf32> -> vector<168x32xf32>
    %22 = arith.addf %16, %21 : vector<168x32xf32>
    %c15 = arith.constant 15 : index
    %c0_18 = arith.constant 0 : index
    %23 = vector.load %arg1[%c15, %c0_18] : memref<200x3xf32, #tpu.memory_space<vmem>>, vector<168x3xf32>
    %24 = arith.truncf %23 : vector<168x3xf32> to vector<168x3xbf16>
    %c4 = arith.constant 4 : index
    %c0_19 = arith.constant 0 : index
    %c0_20 = arith.constant 0 : index
    %25 = vector.load %arg2[%c4, %c0_19, %c0_20] : memref<9x3x32xbf16, #tpu.memory_space<vmem>>, vector<1x3x32xbf16>
    %26 = vector.shape_cast %25 : vector<1x3x32xbf16> to vector<3x32xbf16>
    %cst_21 = arith.constant dense<0.000000e+00> : vector<168x32xf32>
    %27 = tpu.matmul %24, %26, %cst_21 {dimension_numbers = #tpu.dot_dimension_numbers<[1], [0], [0], [1], [0, 0, 1, 1], [], []>} : vector<168x3xbf16>, vector<3x32xbf16>, vector<168x32xf32> -> vector<168x32xf32>
    %28 = arith.addf %22, %27 : vector<168x32xf32>
    %c16 = arith.constant 16 : index
    %c0_22 = arith.constant 0 : index
    %29 = vector.load %arg1[%c16, %c0_22] : memref<200x3xf32, #tpu.memory_space<vmem>>, vector<168x3xf32>
    %30 = arith.truncf %29 : vector<168x3xf32> to vector<168x3xbf16>
    %c5 = arith.constant 5 : index
    %c0_23 = arith.constant 0 : index
    %c0_24 = arith.constant 0 : index
    %31 = vector.load %arg2[%c5, %c0_23, %c0_24] : memref<9x3x32xbf16, #tpu.memory_space<vmem>>, vector<1x3x32xbf16>
    %32 = vector.shape_cast %31 : vector<1x3x32xbf16> to vector<3x32xbf16>
    %cst_25 = arith.constant dense<0.000000e+00> : vector<168x32xf32>
    %33 = tpu.matmul %30, %32, %cst_25 {dimension_numbers = #tpu.dot_dimension_numbers<[1], [0], [0], [1], [0, 0, 1, 1], [], []>} : vector<168x3xbf16>, vector<3x32xbf16>, vector<168x32xf32> -> vector<168x32xf32>
    %34 = arith.addf %28, %33 : vector<168x32xf32>
    %c28 = arith.constant 28 : index
    %c0_26 = arith.constant 0 : index
    %35 = vector.load %arg1[%c28, %c0_26] : memref<200x3xf32, #tpu.memory_space<vmem>>, vector<168x3xf32>
    %36 = arith.truncf %35 : vector<168x3xf32> to vector<168x3xbf16>
    %c6 = arith.constant 6 : index
    %c0_27 = arith.constant 0 : index
    %c0_28 = arith.constant 0 : index
    %37 = vector.load %arg2[%c6, %c0_27, %c0_28] : memref<9x3x32xbf16, #tpu.memory_space<vmem>>, vector<1x3x32xbf16>
    %38 = vector.shape_cast %37 : vector<1x3x32xbf16> to vector<3x32xbf16>
    %cst_29 = arith.constant dense<0.000000e+00> : vector<168x32xf32>
    %39 = tpu.matmul %36, %38, %cst_29 {dimension_numbers = #tpu.dot_dimension_numbers<[1], [0], [0], [1], [0, 0, 1, 1], [], []>} : vector<168x3xbf16>, vector<3x32xbf16>, vector<168x32xf32> -> vector<168x32xf32>
    %40 = arith.addf %34, %39 : vector<168x32xf32>
    %c29 = arith.constant 29 : index
    %c0_30 = arith.constant 0 : index
    %41 = vector.load %arg1[%c29, %c0_30] : memref<200x3xf32, #tpu.memory_space<vmem>>, vector<168x3xf32>
    %42 = arith.truncf %41 : vector<168x3xf32> to vector<168x3xbf16>
    %c7 = arith.constant 7 : index
    %c0_31 = arith.constant 0 : index
    %c0_32 = arith.constant 0 : index
    %43 = vector.load %arg2[%c7, %c0_31, %c0_32] : memref<9x3x32xbf16, #tpu.memory_space<vmem>>, vector<1x3x32xbf16>
    %44 = vector.shape_cast %43 : vector<1x3x32xbf16> to vector<3x32xbf16>
    %cst_33 = arith.constant dense<0.000000e+00> : vector<168x32xf32>
    %45 = tpu.matmul %42, %44, %cst_33 {dimension_numbers = #tpu.dot_dimension_numbers<[1], [0], [0], [1], [0, 0, 1, 1], [], []>} : vector<168x3xbf16>, vector<3x32xbf16>, vector<168x32xf32> -> vector<168x32xf32>
    %46 = arith.addf %40, %45 : vector<168x32xf32>
    %c30 = arith.constant 30 : index
    %c0_34 = arith.constant 0 : index
    %47 = vector.load %arg1[%c30, %c0_34] : memref<200x3xf32, #tpu.memory_space<vmem>>, vector<168x3xf32>
    %48 = arith.truncf %47 : vector<168x3xf32> to vector<168x3xbf16>
    %c8 = arith.constant 8 : index
    %c0_35 = arith.constant 0 : index
    %c0_36 = arith.constant 0 : index
    %49 = vector.load %arg2[%c8, %c0_35, %c0_36] : memref<9x3x32xbf16, #tpu.memory_space<vmem>>, vector<1x3x32xbf16>
    %50 = vector.shape_cast %49 : vector<1x3x32xbf16> to vector<3x32xbf16>
    %cst_37 = arith.constant dense<0.000000e+00> : vector<168x32xf32>
    %51 = tpu.matmul %48, %50, %cst_37 {dimension_numbers = #tpu.dot_dimension_numbers<[1], [0], [0], [1], [0, 0, 1, 1], [], []>} : vector<168x3xbf16>, vector<3x32xbf16>, vector<168x32xf32> -> vector<168x32xf32>
    %52 = arith.addf %46, %51 : vector<168x32xf32>
    %c0_38 = arith.constant 0 : index
    %c0_39 = arith.constant 0 : index
    %53 = vector.load %arg3[%c0_38, %c0_39] : memref<1x32xf32, #tpu.memory_space<vmem>>, vector<1x32xf32>
    %54 = vector.broadcast %53 : vector<1x32xf32> to vector<168x32xf32>
    %55 = arith.addf %52, %54 : vector<168x32xf32>
    %cst_40 = arith.constant 0.000000e+00 : f32
    %56 = vector.broadcast %cst_40 : f32 to vector<168x32xf32>
    %57 = arith.cmpf ogt, %55, %56 : vector<168x32xf32>
    %cst_41 = arith.constant 0.00999999977 : f32
    %58 = vector.broadcast %cst_41 : f32 to vector<168x32xf32>
    %59 = arith.mulf %58, %55 : vector<168x32xf32>
    %60 = arith.select %57, %55, %59 : vector<168x32xi1>, vector<168x32xf32>
    %c0_42 = arith.constant 0 : index
    %c0_43 = arith.constant 0 : index
    %61 = vector.load %arg7[%c0_42, %c0_43] : memref<168x32xf32, #tpu.memory_space<vmem>>, vector<168x32xf32>
    tpu.vector_store %arg7[%c0_42, %c0_43], %60 {strides = array<i32>} : memref<168x32xf32, #tpu.memory_space<vmem>>, vector<168x32xf32>,
    %cst_44 = arith.constant 0.000000e+00 : f32
    %62 = vector.broadcast %cst_44 : f32 to vector<128x32xf32>
    %c0_45 = arith.constant 0 : index
    %c0_46 = arith.constant 0 : index
    %63 = vector.load %arg8[%c0_45, %c0_46] : memref<128x32xf32, #tpu.memory_space<vmem>>, vector<128x32xf32>
    tpu.vector_store %arg8[%c0_45, %c0_46], %62 {strides = array<i32>} : memref<128x32xf32, #tpu.memory_space<vmem>>, vector<128x32xf32>,
    %c0_47 = arith.constant 0 : index
    %c0_48 = arith.constant 0 : index
    %64 = tpu.strided_load %arg7[%c0_47, %c0_48] {strides = array<i32: 2, 1>} : memref<168x32xf32, #tpu.memory_space<vmem>>, vector<6x32xf32>
    %c1_49 = arith.constant 1 : index
    %c0_50 = arith.constant 0 : index
    %65 = tpu.strided_load %arg7[%c1_49, %c0_50] {strides = array<i32: 2, 1>} : memref<168x32xf32, #tpu.memory_space<vmem>>, vector<6x32xf32>
    %c14_51 = arith.constant 14 : index
    %c0_52 = arith.constant 0 : index
    %66 = tpu.strided_load %arg7[%c14_51, %c0_52] {strides = array<i32: 2, 1>} : memref<168x32xf32, #tpu.memory_space<vmem>>, vector<6x32xf32>
    %c15_53 = arith.constant 15 : index
    %c0_54 = arith.constant 0 : index
    %67 = tpu.strided_load %arg7[%c15_53, %c0_54] {strides = array<i32: 2, 1>} : memref<168x32xf32, #tpu.memory_space<vmem>>, vector<6x32xf32>
    %68 = arith.maximumf %64, %65 : vector<6x32xf32>
    %69 = arith.maximumf %66, %67 : vector<6x32xf32>
    %70 = arith.maximumf %68, %69 : vector<6x32xf32>
    %c22 = arith.constant 22 : index
    %c0_55 = arith.constant 0 : index
    %71 = vector.load %arg8[%c22, %c0_55] : memref<128x32xf32, #tpu.memory_space<vmem>>, vector<6x32xf32>
    tpu.vector_store %arg8[%c22, %c0_55], %70 {strides = array<i32>} : memref<128x32xf32, #tpu.memory_space<vmem>>, vector<6x32xf32>,
    %c28_56 = arith.constant 28 : index
    %c0_57 = arith.constant 0 : index
    %72 = tpu.strided_load %arg7[%c28_56, %c0_57] {strides = array<i32: 2, 1>} : memref<168x32xf32, #tpu.memory_space<vmem>>, vector<6x32xf32>
    %c29_58 = arith.constant 29 : index
    %c0_59 = arith.constant 0 : index
    %73 = tpu.strided_load %arg7[%c29_58, %c0_59] {strides = array<i32: 2, 1>} : memref<168x32xf32, #tpu.memory_space<vmem>>, vector<6x32xf32>
    %c42 = arith.constant 42 : index
    %c0_60 = arith.constant 0 : index
    %74 = tpu.strided_load %arg7[%c42, %c0_60] {strides = array<i32: 2, 1>} : memref<168x32xf32, #tpu.memory_space<vmem>>, vector<6x32xf32>
    %c43 = arith.constant 43 : index
    %c0_61 = arith.constant 0 : index
    %75 = tpu.strided_load %arg7[%c43, %c0_61] {strides = array<i32: 2, 1>} : memref<168x32xf32, #tpu.memory_space<vmem>>, vector<6x32xf32>
    %76 = arith.maximumf %72, %73 : vector<6x32xf32>
    %77 = arith.maximumf %74, %75 : vector<6x32xf32>
    %78 = arith.maximumf %76, %77 : vector<6x32xf32>
    %c32 = arith.constant 32 : index
    %c0_62 = arith.constant 0 : index
    %79 = vector.load %arg8[%c32, %c0_62] : memref<128x32xf32, #tpu.memory_space<vmem>>, vector<6x32xf32>
    tpu.vector_store %arg8[%c32, %c0_62], %78 {strides = array<i32>} : memref<128x32xf32, #tpu.memory_space<vmem>>, vector<6x32xf32>,
    %c56 = arith.constant 56 : index
    %c0_63 = arith.constant 0 : index
    %80 = tpu.strided_load %arg7[%c56, %c0_63] {strides = array<i32: 2, 1>} : memref<168x32xf32, #tpu.memory_space<vmem>>, vector<6x32xf32>
    %c57 = arith.constant 57 : index
    %c0_64 = arith.constant 0 : index
    %81 = tpu.strided_load %arg7[%c57, %c0_64] {strides = array<i32: 2, 1>} : memref<168x32xf32, #tpu.memory_space<vmem>>, vector<6x32xf32>
    %c70 = arith.constant 70 : index
    %c0_65 = arith.constant 0 : index
    %82 = tpu.strided_load %arg7[%c70, %c0_65] {strides = array<i32: 2, 1>} : memref<168x32xf32, #tpu.memory_space<vmem>>, vector<6x32xf32>
    %c71 = arith.constant 71 : index
    %c0_66 = arith.constant 0 : index
    %83 = tpu.strided_load %arg7[%c71, %c0_66] {strides = array<i32: 2, 1>} : memref<168x32xf32, #tpu.memory_space<vmem>>, vector<6x32xf32>
    %84 = arith.maximumf %80, %81 : vector<6x32xf32>
    %85 = arith.maximumf %82, %83 : vector<6x32xf32>
    %86 = arith.maximumf %84, %85 : vector<6x32xf32>
    %c42_67 = arith.constant 42 : index
    %c0_68 = arith.constant 0 : index
    %87 = vector.load %arg8[%c42_67, %c0_68] : memref<128x32xf32, #tpu.memory_space<vmem>>, vector<6x32xf32>
    tpu.vector_store %arg8[%c42_67, %c0_68], %86 {strides = array<i32>} : memref<128x32xf32, #tpu.memory_space<vmem>>, vector<6x32xf32>,
    %c84 = arith.constant 84 : index
    %c0_69 = arith.constant 0 : index
    %88 = tpu.strided_load %arg7[%c84, %c0_69] {strides = array<i32: 2, 1>} : memref<168x32xf32, #tpu.memory_space<vmem>>, vector<6x32xf32>
    %c85 = arith.constant 85 : index
    %c0_70 = arith.constant 0 : index
    %89 = tpu.strided_load %arg7[%c85, %c0_70] {strides = array<i32: 2, 1>} : memref<168x32xf32, #tpu.memory_space<vmem>>, vector<6x32xf32>
    %c98 = arith.constant 98 : index
    %c0_71 = arith.constant 0 : index
    %90 = tpu.strided_load %arg7[%c98, %c0_71] {strides = array<i32: 2, 1>} : memref<168x32xf32, #tpu.memory_space<vmem>>, vector<6x32xf32>
    %c99 = arith.constant 99 : index
    %c0_72 = arith.constant 0 : index
    %91 = tpu.strided_load %arg7[%c99, %c0_72] {strides = array<i32: 2, 1>} : memref<168x32xf32, #tpu.memory_space<vmem>>, vector<6x32xf32>
    %92 = arith.maximumf %88, %89 : vector<6x32xf32>
    %93 = arith.maximumf %90, %91 : vector<6x32xf32>
    %94 = arith.maximumf %92, %93 : vector<6x32xf32>
    %c52 = arith.constant 52 : index
    %c0_73 = arith.constant 0 : index
    %95 = vector.load %arg8[%c52, %c0_73] : memref<128x32xf32, #tpu.memory_space<vmem>>, vector<6x32xf32>
    tpu.vector_store %arg8[%c52, %c0_73], %94 {strides = array<i32>} : memref<128x32xf32, #tpu.memory_space<vmem>>, vector<6x32xf32>,
    %c112 = arith.constant 112 : index
    %c0_74 = arith.constant 0 : index
    %96 = tpu.strided_load %arg7[%c112, %c0_74] {strides = array<i32: 2, 1>} : memref<168x32xf32, #tpu.memory_space<vmem>>, vector<6x32xf32>
    %c113 = arith.constant 113 : index
    %c0_75 = arith.constant 0 : index
    %97 = tpu.strided_load %arg7[%c113, %c0_75] {strides = array<i32: 2, 1>} : memref<168x32xf32, #tpu.memory_space<vmem>>, vector<6x32xf32>
    %c126 = arith.constant 126 : index
    %c0_76 = arith.constant 0 : index
    %98 = tpu.strided_load %arg7[%c126, %c0_76] {strides = array<i32: 2, 1>} : memref<168x32xf32, #tpu.memory_space<vmem>>, vector<6x32xf32>
    %c127 = arith.constant 127 : index
    %c0_77 = arith.constant 0 : index
    %99 = tpu.strided_load %arg7[%c127, %c0_77] {strides = array<i32: 2, 1>} : memref<168x32xf32, #tpu.memory_space<vmem>>, vector<6x32xf32>
    %100 = arith.maximumf %96, %97 : vector<6x32xf32>
    %101 = arith.maximumf %98, %99 : vector<6x32xf32>
    %102 = arith.maximumf %100, %101 : vector<6x32xf32>
    %c62 = arith.constant 62 : index
    %c0_78 = arith.constant 0 : index
    %103 = vector.load %arg8[%c62, %c0_78] : memref<128x32xf32, #tpu.memory_space<vmem>>, vector<6x32xf32>
    tpu.vector_store %arg8[%c62, %c0_78], %102 {strides = array<i32>} : memref<128x32xf32, #tpu.memory_space<vmem>>, vector<6x32xf32>,
    %c140 = arith.constant 140 : index
    %c0_79 = arith.constant 0 : index
    %104 = tpu.strided_load %arg7[%c140, %c0_79] {strides = array<i32: 2, 1>} : memref<168x32xf32, #tpu.memory_space<vmem>>, vector<6x32xf32>
    %c141 = arith.constant 141 : index
    %c0_80 = arith.constant 0 : index
    %105 = tpu.strided_load %arg7[%c141, %c0_80] {strides = array<i32: 2, 1>} : memref<168x32xf32, #tpu.memory_space<vmem>>, vector<6x32xf32>
    %c154 = arith.constant 154 : index
    %c0_81 = arith.constant 0 : index
    %106 = tpu.strided_load %arg7[%c154, %c0_81] {strides = array<i32: 2, 1>} : memref<168x32xf32, #tpu.memory_space<vmem>>, vector<6x32xf32>
    %c155 = arith.constant 155 : index
    %c0_82 = arith.constant 0 : index
    %107 = tpu.strided_load %arg7[%c155, %c0_82] {strides = array<i32: 2, 1>} : memref<168x32xf32, #tpu.memory_space<vmem>>, vector<6x32xf32>
    %108 = arith.maximumf %104, %105 : vector<6x32xf32>
    %109 = arith.maximumf %106, %107 : vector<6x32xf32>
    %110 = arith.maximumf %108, %109 : vector<6x32xf32>
    %c72 = arith.constant 72 : index
    %c0_83 = arith.constant 0 : index
    %111 = vector.load %arg8[%c72, %c0_83] : memref<128x32xf32, #tpu.memory_space<vmem>>, vector<6x32xf32>
    tpu.vector_store %arg8[%c72, %c0_83], %110 {strides = array<i32>} : memref<128x32xf32, #tpu.memory_space<vmem>>, vector<6x32xf32>,
    %c0_84 = arith.constant 0 : index
    %c0_85 = arith.constant 0 : index
    %112 = vector.load %arg8[%c0_84, %c0_85] : memref<128x32xf32, #tpu.memory_space<vmem>>, vector<104x32xf32>
    %113 = arith.truncf %112 : vector<104x32xf32> to vector<104x32xbf16>
    %c0_86 = arith.constant 0 : index
    %c0_87 = arith.constant 0 : index
    %c0_88 = arith.constant 0 : index
    %114 = vector.load %arg4[%c0_86, %c0_87, %c0_88] : memref<9x32x32xbf16, #tpu.memory_space<vmem>>, vector<1x32x32xbf16>
    %115 = vector.shape_cast %114 : vector<1x32x32xbf16> to vector<32x32xbf16>
    %cst_89 = arith.constant dense<0.000000e+00> : vector<104x32xf32>
    %116 = tpu.matmul %113, %115, %cst_89 {dimension_numbers = #tpu.dot_dimension_numbers<[1], [0], [0], [1], [0, 0, 1, 1], [], []>} : vector<104x32xbf16>, vector<32x32xbf16>, vector<104x32xf32> -> vector<104x32xf32>
    %c1_90 = arith.constant 1 : index
    %c0_91 = arith.constant 0 : index
    %117 = vector.load %arg8[%c1_90, %c0_91] : memref<128x32xf32, #tpu.memory_space<vmem>>, vector<104x32xf32>
    %118 = arith.truncf %117 : vector<104x32xf32> to vector<104x32xbf16>
    %c1_92 = arith.constant 1 : index
    %c0_93 = arith.constant 0 : index
    %c0_94 = arith.constant 0 : index
    %119 = vector.load %arg4[%c1_92, %c0_93, %c0_94] : memref<9x32x32xbf16, #tpu.memory_space<vmem>>, vector<1x32x32xbf16>
    %120 = vector.shape_cast %119 : vector<1x32x32xbf16> to vector<32x32xbf16>
    %cst_95 = arith.constant dense<0.000000e+00> : vector<104x32xf32>
    %121 = tpu.matmul %118, %120, %cst_95 {dimension_numbers = #tpu.dot_dimension_numbers<[1], [0], [0], [1], [0, 0, 1, 1], [], []>} : vector<104x32xbf16>, vector<32x32xbf16>, vector<104x32xf32> -> vector<104x32xf32>
    %122 = arith.addf %116, %121 : vector<104x32xf32>
    %c2_96 = arith.constant 2 : index
    %c0_97 = arith.constant 0 : index
    %123 = vector.load %arg8[%c2_96, %c0_97] : memref<128x32xf32, #tpu.memory_space<vmem>>, vector<104x32xf32>
    %124 = arith.truncf %123 : vector<104x32xf32> to vector<104x32xbf16>
    %c2_98 = arith.constant 2 : index
    %c0_99 = arith.constant 0 : index
    %c0_100 = arith.constant 0 : index
    %125 = vector.load %arg4[%c2_98, %c0_99, %c0_100] : memref<9x32x32xbf16, #tpu.memory_space<vmem>>, vector<1x32x32xbf16>
    %126 = vector.shape_cast %125 : vector<1x32x32xbf16> to vector<32x32xbf16>
    %cst_101 = arith.constant dense<0.000000e+00> : vector<104x32xf32>
    %127 = tpu.matmul %124, %126, %cst_101 {dimension_numbers = #tpu.dot_dimension_numbers<[1], [0], [0], [1], [0, 0, 1, 1], [], []>} : vector<104x32xbf16>, vector<32x32xbf16>, vector<104x32xf32> -> vector<104x32xf32>
    %128 = arith.addf %122, %127 : vector<104x32xf32>
    %c10 = arith.constant 10 : index
    %c0_102 = arith.constant 0 : index
    %129 = vector.load %arg8[%c10, %c0_102] : memref<128x32xf32, #tpu.memory_space<vmem>>, vector<104x32xf32>
    %130 = arith.truncf %129 : vector<104x32xf32> to vector<104x32xbf16>
    %c3_103 = arith.constant 3 : index
    %c0_104 = arith.constant 0 : index
    %c0_105 = arith.constant 0 : index
    %131 = vector.load %arg4[%c3_103, %c0_104, %c0_105] : memref<9x32x32xbf16, #tpu.memory_space<vmem>>, vector<1x32x32xbf16>
    %132 = vector.shape_cast %131 : vector<1x32x32xbf16> to vector<32x32xbf16>
    %cst_106 = arith.constant dense<0.000000e+00> : vector<104x32xf32>
    %133 = tpu.matmul %130, %132, %cst_106 {dimension_numbers = #tpu.dot_dimension_numbers<[1], [0], [0], [1], [0, 0, 1, 1], [], []>} : vector<104x32xbf16>, vector<32x32xbf16>, vector<104x32xf32> -> vector<104x32xf32>
    %134 = arith.addf %128, %133 : vector<104x32xf32>
    %c11 = arith.constant 11 : index
    %c0_107 = arith.constant 0 : index
    %135 = vector.load %arg8[%c11, %c0_107] : memref<128x32xf32, #tpu.memory_space<vmem>>, vector<104x32xf32>
    %136 = arith.truncf %135 : vector<104x32xf32> to vector<104x32xbf16>
    %c4_108 = arith.constant 4 : index
    %c0_109 = arith.constant 0 : index
    %c0_110 = arith.constant 0 : index
    %137 = vector.load %arg4[%c4_108, %c0_109, %c0_110] : memref<9x32x32xbf16, #tpu.memory_space<vmem>>, vector<1x32x32xbf16>
    %138 = vector.shape_cast %137 : vector<1x32x32xbf16> to vector<32x32xbf16>
    %cst_111 = arith.constant dense<0.000000e+00> : vector<104x32xf32>
    %139 = tpu.matmul %136, %138, %cst_111 {dimension_numbers = #tpu.dot_dimension_numbers<[1], [0], [0], [1], [0, 0, 1, 1], [], []>} : vector<104x32xbf16>, vector<32x32xbf16>, vector<104x32xf32> -> vector<104x32xf32>
    %140 = arith.addf %134, %139 : vector<104x32xf32>
    %c12 = arith.constant 12 : index
    %c0_112 = arith.constant 0 : index
    %141 = vector.load %arg8[%c12, %c0_112] : memref<128x32xf32, #tpu.memory_space<vmem>>, vector<104x32xf32>
    %142 = arith.truncf %141 : vector<104x32xf32> to vector<104x32xbf16>
    %c5_113 = arith.constant 5 : index
    %c0_114 = arith.constant 0 : index
    %c0_115 = arith.constant 0 : index
    %143 = vector.load %arg4[%c5_113, %c0_114, %c0_115] : memref<9x32x32xbf16, #tpu.memory_space<vmem>>, vector<1x32x32xbf16>
    %144 = vector.shape_cast %143 : vector<1x32x32xbf16> to vector<32x32xbf16>
    %cst_116 = arith.constant dense<0.000000e+00> : vector<104x32xf32>
    %145 = tpu.matmul %142, %144, %cst_116 {dimension_numbers = #tpu.dot_dimension_numbers<[1], [0], [0], [1], [0, 0, 1, 1], [], []>} : vector<104x32xbf16>, vector<32x32xbf16>, vector<104x32xf32> -> vector<104x32xf32>
    %146 = arith.addf %140, %145 : vector<104x32xf32>
    %c20 = arith.constant 20 : index
    %c0_117 = arith.constant 0 : index
    %147 = vector.load %arg8[%c20, %c0_117] : memref<128x32xf32, #tpu.memory_space<vmem>>, vector<104x32xf32>
    %148 = arith.truncf %147 : vector<104x32xf32> to vector<104x32xbf16>
    %c6_118 = arith.constant 6 : index
    %c0_119 = arith.constant 0 : index
    %c0_120 = arith.constant 0 : index
    %149 = vector.load %arg4[%c6_118, %c0_119, %c0_120] : memref<9x32x32xbf16, #tpu.memory_space<vmem>>, vector<1x32x32xbf16>
    %150 = vector.shape_cast %149 : vector<1x32x32xbf16> to vector<32x32xbf16>
    %cst_121 = arith.constant dense<0.000000e+00> : vector<104x32xf32>
    %151 = tpu.matmul %148, %150, %cst_121 {dimension_numbers = #tpu.dot_dimension_numbers<[1], [0], [0], [1], [0, 0, 1, 1], [], []>} : vector<104x32xbf16>, vector<32x32xbf16>, vector<104x32xf32> -> vector<104x32xf32>
    %152 = arith.addf %146, %151 : vector<104x32xf32>
    %c21 = arith.constant 21 : index
    %c0_122 = arith.constant 0 : index
    %153 = vector.load %arg8[%c21, %c0_122] : memref<128x32xf32, #tpu.memory_space<vmem>>, vector<104x32xf32>
    %154 = arith.truncf %153 : vector<104x32xf32> to vector<104x32xbf16>
    %c7_123 = arith.constant 7 : index
    %c0_124 = arith.constant 0 : index
    %c0_125 = arith.constant 0 : index
    %155 = vector.load %arg4[%c7_123, %c0_124, %c0_125] : memref<9x32x32xbf16, #tpu.memory_space<vmem>>, vector<1x32x32xbf16>
    %156 = vector.shape_cast %155 : vector<1x32x32xbf16> to vector<32x32xbf16>
    %cst_126 = arith.constant dense<0.000000e+00> : vector<104x32xf32>
    %157 = tpu.matmul %154, %156, %cst_126 {dimension_numbers = #tpu.dot_dimension_numbers<[1], [0], [0], [1], [0, 0, 1, 1], [], []>} : vector<104x32xbf16>, vector<32x32xbf16>, vector<104x32xf32> -> vector<104x32xf32>
    %158 = arith.addf %152, %157 : vector<104x32xf32>
    %c22_127 = arith.constant 22 : index
    %c0_128 = arith.constant 0 : index
    %159 = vector.load %arg8[%c22_127, %c0_128] : memref<128x32xf32, #tpu.memory_space<vmem>>, vector<104x32xf32>
    %160 = arith.truncf %159 : vector<104x32xf32> to vector<104x32xbf16>
    %c8_129 = arith.constant 8 : index
    %c0_130 = arith.constant 0 : index
    %c0_131 = arith.constant 0 : index
    %161 = vector.load %arg4[%c8_129, %c0_130, %c0_131] : memref<9x32x32xbf16, #tpu.memory_space<vmem>>, vector<1x32x32xbf16>
    %162 = vector.shape_cast %161 : vector<1x32x32xbf16> to vector<32x32xbf16>
    %cst_132 = arith.constant dense<0.000000e+00> : vector<104x32xf32>
    %163 = tpu.matmul %160, %162, %cst_132 {dimension_numbers = #tpu.dot_dimension_numbers<[1], [0], [0], [1], [0, 0, 1, 1], [], []>} : vector<104x32xbf16>, vector<32x32xbf16>, vector<104x32xf32> -> vector<104x32xf32>
    %164 = arith.addf %158, %163 : vector<104x32xf32>
    %c0_133 = arith.constant 0 : index
    %c0_134 = arith.constant 0 : index
    %165 = vector.load %arg5[%c0_133, %c0_134] : memref<1x32xf32, #tpu.memory_space<vmem>>, vector<1x32xf32>
    %166 = vector.broadcast %165 : vector<1x32xf32> to vector<104x32xf32>
    %167 = arith.addf %164, %166 : vector<104x32xf32>
    %cst_135 = arith.constant 0.000000e+00 : f32
    %168 = vector.broadcast %cst_135 : f32 to vector<104x32xf32>
    %169 = arith.cmpf ogt, %167, %168 : vector<104x32xf32>
    %cst_136 = arith.constant 0.00999999977 : f32
    %170 = vector.broadcast %cst_136 : f32 to vector<104x32xf32>
    %171 = arith.mulf %170, %167 : vector<104x32xf32>
    %172 = arith.select %169, %167, %171 : vector<104x32xi1>, vector<104x32xf32>
    %c0_137 = arith.constant 0 : index
    %c0_138 = arith.constant 0 : index
    %173 = vector.load %arg6[%c0_137, %c0_138] : memref<104x32xf32, #tpu.memory_space<vmem>>, vector<104x32xf32>
    tpu.vector_store %arg6[%c0_137, %c0_138], %172 {strides = array<i32>} : memref<104x32xf32, #tpu.memory_space<vmem>>, vector<104x32xf32>,
    return
  }
  func.func @transform_0(%arg0: i32) -> (i32, i32) {
    %c0_i32 = arith.constant 0 : i32
    %c0_i32_0 = arith.constant 0 : i32
    return %arg0, %c0_i32 : i32, i32
  }
  func.func @transform_1(%arg0: i32) -> (i32, i32, i32) {
    %c0_i32 = arith.constant 0 : i32
    %c0_i32_0 = arith.constant 0 : i32
    %c0_i32_1 = arith.constant 0 : i32
    %c0_i32_2 = arith.constant 0 : i32
    return %c0_i32, %c0_i32_0, %c0_i32_1 : i32, i32, i32
  }
  func.func @transform_2(%arg0: i32) -> (i32, i32) {
    %c0_i32 = arith.constant 0 : i32
    %c0_i32_0 = arith.constant 0 : i32
    %c0_i32_1 = arith.constant 0 : i32
    return %c0_i32, %c0_i32_0 : i32, i32
  }
  func.func @transform_3(%arg0: i32) -> (i32, i32, i32) {
    %c0_i32 = arith.constant 0 : i32
    %c0_i32_0 = arith.constant 0 : i32
    %c0_i32_1 = arith.constant 0 : i32
    %c0_i32_2 = arith.constant 0 : i32
    return %c0_i32, %c0_i32_0, %c0_i32_1 : i32, i32, i32
  }
  func.func @transform_4(%arg0: i32) -> (i32, i32) {
    %c0_i32 = arith.constant 0 : i32
    %c0_i32_0 = arith.constant 0 : i32
    %c0_i32_1 = arith.constant 0 : i32
    return %c0_i32, %c0_i32_0 : i32, i32
  }
  func.func @transform_5(%arg0: i32) -> (i32, i32) {
    %c0_i32 = arith.constant 0 : i32
    %c0_i32_0 = arith.constant 0 : i32
    return %arg0, %c0_i32 : i32, i32
  }
}

</mosaic_0001>

<llo_original>
// kernel: loc_net_forward.1
$region0: #{loc_net_forward.1}
  #allocation0 [shape = 'u32[]', space=smem, size = 0x4, offset = 0x4, fixed_abs, tag = 'smem constant byte address 0x4 - core index']
  #allocation1 [shape = 'u32[144,128]{1,0:T(1,128)}', space=vmem, size = 0x12000, scoped, tag = 'internal scratch']
  #allocation2 [shape = 'f32[168,32]{1,0:T(8,128)}', space=vmem, size = 0x15000, scoped, tag = 'scratch operand']
  #allocation3 [shape = 'f32[128,32]{1,0:T(8,128)}', space=vmem, size = 0x10000, scoped, tag = 'scratch operand']
  %s0 = inlined_call_operand.vmem [shape: f32[400,3], index: 0, kind: input, shape index: {}]
  %s1 = inlined_call_operand.vmem [shape: bf16[9,3,32], index: 1, kind: input, shape index: {}]
  %s2 = inlined_call_operand.vmem [shape: f32[1,32], index: 2, kind: input, shape index: {}]
  %s3 = inlined_call_operand.vmem [shape: bf16[9,32,32], index: 3, kind: input, shape index: {}]
  %s4 = inlined_call_operand.vmem [shape: f32[1,32], index: 4, kind: input, shape index: {}]
  %s5 = inlined_call_operand.vmem [shape: f32[208,32], index: 5, kind: output, shape index: {}]
  %s6 = sld [smem:[#allocation0]]
  $region53: #{loc_net_forward.1} parent=0
    _
  %s8 = ssub.s32 1, %s6
  %s9 = scalar_select 0, %s8, %s6
  loop: start=0, step=1, limit=4
  $region2: #{loc_net_forward.1} parent=0 // loop_pre_header
    _
  $region3: #{loc_net_forward.1} parent=0 // loop_header
    %s11 = sphi 0, %s15
    %p12 = scmp.ge.s32.totalorder %s11, 4
    %s21 = sphi 0, %s23
    %s24 = sphi 0, %s21
    %s25 = sphi 0, %s24
    %s41 = sphi 0, %s25
    %s45 = sphi 0, %s45
    %s47 = sphi 0, %s45
    %s48 = sphi 0, %s47
    %s62 = sphi 0, %s48
    %s66 = sphi 0, %s66
    %s68 = sphi 0, %s66
    %s69 = sphi 0, %s68
    %s83 = sphi 0, %s69
    %s87 = sphi 0, %s87
    %s89 = sphi 0, %s87
    %s90 = sphi 0, %s89
    %s104 = sphi 0, %s90
    %s108 = sphi 0, %s108
    %s110 = sphi 0, %s108
    %s111 = sphi 0, %s110
    %s125 = sphi 0, %s111
    %s131 = sphi 0, %s133
    %s134 = sphi 0, %s131
    %s135 = sphi 0, %s134
    %s151 = sphi 0, %s135
  $region4: #{loc_net_forward.1} parent=0 // loop_header_branch
    %14 = sbr.rel (%p12) target = $region8
  $region5: #{loc_net_forward.1} parent=0 // loop_body
    %s16 = ssub.s32 %s11, 1
    %s17 = ssub.s32 %s11, 2
    %s18 = sadd.s32 %s11, 1
    %s19 = ssub.s32 %s11, %s18
    %p20 = scmp.eq.s32.totalorder %s19, 0
    %s22 = sadd.s32 %s21, 1
    %s23 = scalar_select %p20, %s21, %s22
    %p26 = pneg %p20
    %p27 = scmp.eq.s32.totalorder %s11, 1
    %p28 = por %p26, %p27
    %p29 = scmp.ne.s32.totalorder %s21, %s24
    %p30 = scmp.eq.s32.totalorder %s11, 0
    %p31 = por %p29, %p30
    %p32 = scmp.ne.s32.totalorder %s21, %s24
    %p33 = scmp.eq.s32.totalorder %s16, 1
    %p34 = por %p32, %p33
    %p35 = scmp.ne.s32.totalorder %s24, %s25
    %p36 = scmp.eq.s32.totalorder %s16, 0
    %p37 = por %p35, %p36
    %p38 = scmp.ne.s32.totalorder %s24, %s25
    %p39 = scmp.eq.s32.totalorder %s17, 1
    %p40 = por %p38, %p39
    %p42 = scmp.ne.s32.totalorder %s25, %s41
    %p43 = scmp.eq.s32.totalorder %s17, 0
    %p44 = por %p42, %p43
    %s46 = sadd.s32 %s45, 1
    %p49 = scmp.eq.s32.totalorder %s11, 1
    %p50 = scmp.ne.s32.totalorder %s45, %s47
    %p51 = scmp.eq.s32.totalorder %s11, 0
    %p52 = por %p50, %p51
    %p53 = scmp.ne.s32.totalorder %s45, %s47
    %p54 = scmp.eq.s32.totalorder %s16, 1
    %p55 = por %p53, %p54
    %p56 = scmp.ne.s32.totalorder %s47, %s48
    %p57 = scmp.eq.s32.totalorder %s16, 0
    %p58 = por %p56, %p57
    %p59 = scmp.ne.s32.totalorder %s47, %s48
    %p60 = scmp.eq.s32.totalorder %s17, 1
    %p61 = por %p59, %p60
    %p63 = scmp.ne.s32.totalorder %s48, %s62
    %p64 = scmp.eq.s32.totalorder %s17, 0
    %p65 = por %p63, %p64
    %s67 = sadd.s32 %s66, 1
    %p70 = scmp.eq.s32.totalorder %s11, 1
    %p71 = scmp.ne.s32.totalorder %s66, %s68
    %p72 = scmp.eq.s32.totalorder %s11, 0
    %p73 = por %p71, %p72
    %p74 = scmp.ne.s32.totalorder %s66, %s68
    %p75 = scmp.eq.s32.totalorder %s16, 1
    %p76 = por %p74, %p75
    %p77 = scmp.ne.s32.totalorder %s68, %s69
    %p78 = scmp.eq.s32.totalorder %s16, 0
    %p79 = por %p77, %p78
    %p80 = scmp.ne.s32.totalorder %s68, %s69
    %p81 = scmp.eq.s32.totalorder %s17, 1
    %p82 = por %p80, %p81
    %p84 = scmp.ne.s32.totalorder %s69, %s83
    %p85 = scmp.eq.s32.totalorder %s17, 0
    %p86 = por %p84, %p85
    %s88 = sadd.s32 %s87, 1
    %p91 = scmp.eq.s32.totalorder %s11, 1
    %p92 = scmp.ne.s32.totalorder %s87, %s89
    %p93 = scmp.eq.s32.totalorder %s11, 0
    %p94 = por %p92, %p93
    %p95 = scmp.ne.s32.totalorder %s87, %s89
    %p96 = scmp.eq.s32.totalorder %s16, 1
    %p97 = por %p95, %p96
    %p98 = scmp.ne.s32.totalorder %s89, %s90
    %p99 = scmp.eq.s32.totalorder %s16, 0
    %p100 = por %p98, %p99
    %p101 = scmp.ne.s32.totalorder %s89, %s90
    %p102 = scmp.eq.s32.totalorder %s17, 1
    %p103 = por %p101, %p102
    %p105 = scmp.ne.s32.totalorder %s90, %s104
    %p106 = scmp.eq.s32.totalorder %s17, 0
    %p107 = por %p105, %p106
    %s109 = sadd.s32 %s108, 1
    %p112 = scmp.eq.s32.totalorder %s11, 1
    %p113 = scmp.ne.s32.totalorder %s108, %s110
    %p114 = scmp.eq.s32.totalorder %s11, 0
    %p115 = por %p113, %p114
    %p116 = scmp.ne.s32.totalorder %s108, %s110
    %p117 = scmp.eq.s32.totalorder %s16, 1
    %p118 = por %p116, %p117
    %p119 = scmp.ne.s32.totalorder %s110, %s111
    %p120 = scmp.eq.s32.totalorder %s16, 0
    %p121 = por %p119, %p120
    %p122 = scmp.ne.s32.totalorder %s110, %s111
    %p123 = scmp.eq.s32.totalorder %s17, 1
    %p124 = por %p122, %p123
    %p126 = scmp.ne.s32.totalorder %s111, %s125
    %p127 = scmp.eq.s32.totalorder %s17, 0
    %p128 = por %p126, %p127
    %s129 = ssub.s32 %s11, %s18
    %p130 = scmp.eq.s32.totalorder %s129, 0
    %s132 = sadd.s32 %s131, 1
    %s133 = scalar_select %p130, %s131, %s132
    %p136 = pneg %p130
    %p137 = scmp.eq.s32.totalorder %s11, 1
    %p138 = por %p136, %p137
    %p139 = scmp.ne.s32.totalorder %s131, %s134
    %p140 = scmp.eq.s32.totalorder %s11, 0
    %p141 = por %p139, %p140
    %p142 = scmp.ne.s32.totalorder %s131, %s134
    %p143 = scmp.eq.s32.totalorder %s16, 1
    %p144 = por %p142, %p143
    %p145 = scmp.ne.s32.totalorder %s134, %s135
    %p146 = scmp.eq.s32.totalorder %s16, 0
    %p147 = por %p145, %p146
    %p148 = scmp.ne.s32.totalorder %s134, %s135
    %p149 = scmp.eq.s32.totalorder %s17, 1
    %p150 = por %p148, %p149
    %p152 = scmp.ne.s32.totalorder %s135, %s151
    %p153 = scmp.eq.s32.totalorder %s17, 0
    %p154 = por %p152, %p153
    %p155 = scmp.le.s32.totalorder 1, %s11
    %p156 = scmp.lt.s32.totalorder %s11, 3
    %p157 = pnand %p155, %p156
    %p158 = pneg %p157
    // Predicated region
    $region9: #{loc_net_forward.1} parent=5 // pred_check
      _
    $region10: #{loc_net_forward.1} parent=5 // pred_check_branch
      %160 = sbr.rel (%p157) target = $region12
    $region11: #{loc_net_forward.1} parent=5 // pred_region
      %s161 = ssub.s32 %s11, 1
      // Predicated region
      $region13: #{loc_net_forward.1} parent=11 // pred_check
        %p162 = pneg %p58
      $region14: #{loc_net_forward.1} parent=11 // pred_check_branch
        %164 = sbr.rel (%p162) target = $region16
      $region15: #{loc_net_forward.1} parent=11 // pred_region
        _
      $region16: #{loc_net_forward.1} parent=11 // pred_fallthru
        _
      // Predicated region
      $region17: #{loc_net_forward.1} parent=11 // pred_check
        %p165 = pneg %p79
      $region18: #{loc_net_forward.1} parent=11 // pred_check_branch
        %167 = sbr.rel (%p165) target = $region20
      $region19: #{loc_net_forward.1} parent=11 // pred_region
        _
      $region20: #{loc_net_forward.1} parent=11 // pred_fallthru
        _
      // Predicated region
      $region21: #{loc_net_forward.1} parent=11 // pred_check
        %p168 = pneg %p100
      $region22: #{loc_net_forward.1} parent=11 // pred_check_branch
        %170 = sbr.rel (%p168) target = $region24
      $region23: #{loc_net_forward.1} parent=11 // pred_region
        _
      $region24: #{loc_net_forward.1} parent=11 // pred_fallthru
        _
      // Predicated region
      $region25: #{loc_net_forward.1} parent=11 // pred_check
        %p171 = pneg %p121
      $region26: #{loc_net_forward.1} parent=11 // pred_check_branch
        %173 = sbr.rel (%p171) target = $region28
      $region27: #{loc_net_forward.1} parent=11 // pred_region
        _
      $region28: #{loc_net_forward.1} parent=11 // pred_fallthru
        _
    $region12: #{loc_net_forward.1} parent=5 // pred_fallthru
      _
    %p174 = scmp.lt.s32.totalorder %s11, 2
    // Predicated region
    $region29: #{loc_net_forward.1} parent=5 // pred_check
      %p175 = pneg %p174
    $region30: #{loc_net_forward.1} parent=5 // pred_check_branch
      %177 = sbr.rel (%p175) target = $region32
    $region31: #{loc_net_forward.1} parent=5 // pred_region
      // Predicated region
      $region33: #{loc_net_forward.1} parent=31 // pred_check
        %p178 = pneg %p31
      $region34: #{loc_net_forward.1} parent=31 // pred_check_branch
        %180 = sbr.rel (%p178) target = $region36
      $region35: #{loc_net_forward.1} parent=31 // pred_region
        %s181 = smul.u32 25, %s11
        %p182 = scmp.lt.s32.totalorder %s181, 49
        %s183 = scalar_select %p182, %s181, 49
        %s184 = smul.addr %s183, 8
        %s185 = scalar_lea.vmem %s0, %s184
        %s186 = smul.u32 25, %s11
      $region36: #{loc_net_forward.1} parent=31 // pred_fallthru
        _
    $region32: #{loc_net_forward.1} parent=5 // pred_fallthru
      _
    %p187 = scmp.le.s32.totalorder 1, %s11
    %p188 = scmp.lt.s32.totalorder %s11, 3
    %p189 = pnand %p187, %p188
    %p190 = pneg %p189
    // Predicated region
    $region37: #{loc_net_forward.1} parent=5 // pred_check
      _
    $region38: #{loc_net_forward.1} parent=5 // pred_check_branch
      %192 = sbr.rel (%p189) target = $region40
    $region39: #{loc_net_forward.1} parent=5 // pred_region
      %s193 = ssub.s32 %s11, 1
      %s194 = smul.u32 25, %s16
      %p195 = scmp.lt.s32.totalorder %s194, 49
      %s196 = scalar_select %p195, %s194, 49
      %s197 = smul.addr %s196, 8
      %s198 = scalar_lea.vmem %s0, %s197
      %p199 = pneg %p37
      %p200 = pneg %p34
      %p201 = pneg %p58
      %p202 = pneg %p55
      %p203 = pneg %p79
      %p204 = pneg %p76
      %p205 = pneg %p100
      %p206 = pneg %p97
      %p207 = pneg %p121
      %p208 = pneg %p118
      %p209 = pneg %p147
      %p210 = pneg %p144
      %s211 = smul.u32 13, %s16
      %p212 = scmp.lt.s32.totalorder %s211, 25
      %s213 = scalar_select %p212, %s211, 25
      %s214 = smul.addr %s213, 8
      %s215 = scalar_lea.vmem %s5, %s214
      %s216 = smul.u32 25, %s16
      %p217 = scmp.lt.s32.totalorder %s216, 49
      %s218 = scalar_select %p217, %s216, 49
      %s219 = smul.addr %s218, 8
      %s220 = scalar_lea.vmem %s0, %s219
      %s221 = smul.u32 25, %s16
      %s222 = smul.u32 13, %s16
      %p223 = scmp.lt.s32.totalorder %s222, 25
      %s224 = scalar_select %p223, %s222, 25
      %s225 = smul.addr %s224, 8
      %s226 = scalar_lea.vmem %s5, %s225
      %s227 = smul.u32 13, %s16
      %v229 = vld [vmem:[%s220] sm:$0xff]
      %v230 = vld [vmem:[%s220 + $0x8] sm:$0xff]
      %v231 = vld [vmem:[%s220 + $0x10] sm:$0xff]
      %v232 = vld [vmem:[%s220 + $0x18] sm:$0xff]
      %v233 = vld [vmem:[%s220 + $0x20] sm:$0xff]
      %v234 = vld [vmem:[%s220 + $0x28] sm:$0xff]
      %v235 = vld [vmem:[%s220 + $0x30] sm:$0xff]
      %v236 = vld [vmem:[%s220 + $0x38] sm:$0xff]
      %v237 = vld [vmem:[%s220 + $0x40] sm:$0xff]
      %v238 = vld [vmem:[%s220 + $0x48] sm:$0xff]
      %v239 = vld [vmem:[%s220 + $0x50] sm:$0xff]
      %v240 = vld [vmem:[%s220 + $0x58] sm:$0xff]
      %v241 = vld [vmem:[%s220 + $0x60] sm:$0xff]
      %v242 = vld [vmem:[%s220 + $0x68] sm:$0xff]
      %v243 = vld [vmem:[%s220 + $0x70] sm:$0xff]
      %v244 = vld [vmem:[%s220 + $0x78] sm:$0xff]
      %v245 = vld [vmem:[%s220 + $0x80] sm:$0xff]
      %v246 = vld [vmem:[%s220 + $0x88] sm:$0xff]
      %v247 = vld [vmem:[%s220 + $0x90] sm:$0xff]
      %v248 = vld [vmem:[%s220 + $0x98] sm:$0xff]
      %v249 = vld [vmem:[%s220 + $0xa0] sm:$0xff]
      %v250 = vpack.c.bf16 %v230, %v229
      %v251 = vpack.c.bf16 %v232, %v231
      %v252 = vpack.c.bf16 %v234, %v233
      %v253 = vpack.c.bf16 %v236, %v235
      %v254 = vpack.c.bf16 %v238, %v237
      %v255 = vpack.c.bf16 %v240, %v239
      %v256 = vpack.c.bf16 %v242, %v241
      %v257 = vpack.c.bf16 %v244, %v243
      %v258 = vpack.c.bf16 %v246, %v245
      %v259 = vpack.c.bf16 %v248, %v247
      %v260 = vpack.c.bf16 %v249, %v249
      %v261 = vld [vmem:[%s1] sm:$0x3]
      %v262 = vld [vmem:[%s220 + $0x1] sm:$0xff]
      %v263 = vld [vmem:[%s220 + $0x9] sm:$0xff]
      %v264 = vld [vmem:[%s220 + $0x11] sm:$0xff]
      %v265 = vld [vmem:[%s220 + $0x19] sm:$0xff]
      %v266 = vld [vmem:[%s220 + $0x21] sm:$0xff]
      %v267 = vld [vmem:[%s220 + $0x29] sm:$0xff]
      %v268 = vld [vmem:[%s220 + $0x31] sm:$0xff]
      %v269 = vld [vmem:[%s220 + $0x39] sm:$0xff]
      %v270 = vld [vmem:[%s220 + $0x41] sm:$0xff]
      %v271 = vld [vmem:[%s220 + $0x49] sm:$0xff]
      %v272 = vld [vmem:[%s220 + $0x51] sm:$0xff]
      %v273 = vld [vmem:[%s220 + $0x59] sm:$0xff]
      %v274 = vld [vmem:[%s220 + $0x61] sm:$0xff]
      %v275 = vld [vmem:[%s220 + $0x69] sm:$0xff]
      %v276 = vld [vmem:[%s220 + $0x71] sm:$0xff]
      %v277 = vld [vmem:[%s220 + $0x79] sm:$0xff]
      %v278 = vld [vmem:[%s220 + $0x81] sm:$0xff]
      %v279 = vld [vmem:[%s220 + $0x89] sm:$0xff]
      %v280 = vld [vmem:[%s220 + $0x91] sm:$0xff]
      %v281 = vld [vmem:[%s220 + $0x99] sm:$0xff]
      %v282 = vld [vmem:[%s220 + $0xa1] sm:$0xff]
      %v283 = vpack.c.bf16 %v263, %v262
      %v284 = vpack.c.bf16 %v265, %v264
      %v285 = vpack.c.bf16 %v267, %v266
      %v286 = vpack.c.bf16 %v269, %v268
      %v287 = vpack.c.bf16 %v271, %v270
      %v288 = vpack.c.bf16 %v273, %v272
      %v289 = vpack.c.bf16 %v275, %v274
      %v290 = vpack.c.bf16 %v277, %v276
      %v291 = vpack.c.bf16 %v279, %v278
      %v292 = vpack.c.bf16 %v281, %v280
      %v293 = vpack.c.bf16 %v282, %v282
      %s294 = scalar_lea.vmem %s1, 2
      %v295 = vld [vmem:[%s294] sm:$0x3]
      %vm296 = vcmask 23552
      %v298 = vsel %vm296, %v283, 0
      %v301 = vsel %vm296, %v284, 0
      %v304 = vsel %vm296, %v285, 0
      %v307 = vsel %vm296, %v286, 0
      %v310 = vsel %vm296, %v287, 0
      %v313 = vsel %vm296, %v288, 0
      %v316 = vsel %vm296, %v289, 0
      %v319 = vsel %vm296, %v290, 0
      %v322 = vsel %vm296, %v291, 0
      %v325 = vsel %vm296, %v292, 0
      %v328 = vsel %vm296, %v293, 0
      %vm330 = vcmask 1040384
      %vm331 = vcmask 1041408
      %v332 = vsel %vm330, 4294967295, 65535
      %v333 = vsel %vm331, %v332, 0
      %v335 = vand.u32 %v295, %v333
      %337 = vmatprep.subr.bf16.mxu0 0
      %338 = vmatpush1.bf16.msra.mxu0 0
      %339 = vmatprep.subr.bf16.mxu0 0
      %340 = vmatpush1.bf16.msra.mxu0 0
      %341 = vmatprep.subr.bf16.mxu0 0
      %342 = vmatpush1.bf16.msra.mxu0 0
      %343 = vmatprep.subr.bf16.mxu0 0
      %344 = vmatpush1.bf16.msra.mxu0 0
      %345 = vmatprep.subr.bf16.mxu0 0
      %346 = vmatpush1.bf16.msra.mxu0 0
      %347 = vmatprep.subr.bf16.mxu0 0
      %348 = vmatpush1.bf16.msra.mxu0 0
      %349 = vmatprep.subr.bf16.mxu0 0
      %350 = vmatpush1.bf16.msra.mxu0 0
      %351 = vmatprep.subr.bf16.mxu0 0
      %352 = vmatpush1.bf16.msra.mxu0 %v335
      %353 = vmatprep.subr.bf16.mxu0 0
      %354 = vmatpush2.bf16.msra.mxu0 0
      %355 = vmatprep.subr.bf16.mxu0 0
      %356 = vmatpush2.bf16.msra.mxu0 0
      %357 = vmatprep.subr.bf16.mxu0 0
      %358 = vmatpush2.bf16.msra.mxu0 0
      %359 = vmatprep.subr.bf16.mxu0 0
      %360 = vmatpush2.bf16.msra.mxu0 0
      %361 = vmatprep.subr.bf16.mxu0 0
      %362 = vmatpush2.bf16.msra.mxu0 0
      %363 = vmatprep.subr.bf16.mxu0 0
      %364 = vmatpush2.bf16.msra.mxu0 0
      %365 = vmatprep.subr.bf16.mxu0 0
      %366 = vmatpush2.bf16.msra.mxu0 0
      %367 = vmatprep.subr.bf16.mxu0 0
      %368 = vmatpush2.bf16.msra.mxu0 0
      %369 = vmatprep.mubr.bf16.mxu0 0
      %370 = vmatmul.mubr.bf16.gmra.mxu0 %v298
      %v371 = vpop.f32.mrf.mxu0
      %v372 = vadd.f32 0.0, %v371
      %v373 = vpop.f32.mrf.mxu0
      %v374 = vpop.f32.mrf.mxu0
      %v375 = vadd.f32 0.0, %v374
      %v376 = vpop.f32.mrf.mxu0
      %377 = vmatprep.mubr.bf16.mxu0 0
      %378 = vmatmul.mubr.bf16.gmra.mxu0 %v301
      %v379 = vpop.f32.mrf.mxu0
      %v380 = vadd.f32 0.0, %v379
      %v381 = vpop.f32.mrf.mxu0
      %v382 = vpop.f32.mrf.mxu0
      %v383 = vadd.f32 0.0, %v382
      %v384 = vpop.f32.mrf.mxu0
      %385 = vmatprep.mubr.bf16.mxu0 0
      %386 = vmatmul.mubr.bf16.gmra.mxu0 %v304
      %v387 = vpop.f32.mrf.mxu0
      %v388 = vadd.f32 0.0, %v387
      %v389 = vpop.f32.mrf.mxu0
      %v390 = vpop.f32.mrf.mxu0
      %v391 = vadd.f32 0.0, %v390
      %v392 = vpop.f32.mrf.mxu0
      %393 = vmatprep.mubr.bf16.mxu0 0
      %394 = vmatmul.mubr.bf16.gmra.mxu0 %v307
      %v395 = vpop.f32.mrf.mxu0
      %v396 = vadd.f32 0.0, %v395
      %v397 = vpop.f32.mrf.mxu0
      %v398 = vpop.f32.mrf.mxu0
      %v399 = vadd.f32 0.0, %v398
      %v400 = vpop.f32.mrf.mxu0
      %401 = vmatprep.mubr.bf16.mxu0 0
      %402 = vmatmul.mubr.bf16.gmra.mxu0 %v310
      %v403 = vpop.f32.mrf.mxu0
      %v404 = vadd.f32 0.0, %v403
      %v405 = vpop.f32.mrf.mxu0
      %v406 = vpop.f32.mrf.mxu0
      %v407 = vadd.f32 0.0, %v406
      %v408 = vpop.f32.mrf.mxu0
      %409 = vmatprep.mubr.bf16.mxu0 0
      %410 = vmatmul.mubr.bf16.gmra.mxu0 %v313
      %v411 = vpop.f32.mrf.mxu0
      %v412 = vadd.f32 0.0, %v411
      %v413 = vpop.f32.mrf.mxu0
      %v414 = vpop.f32.mrf.mxu0
      %v415 = vadd.f32 0.0, %v414
      %v416 = vpop.f32.mrf.mxu0
      %417 = vmatprep.mubr.bf16.mxu0 0
      %418 = vmatmul.mubr.bf16.gmra.mxu0 %v316
      %v419 = vpop.f32.mrf.mxu0
      %v420 = vadd.f32 0.0, %v419
      %v421 = vpop.f32.mrf.mxu0
      %v422 = vpop.f32.mrf.mxu0
      %v423 = vadd.f32 0.0, %v422
      %v424 = vpop.f32.mrf.mxu0
      %425 = vmatprep.mubr.bf16.mxu0 0
      %426 = vmatmul.mubr.bf16.gmra.mxu0 %v319
      %v427 = vpop.f32.mrf.mxu0
      %v428 = vadd.f32 0.0, %v427
      %v429 = vpop.f32.mrf.mxu0
      %v430 = vpop.f32.mrf.mxu0
      %v431 = vadd.f32 0.0, %v430
      %v432 = vpop.f32.mrf.mxu0
      %433 = vmatprep.mubr.bf16.mxu0 0
      %434 = vmatmul.mubr.bf16.gmra.mxu0 %v322
      %v435 = vpop.f32.mrf.mxu0
      %v436 = vadd.f32 0.0, %v435
      %v437 = vpop.f32.mrf.mxu0
      %v438 = vpop.f32.mrf.mxu0
      %v439 = vadd.f32 0.0, %v438
      %v440 = vpop.f32.mrf.mxu0
      %441 = vmatprep.mubr.bf16.mxu0 0
      %442 = vmatmul.mubr.bf16.gmra.mxu0 %v325
      %v443 = vpop.f32.mrf.mxu0
      %v444 = vadd.f32 0.0, %v443
      %v445 = vpop.f32.mrf.mxu0
      %v446 = vpop.f32.mrf.mxu0
      %v447 = vadd.f32 0.0, %v446
      %v448 = vpop.f32.mrf.mxu0
      %449 = vmatprep.mubr.bf16.mxu0 0
      %450 = vmatmul.mubr.bf16.gmra.mxu0 %v328
      %v451 = vpop.f32.mrf.mxu0
      %v452 = vadd.f32 0.0, %v451
      %v453 = vpop.f32.mrf.mxu0
      %v454 = vpop.f32.mrf.mxu0
      %v455 = vpop.f32.mrf.mxu0
      %456 = vdwg.mxu0
      %v458 = vsel %vm296, %v250, 0
      %v461 = vsel %vm296, %v251, 0
      %v464 = vsel %vm296, %v252, 0
      %v467 = vsel %vm296, %v253, 0
      %v470 = vsel %vm296, %v254, 0
      %v473 = vsel %vm296, %v255, 0
      %v476 = vsel %vm296, %v256, 0
      %v479 = vsel %vm296, %v257, 0
      %v482 = vsel %vm296, %v258, 0
      %v485 = vsel %vm296, %v259, 0
      %v488 = vsel %vm296, %v260, 0
      %v491 = vand.u32 %v261, %v333
      %493 = vmatprep.subr.bf16.mxu0 0
      %494 = vmatpush1.bf16.msra.mxu0 0
      %495 = vmatprep.subr.bf16.mxu0 0
      %496 = vmatpush1.bf16.msra.mxu0 0
      %497 = vmatprep.subr.bf16.mxu0 0
      %498 = vmatpush1.bf16.msra.mxu0 0
      %499 = vmatprep.subr.bf16.mxu0 0
      %500 = vmatpush1.bf16.msra.mxu0 0
      %501 = vmatprep.subr.bf16.mxu0 0
      %502 = vmatpush1.bf16.msra.mxu0 0
      %503 = vmatprep.subr.bf16.mxu0 0
      %504 = vmatpush1.bf16.msra.mxu0 0
      %505 = vmatprep.subr.bf16.mxu0 0
      %506 = vmatpush1.bf16.msra.mxu0 0
      %507 = vmatprep.subr.bf16.mxu0 0
      %508 = vmatpush1.bf16.msra.mxu0 %v491
      %509 = vmatprep.subr.bf16.mxu0 0
      %510 = vmatpush2.bf16.msra.mxu0 0
      %511 = vmatprep.subr.bf16.mxu0 0
      %512 = vmatpush2.bf16.msra.mxu0 0
      %513 = vmatprep.subr.bf16.mxu0 0
      %514 = vmatpush2.bf16.msra.mxu0 0
      %515 = vmatprep.subr.bf16.mxu0 0
      %516 = vmatpush2.bf16.msra.mxu0 0
      %517 = vmatprep.subr.bf16.mxu0 0
      %518 = vmatpush2.bf16.msra.mxu0 0
      %519 = vmatprep.subr.bf16.mxu0 0
      %520 = vmatpush2.bf16.msra.mxu0 0
      %521 = vmatprep.subr.bf16.mxu0 0
      %522 = vmatpush2.bf16.msra.mxu0 0
      %523 = vmatprep.subr.bf16.mxu0 0
      %524 = vmatpush2.bf16.msra.mxu0 0
      %525 = vmatprep.mubr.bf16.mxu0 0
      %526 = vmatmul.mubr.bf16.gmra.mxu0 %v458
      %v527 = vpop.f32.mrf.mxu0
      %v528 = vadd.f32 %v372, %v527
      %v529 = vpop.f32.mrf.mxu0
      %v530 = vpop.f32.mrf.mxu0
      %v531 = vadd.f32 %v375, %v530
      %v532 = vpop.f32.mrf.mxu0
      %533 = vmatprep.mubr.bf16.mxu0 0
      %534 = vmatmul.mubr.bf16.gmra.mxu0 %v461
      %v535 = vpop.f32.mrf.mxu0
      %v536 = vadd.f32 %v380, %v535
      %v537 = vpop.f32.mrf.mxu0
      %v538 = vpop.f32.mrf.mxu0
      %v539 = vadd.f32 %v383, %v538
      %v540 = vpop.f32.mrf.mxu0
      %541 = vmatprep.mubr.bf16.mxu0 0
      %542 = vmatmul.mubr.bf16.gmra.mxu0 %v464
      %v543 = vpop.f32.mrf.mxu0
      %v544 = vadd.f32 %v388, %v543
      %v545 = vpop.f32.mrf.mxu0
      %v546 = vpop.f32.mrf.mxu0
      %v547 = vadd.f32 %v391, %v546
      %v548 = vpop.f32.mrf.mxu0
      %549 = vmatprep.mubr.bf16.mxu0 0
      %550 = vmatmul.mubr.bf16.gmra.mxu0 %v467
      %v551 = vpop.f32.mrf.mxu0
      %v552 = vadd.f32 %v396, %v551
      %v553 = vpop.f32.mrf.mxu0
      %v554 = vpop.f32.mrf.mxu0
      %v555 = vadd.f32 %v399, %v554
      %v556 = vpop.f32.mrf.mxu0
      %557 = vmatprep.mubr.bf16.mxu0 0
      %558 = vmatmul.mubr.bf16.gmra.mxu0 %v470
      %v559 = vpop.f32.mrf.mxu0
      %v560 = vadd.f32 %v404, %v559
      %v561 = vpop.f32.mrf.mxu0
      %v562 = vpop.f32.mrf.mxu0
      %v563 = vadd.f32 %v407, %v562
      %v564 = vpop.f32.mrf.mxu0
      %565 = vmatprep.mubr.bf16.mxu0 0
      %566 = vmatmul.mubr.bf16.gmra.mxu0 %v473
      %v567 = vpop.f32.mrf.mxu0
      %v568 = vadd.f32 %v412, %v567
      %v569 = vpop.f32.mrf.mxu0
      %v570 = vpop.f32.mrf.mxu0
      %v571 = vadd.f32 %v415, %v570
      %v572 = vpop.f32.mrf.mxu0
      %573 = vmatprep.mubr.bf16.mxu0 0
      %574 = vmatmul.mubr.bf16.gmra.mxu0 %v476
      %v575 = vpop.f32.mrf.mxu0
      %v576 = vadd.f32 %v420, %v575
      %v577 = vpop.f32.mrf.mxu0
      %v578 = vpop.f32.mrf.mxu0
      %v579 = vadd.f32 %v423, %v578
      %v580 = vpop.f32.mrf.mxu0
      %581 = vmatprep.mubr.bf16.mxu0 0
      %582 = vmatmul.mubr.bf16.gmra.mxu0 %v479
      %v583 = vpop.f32.mrf.mxu0
      %v584 = vadd.f32 %v428, %v583
      %v585 = vpop.f32.mrf.mxu0
      %v586 = vpop.f32.mrf.mxu0
      %v587 = vadd.f32 %v431, %v586
      %v588 = vpop.f32.mrf.mxu0
      %589 = vmatprep.mubr.bf16.mxu0 0
      %590 = vmatmul.mubr.bf16.gmra.mxu0 %v482
      %v591 = vpop.f32.mrf.mxu0
      %v592 = vadd.f32 %v436, %v591
      %v593 = vpop.f32.mrf.mxu0
      %v594 = vpop.f32.mrf.mxu0
      %v595 = vadd.f32 %v439, %v594
      %v596 = vpop.f32.mrf.mxu0
      %597 = vmatprep.mubr.bf16.mxu0 0
      %598 = vmatmul.mubr.bf16.gmra.mxu0 %v485
      %v599 = vpop.f32.mrf.mxu0
      %v600 = vadd.f32 %v444, %v599
      %v601 = vpop.f32.mrf.mxu0
      %v602 = vpop.f32.mrf.mxu0
      %v603 = vadd.f32 %v447, %v602
      %v604 = vpop.f32.mrf.mxu0
      %605 = vmatprep.mubr.bf16.mxu0 0
      %606 = vmatmul.mubr.bf16.gmra.mxu0 %v488
      %v607 = vpop.f32.mrf.mxu0
      %v608 = vadd.f32 %v452, %v607
      %v609 = vpop.f32.mrf.mxu0
      %v610 = vpop.f32.mrf.mxu0
      %v611 = vpop.f32.mrf.mxu0
      %612 = vdwg.mxu0
      %v613 = vld [vmem:[%s220 + $0x2] sm:$0xff]
      %v614 = vld [vmem:[%s220 + $0xa] sm:$0xff]
      %v615 = vld [vmem:[%s220 + $0x12] sm:$0xff]
      %v616 = vld [vmem:[%s220 + $0x1a] sm:$0xff]
      %v617 = vld [vmem:[%s220 + $0x22] sm:$0xff]
      %v618 = vld [vmem:[%s220 + $0x2a] sm:$0xff]
      %v619 = vld [vmem:[%s220 + $0x32] sm:$0xff]
      %v620 = vld [vmem:[%s220 + $0x3a] sm:$0xff]
      %v621 = vld [vmem:[%s220 + $0x42] sm:$0xff]
      %v622 = vld [vmem:[%s220 + $0x4a] sm:$0xff]
      %v623 = vld [vmem:[%s220 + $0x52] sm:$0xff]
      %v624 = vld [vmem:[%s220 + $0x5a] sm:$0xff]
      %v625 = vld [vmem:[%s220 + $0x62] sm:$0xff]
      %v626 = vld [vmem:[%s220 + $0x6a] sm:$0xff]
      %v627 = vld [vmem:[%s220 + $0x72] sm:$0xff]
      %v628 = vld [vmem:[%s220 + $0x7a] sm:$0xff]
      %v629 = vld [vmem:[%s220 + $0x82] sm:$0xff]
      %v630 = vld [vmem:[%s220 + $0x8a] sm:$0xff]
      %v631 = vld [vmem:[%s220 + $0x92] sm:$0xff]
      %v632 = vld [vmem:[%s220 + $0x9a] sm:$0xff]
      %v633 = vld [vmem:[%s220 + $0xa2] sm:$0xff]
      %v634 = vpack.c.bf16 %v614, %v613
      %v635 = vpack.c.bf16 %v616, %v615
      %v636 = vpack.c.bf16 %v618, %v617
      %v637 = vpack.c.bf16 %v620, %v619
      %v638 = vpack.c.bf16 %v622, %v621
      %v639 = vpack.c.bf16 %v624, %v623
      %v640 = vpack.c.bf16 %v626, %v625
      %v641 = vpack.c.bf16 %v628, %v627
      %v642 = vpack.c.bf16 %v630, %v629
      %v643 = vpack.c.bf16 %v632, %v631
      %v644 = vpack.c.bf16 %v633, %v633
      %s645 = scalar_lea.vmem %s1, 4
      %v646 = vld [vmem:[%s645] sm:$0x3]
      %v648 = vsel %vm296, %v634, 0
      %v651 = vsel %vm296, %v635, 0
      %v654 = vsel %vm296, %v636, 0
      %v657 = vsel %vm296, %v637, 0
      %v660 = vsel %vm296, %v638, 0
      %v663 = vsel %vm296, %v639, 0
      %v666 = vsel %vm296, %v640, 0
      %v669 = vsel %vm296, %v641, 0
      %v672 = vsel %vm296, %v642, 0
      %v675 = vsel %vm296, %v643, 0
      %v678 = vsel %vm296, %v644, 0
      %v681 = vand.u32 %v646, %v333
      %683 = vmatprep.subr.bf16.mxu0 0
      %684 = vmatpush1.bf16.msra.mxu0 0
      %685 = vmatprep.subr.bf16.mxu0 0
      %686 = vmatpush1.bf16.msra.mxu0 0
      %687 = vmatprep.subr.bf16.mxu0 0
      %688 = vmatpush1.bf16.msra.mxu0 0
      %689 = vmatprep.subr.bf16.mxu0 0
      %690 = vmatpush1.bf16.msra.mxu0 0
      %691 = vmatprep.subr.bf16.mxu0 0
      %692 = vmatpush1.bf16.msra.mxu0 0
      %693 = vmatprep.subr.bf16.mxu0 0
      %694 = vmatpush1.bf16.msra.mxu0 0
      %695 = vmatprep.subr.bf16.mxu0 0
      %696 = vmatpush1.bf16.msra.mxu0 0
      %697 = vmatprep.subr.bf16.mxu0 0
      %698 = vmatpush1.bf16.msra.mxu0 %v681
      %699 = vmatprep.subr.bf16.mxu0 0
      %700 = vmatpush2.bf16.msra.mxu0 0
      %701 = vmatprep.subr.bf16.mxu0 0
      %702 = vmatpush2.bf16.msra.mxu0 0
      %703 = vmatprep.subr.bf16.mxu0 0
      %704 = vmatpush2.bf16.msra.mxu0 0
      %705 = vmatprep.subr.bf16.mxu0 0
      %706 = vmatpush2.bf16.msra.mxu0 0
      %707 = vmatprep.subr.bf16.mxu0 0
      %708 = vmatpush2.bf16.msra.mxu0 0
      %709 = vmatprep.subr.bf16.mxu0 0
      %710 = vmatpush2.bf16.msra.mxu0 0
      %711 = vmatprep.subr.bf16.mxu0 0
      %712 = vmatpush2.bf16.msra.mxu0 0
      %713 = vmatprep.subr.bf16.mxu0 0
      %714 = vmatpush2.bf16.msra.mxu0 0
      %715 = vmatprep.mubr.bf16.mxu0 0
      %716 = vmatmul.mubr.bf16.gmra.mxu0 %v648
      %v717 = vpop.f32.mrf.mxu0
      %v718 = vadd.f32 0.0, %v717
      %v719 = vpop.f32.mrf.mxu0
      %v720 = vpop.f32.mrf.mxu0
      %v721 = vadd.f32 0.0, %v720
      %v722 = vpop.f32.mrf.mxu0
      %723 = vmatprep.mubr.bf16.mxu0 0
      %724 = vmatmul.mubr.bf16.gmra.mxu0 %v651
      %v725 = vpop.f32.mrf.mxu0
      %v726 = vadd.f32 0.0, %v725
      %v727 = vpop.f32.mrf.mxu0
      %v728 = vpop.f32.mrf.mxu0
      %v729 = vadd.f32 0.0, %v728
      %v730 = vpop.f32.mrf.mxu0
      %731 = vmatprep.mubr.bf16.mxu0 0
      %732 = vmatmul.mubr.bf16.gmra.mxu0 %v654
      %v733 = vpop.f32.mrf.mxu0
      %v734 = vadd.f32 0.0, %v733
      %v735 = vpop.f32.mrf.mxu0
      %v736 = vpop.f32.mrf.mxu0
      %v737 = vadd.f32 0.0, %v736
      %v738 = vpop.f32.mrf.mxu0
      %739 = vmatprep.mubr.bf16.mxu0 0
      %740 = vmatmul.mubr.bf16.gmra.mxu0 %v657
      %v741 = vpop.f32.mrf.mxu0
      %v742 = vadd.f32 0.0, %v741
      %v743 = vpop.f32.mrf.mxu0
      %v744 = vpop.f32.mrf.mxu0
      %v745 = vadd.f32 0.0, %v744
      %v746 = vpop.f32.mrf.mxu0
      %747 = vmatprep.mubr.bf16.mxu0 0
      %748 = vmatmul.mubr.bf16.gmra.mxu0 %v660
      %v749 = vpop.f32.mrf.mxu0
      %v750 = vadd.f32 0.0, %v749
      %v751 = vpop.f32.mrf.mxu0
      %v752 = vpop.f32.mrf.mxu0
      %v753 = vadd.f32 0.0, %v752
      %v754 = vpop.f32.mrf.mxu0
      %755 = vmatprep.mubr.bf16.mxu0 0
      %756 = vmatmul.mubr.bf16.gmra.mxu0 %v663
      %v757 = vpop.f32.mrf.mxu0
      %v758 = vadd.f32 0.0, %v757
      %v759 = vpop.f32.mrf.mxu0
      %v760 = vpop.f32.mrf.mxu0
      %v761 = vadd.f32 0.0, %v760
      %v762 = vpop.f32.mrf.mxu0
      %763 = vmatprep.mubr.bf16.mxu0 0
      %764 = vmatmul.mubr.bf16.gmra.mxu0 %v666
      %v765 = vpop.f32.mrf.mxu0
      %v766 = vadd.f32 0.0, %v765
      %v767 = vpop.f32.mrf.mxu0
      %v768 = vpop.f32.mrf.mxu0
      %v769 = vadd.f32 0.0, %v768
      %v770 = vpop.f32.mrf.mxu0
      %771 = vmatprep.mubr.bf16.mxu0 0
      %772 = vmatmul.mubr.bf16.gmra.mxu0 %v669
      %v773 = vpop.f32.mrf.mxu0
      %v774 = vadd.f32 0.0, %v773
      %v775 = vpop.f32.mrf.mxu0
      %v776 = vpop.f32.mrf.mxu0
      %v777 = vadd.f32 0.0, %v776
      %v778 = vpop.f32.mrf.mxu0
      %779 = vmatprep.mubr.bf16.mxu0 0
      %780 = vmatmul.mubr.bf16.gmra.mxu0 %v672
      %v781 = vpop.f32.mrf.mxu0
      %v782 = vadd.f32 0.0, %v781
      %v783 = vpop.f32.mrf.mxu0
      %v784 = vpop.f32.mrf.mxu0
      %v785 = vadd.f32 0.0, %v784
      %v786 = vpop.f32.mrf.mxu0
      %787 = vmatprep.mubr.bf16.mxu0 0
      %788 = vmatmul.mubr.bf16.gmra.mxu0 %v675
      %v789 = vpop.f32.mrf.mxu0
      %v790 = vadd.f32 0.0, %v789
      %v791 = vpop.f32.mrf.mxu0
      %v792 = vpop.f32.mrf.mxu0
      %v793 = vadd.f32 0.0, %v792
      %v794 = vpop.f32.mrf.mxu0
      %795 = vmatprep.mubr.bf16.mxu0 0
      %796 = vmatmul.mubr.bf16.gmra.mxu0 %v678
      %v797 = vpop.f32.mrf.mxu0
      %v798 = vadd.f32 0.0, %v797
      %v799 = vpop.f32.mrf.mxu0
      %v800 = vpop.f32.mrf.mxu0
      %v801 = vpop.f32.mrf.mxu0
      %802 = vdwg.mxu0
      %v803 = vadd.f32 %v528, %v718
      %v804 = vadd.f32 %v531, %v721
      %v805 = vadd.f32 %v536, %v726
      %v806 = vadd.f32 %v539, %v729
      %v807 = vadd.f32 %v544, %v734
      %v808 = vadd.f32 %v547, %v737
      %v809 = vadd.f32 %v552, %v742
      %v810 = vadd.f32 %v555, %v745
      %v811 = vadd.f32 %v560, %v750
      %v812 = vadd.f32 %v563, %v753
      %v813 = vadd.f32 %v568, %v758
      %v814 = vadd.f32 %v571, %v761
      %v815 = vadd.f32 %v576, %v766
      %v816 = vadd.f32 %v579, %v769
      %v817 = vadd.f32 %v584, %v774
      %v818 = vadd.f32 %v587, %v777
      %v819 = vadd.f32 %v592, %v782
      %v820 = vadd.f32 %v595, %v785
      %v821 = vadd.f32 %v600, %v790
      %v822 = vadd.f32 %v603, %v793
      %v823 = vadd.f32 %v608, %v798
      %v824 = vld [vmem:[%s220 + $0xe] sm:$0xff]
      %v825 = vld [vmem:[%s220 + $0x16] sm:$0xff]
      %v826 = vld [vmem:[%s220 + $0x1e] sm:$0xff]
      %v827 = vld [vmem:[%s220 + $0x26] sm:$0xff]
      %v828 = vld [vmem:[%s220 + $0x2e] sm:$0xff]
      %v829 = vld [vmem:[%s220 + $0x36] sm:$0xff]
      %v830 = vld [vmem:[%s220 + $0x3e] sm:$0xff]
      %v831 = vld [vmem:[%s220 + $0x46] sm:$0xff]
      %v832 = vld [vmem:[%s220 + $0x4e] sm:$0xff]
      %v833 = vld [vmem:[%s220 + $0x56] sm:$0xff]
      %v834 = vld [vmem:[%s220 + $0x5e] sm:$0xff]
      %v835 = vld [vmem:[%s220 + $0x66] sm:$0xff]
      %v836 = vld [vmem:[%s220 + $0x6e] sm:$0xff]
      %v837 = vld [vmem:[%s220 + $0x76] sm:$0xff]
      %v838 = vld [vmem:[%s220 + $0x7e] sm:$0xff]
      %v839 = vld [vmem:[%s220 + $0x86] sm:$0xff]
      %v840 = vld [vmem:[%s220 + $0x8e] sm:$0xff]
      %v841 = vld [vmem:[%s220 + $0x96] sm:$0xff]
      %v842 = vld [vmem:[%s220 + $0x9e] sm:$0xff]
      %v843 = vld [vmem:[%s220 + $0xa6] sm:$0xff]
      %v844 = vld [vmem:[%s220 + $0xae] sm:$0xff]
      %v845 = vpack.c.bf16 %v825, %v824
      %v846 = vpack.c.bf16 %v827, %v826
      %v847 = vpack.c.bf16 %v829, %v828
      %v848 = vpack.c.bf16 %v831, %v830
      %v849 = vpack.c.bf16 %v833, %v832
      %v850 = vpack.c.bf16 %v835, %v834
      %v851 = vpack.c.bf16 %v837, %v836
      %v852 = vpack.c.bf16 %v839, %v838
      %v853 = vpack.c.bf16 %v841, %v840
      %v854 = vpack.c.bf16 %v843, %v842
      %v855 = vpack.c.bf16 %v844, %v844
      %s856 = scalar_lea.vmem %s1, 6
      %v857 = vld [vmem:[%s856] sm:$0x3]
      %v859 = vsel %vm296, %v845, 0
      %v862 = vsel %vm296, %v846, 0
      %v865 = vsel %vm296, %v847, 0
      %v868 = vsel %vm296, %v848, 0
      %v871 = vsel %vm296, %v849, 0
      %v874 = vsel %vm296, %v850, 0
      %v877 = vsel %vm296, %v851, 0
      %v880 = vsel %vm296, %v852, 0
      %v883 = vsel %vm296, %v853, 0
      %v886 = vsel %vm296, %v854, 0
      %v889 = vsel %vm296, %v855, 0
      %v892 = vand.u32 %v857, %v333
      %894 = vmatprep.subr.bf16.mxu0 0
      %895 = vmatpush1.bf16.msra.mxu0 0
      %896 = vmatprep.subr.bf16.mxu0 0
      %897 = vmatpush1.bf16.msra.mxu0 0
      %898 = vmatprep.subr.bf16.mxu0 0
      %899 = vmatpush1.bf16.msra.mxu0 0
      %900 = vmatprep.subr.bf16.mxu0 0
      %901 = vmatpush1.bf16.msra.mxu0 0
      %902 = vmatprep.subr.bf16.mxu0 0
      %903 = vmatpush1.bf16.msra.mxu0 0
      %904 = vmatprep.subr.bf16.mxu0 0
      %905 = vmatpush1.bf16.msra.mxu0 0
      %906 = vmatprep.subr.bf16.mxu0 0
      %907 = vmatpush1.bf16.msra.mxu0 0
      %908 = vmatprep.subr.bf16.mxu0 0
      %909 = vmatpush1.bf16.msra.mxu0 %v892
      %910 = vmatprep.subr.bf16.mxu0 0
      %911 = vmatpush2.bf16.msra.mxu0 0
      %912 = vmatprep.subr.bf16.mxu0 0
      %913 = vmatpush2.bf16.msra.mxu0 0
      %914 = vmatprep.subr.bf16.mxu0 0
      %915 = vmatpush2.bf16.msra.mxu0 0
      %916 = vmatprep.subr.bf16.mxu0 0
      %917 = vmatpush2.bf16.msra.mxu0 0
      %918 = vmatprep.subr.bf16.mxu0 0
      %919 = vmatpush2.bf16.msra.mxu0 0
      %920 = vmatprep.subr.bf16.mxu0 0
      %921 = vmatpush2.bf16.msra.mxu0 0
      %922 = vmatprep.subr.bf16.mxu0 0
      %923 = vmatpush2.bf16.msra.mxu0 0
      %924 = vmatprep.subr.bf16.mxu0 0
      %925 = vmatpush2.bf16.msra.mxu0 0
      %926 = vmatprep.mubr.bf16.mxu0 0
      %927 = vmatmul.mubr.bf16.gmra.mxu0 %v859
      %v928 = vpop.f32.mrf.mxu0
      %v929 = vadd.f32 0.0, %v928
      %v930 = vpop.f32.mrf.mxu0
      %v931 = vpop.f32.mrf.mxu0
      %v932 = vadd.f32 0.0, %v931
      %v933 = vpop.f32.mrf.mxu0
      %934 = vmatprep.mubr.bf16.mxu0 0
      %935 = vmatmul.mubr.bf16.gmra.mxu0 %v862
      %v936 = vpop.f32.mrf.mxu0
      %v937 = vadd.f32 0.0, %v936
      %v938 = vpop.f32.mrf.mxu0
      %v939 = vpop.f32.mrf.mxu0
      %v940 = vadd.f32 0.0, %v939
      %v941 = vpop.f32.mrf.mxu0
      %942 = vmatprep.mubr.bf16.mxu0 0
      %943 = vmatmul.mubr.bf16.gmra.mxu0 %v865
      %v944 = vpop.f32.mrf.mxu0
      %v945 = vadd.f32 0.0, %v944
      %v946 = vpop.f32.mrf.mxu0
      %v947 = vpop.f32.mrf.mxu0
      %v948 = vadd.f32 0.0, %v947
      %v949 = vpop.f32.mrf.mxu0
      %950 = vmatprep.mubr.bf16.mxu0 0
      %951 = vmatmul.mubr.bf16.gmra.mxu0 %v868
      %v952 = vpop.f32.mrf.mxu0
      %v953 = vadd.f32 0.0, %v952
      %v954 = vpop.f32.mrf.mxu0
      %v955 = vpop.f32.mrf.mxu0
      %v956 = vadd.f32 0.0, %v955
      %v957 = vpop.f32.mrf.mxu0
      %958 = vmatprep.mubr.bf16.mxu0 0
      %959 = vmatmul.mubr.bf16.gmra.mxu0 %v871
      %v960 = vpop.f32.mrf.mxu0
      %v961 = vadd.f32 0.0, %v960
      %v962 = vpop.f32.mrf.mxu0
      %v963 = vpop.f32.mrf.mxu0
      %v964 = vadd.f32 0.0, %v963
      %v965 = vpop.f32.mrf.mxu0
      %966 = vmatprep.mubr.bf16.mxu0 0
      %967 = vmatmul.mubr.bf16.gmra.mxu0 %v874
      %v968 = vpop.f32.mrf.mxu0
      %v969 = vadd.f32 0.0, %v968
      %v970 = vpop.f32.mrf.mxu0
      %v971 = vpop.f32.mrf.mxu0
      %v972 = vadd.f32 0.0, %v971
      %v973 = vpop.f32.mrf.mxu0
      %974 = vmatprep.mubr.bf16.mxu0 0
      %975 = vmatmul.mubr.bf16.gmra.mxu0 %v877
      %v976 = vpop.f32.mrf.mxu0
      %v977 = vadd.f32 0.0, %v976
      %v978 = vpop.f32.mrf.mxu0
      %v979 = vpop.f32.mrf.mxu0
      %v980 = vadd.f32 0.0, %v979
      %v981 = vpop.f32.mrf.mxu0
      %982 = vmatprep.mubr.bf16.mxu0 0
      %983 = vmatmul.mubr.bf16.gmra.mxu0 %v880
      %v984 = vpop.f32.mrf.mxu0
      %v985 = vadd.f32 0.0, %v984
      %v986 = vpop.f32.mrf.mxu0
      %v987 = vpop.f32.mrf.mxu0
      %v988 = vadd.f32 0.0, %v987
      %v989 = vpop.f32.mrf.mxu0
      %990 = vmatprep.mubr.bf16.mxu0 0
      %991 = vmatmul.mubr.bf16.gmra.mxu0 %v883
      %v992 = vpop.f32.mrf.mxu0
      %v993 = vadd.f32 0.0, %v992
      %v994 = vpop.f32.mrf.mxu0
      %v995 = vpop.f32.mrf.mxu0
      %v996 = vadd.f32 0.0, %v995
      %v997 = vpop.f32.mrf.mxu0
      %998 = vmatprep.mubr.bf16.mxu0 0
      %999 = vmatmul.mubr.bf16.gmra.mxu0 %v886
      %v1000 = vpop.f32.mrf.mxu0
      %v1001 = vadd.f32 0.0, %v1000
      %v1002 = vpop.f32.mrf.mxu0
      %v1003 = vpop.f32.mrf.mxu0
      %v1004 = vadd.f32 0.0, %v1003
      %v1005 = vpop.f32.mrf.mxu0
      %1006 = vmatprep.mubr.bf16.mxu0 0
      %1007 = vmatmul.mubr.bf16.gmra.mxu0 %v889
      %v1008 = vpop.f32.mrf.mxu0
      %v1009 = vadd.f32 0.0, %v1008
      %v1010 = vpop.f32.mrf.mxu0
      %v1011 = vpop.f32.mrf.mxu0
      %v1012 = vpop.f32.mrf.mxu0
      %1013 = vdwg.mxu0
      %v1014 = vadd.f32 %v803, %v929
      %v1015 = vadd.f32 %v804, %v932
      %v1016 = vadd.f32 %v805, %v937
      %v1017 = vadd.f32 %v806, %v940
      %v1018 = vadd.f32 %v807, %v945
      %v1019 = vadd.f32 %v808, %v948
      %v1020 = vadd.f32 %v809, %v953
      %v1021 = vadd.f32 %v810, %v956
      %v1022 = vadd.f32 %v811, %v961
      %v1023 = vadd.f32 %v812, %v964
      %v1024 = vadd.f32 %v813, %v969
      %v1025 = vadd.f32 %v814, %v972
      %v1026 = vadd.f32 %v815, %v977
      %v1027 = vadd.f32 %v816, %v980
      %v1028 = vadd.f32 %v817, %v985
      %v1029 = vadd.f32 %v818, %v988
      %v1030 = vadd.f32 %v819, %v993
      %v1031 = vadd.f32 %v820, %v996
      %v1032 = vadd.f32 %v821, %v1001
      %v1033 = vadd.f32 %v822, %v1004
      %v1034 = vadd.f32 %v823, %v1009
      %v1035 = vld [vmem:[%s220 + $0xf] sm:$0xff]
      %v1036 = vld [vmem:[%s220 + $0x17] sm:$0xff]
      %v1037 = vld [vmem:[%s220 + $0x1f] sm:$0xff]
      %v1038 = vld [vmem:[%s220 + $0x27] sm:$0xff]
      %v1039 = vld [vmem:[%s220 + $0x2f] sm:$0xff]
      %v1040 = vld [vmem:[%s220 + $0x37] sm:$0xff]
      %v1041 = vld [vmem:[%s220 + $0x3f] sm:$0xff]
      %v1042 = vld [vmem:[%s220 + $0x47] sm:$0xff]
      %v1043 = vld [vmem:[%s220 + $0x4f] sm:$0xff]
      %v1044 = vld [vmem:[%s220 + $0x57] sm:$0xff]
      %v1045 = vld [vmem:[%s220 + $0x5f] sm:$0xff]
      %v1046 = vld [vmem:[%s220 + $0x67] sm:$0xff]
      %v1047 = vld [vmem:[%s220 + $0x6f] sm:$0xff]
      %v1048 = vld [vmem:[%s220 + $0x77] sm:$0xff]
      %v1049 = vld [vmem:[%s220 + $0x7f] sm:$0xff]
      %v1050 = vld [vmem:[%s220 + $0x87] sm:$0xff]
      %v1051 = vld [vmem:[%s220 + $0x8f] sm:$0xff]
      %v1052 = vld [vmem:[%s220 + $0x97] sm:$0xff]
      %v1053 = vld [vmem:[%s220 + $0x9f] sm:$0xff]
      %v1054 = vld [vmem:[%s220 + $0xa7] sm:$0xff]
      %v1055 = vld [vmem:[%s220 + $0xaf] sm:$0xff]
      %v1056 = vpack.c.bf16 %v1036, %v1035
      %v1057 = vpack.c.bf16 %v1038, %v1037
      %v1058 = vpack.c.bf16 %v1040, %v1039
      %v1059 = vpack.c.bf16 %v1042, %v1041
      %v1060 = vpack.c.bf16 %v1044, %v1043
      %v1061 = vpack.c.bf16 %v1046, %v1045
      %v1062 = vpack.c.bf16 %v1048, %v1047
      %v1063 = vpack.c.bf16 %v1050, %v1049
      %v1064 = vpack.c.bf16 %v1052, %v1051
      %v1065 = vpack.c.bf16 %v1054, %v1053
      %v1066 = vpack.c.bf16 %v1055, %v1055
      %s1067 = scalar_lea.vmem %s1, 8
      %v1068 = vld [vmem:[%s1067] sm:$0x3]
      %v1070 = vsel %vm296, %v1056, 0
      %v1073 = vsel %vm296, %v1057, 0
      %v1076 = vsel %vm296, %v1058, 0
      %v1079 = vsel %vm296, %v1059, 0
      %v1082 = vsel %vm296, %v1060, 0
      %v1085 = vsel %vm296, %v1061, 0
      %v1088 = vsel %vm296, %v1062, 0
      %v1091 = vsel %vm296, %v1063, 0
      %v1094 = vsel %vm296, %v1064, 0
      %v1097 = vsel %vm296, %v1065, 0
      %v1100 = vsel %vm296, %v1066, 0
      %v1103 = vand.u32 %v1068, %v333
      %1105 = vmatprep.subr.bf16.mxu0 0
      %1106 = vmatpush1.bf16.msra.mxu0 0
      %1107 = vmatprep.subr.bf16.mxu0 0
      %1108 = vmatpush1.bf16.msra.mxu0 0
      %1109 = vmatprep.subr.bf16.mxu0 0
      %1110 = vmatpush1.bf16.msra.mxu0 0
      %1111 = vmatprep.subr.bf16.mxu0 0
      %1112 = vmatpush1.bf16.msra.mxu0 0
      %1113 = vmatprep.subr.bf16.mxu0 0
      %1114 = vmatpush1.bf16.msra.mxu0 0
      %1115 = vmatprep.subr.bf16.mxu0 0
      %1116 = vmatpush1.bf16.msra.mxu0 0
      %1117 = vmatprep.subr.bf16.mxu0 0
      %1118 = vmatpush1.bf16.msra.mxu0 0
      %1119 = vmatprep.subr.bf16.mxu0 0
      %1120 = vmatpush1.bf16.msra.mxu0 %v1103
      %1121 = vmatprep.subr.bf16.mxu0 0
      %1122 = vmatpush2.bf16.msra.mxu0 0
      %1123 = vmatprep.subr.bf16.mxu0 0
      %1124 = vmatpush2.bf16.msra.mxu0 0
      %1125 = vmatprep.subr.bf16.mxu0 0
      %1126 = vmatpush2.bf16.msra.mxu0 0
      %1127 = vmatprep.subr.bf16.mxu0 0
      %1128 = vmatpush2.bf16.msra.mxu0 0
      %1129 = vmatprep.subr.bf16.mxu0 0
      %1130 = vmatpush2.bf16.msra.mxu0 0
      %1131 = vmatprep.subr.bf16.mxu0 0
      %1132 = vmatpush2.bf16.msra.mxu0 0
      %1133 = vmatprep.subr.bf16.mxu0 0
      %1134 = vmatpush2.bf16.msra.mxu0 0
      %1135 = vmatprep.subr.bf16.mxu0 0
      %1136 = vmatpush2.bf16.msra.mxu0 0
      %1137 = vmatprep.mubr.bf16.mxu0 0
      %1138 = vmatmul.mubr.bf16.gmra.mxu0 %v1070
      %v1139 = vpop.f32.mrf.mxu0
      %v1140 = vadd.f32 0.0, %v1139
      %v1141 = vpop.f32.mrf.mxu0
      %v1142 = vpop.f32.mrf.mxu0
      %v1143 = vadd.f32 0.0, %v1142
      %v1144 = vpop.f32.mrf.mxu0
      %1145 = vmatprep.mubr.bf16.mxu0 0
      %1146 = vmatmul.mubr.bf16.gmra.mxu0 %v1073
      %v1147 = vpop.f32.mrf.mxu0
      %v1148 = vadd.f32 0.0, %v1147
      %v1149 = vpop.f32.mrf.mxu0
      %v1150 = vpop.f32.mrf.mxu0
      %v1151 = vadd.f32 0.0, %v1150
      %v1152 = vpop.f32.mrf.mxu0
      %1153 = vmatprep.mubr.bf16.mxu0 0
      %1154 = vmatmul.mubr.bf16.gmra.mxu0 %v1076
      %v1155 = vpop.f32.mrf.mxu0
      %v1156 = vadd.f32 0.0, %v1155
      %v1157 = vpop.f32.mrf.mxu0
      %v1158 = vpop.f32.mrf.mxu0
      %v1159 = vadd.f32 0.0, %v1158
      %v1160 = vpop.f32.mrf.mxu0
      %1161 = vmatprep.mubr.bf16.mxu0 0
      %1162 = vmatmul.mubr.bf16.gmra.mxu0 %v1079
      %v1163 = vpop.f32.mrf.mxu0
      %v1164 = vadd.f32 0.0, %v1163
      %v1165 = vpop.f32.mrf.mxu0
      %v1166 = vpop.f32.mrf.mxu0
      %v1167 = vadd.f32 0.0, %v1166
      %v1168 = vpop.f32.mrf.mxu0
      %1169 = vmatprep.mubr.bf16.mxu0 0
      %1170 = vmatmul.mubr.bf16.gmra.mxu0 %v1082
      %v1171 = vpop.f32.mrf.mxu0
      %v1172 = vadd.f32 0.0, %v1171
      %v1173 = vpop.f32.mrf.mxu0
      %v1174 = vpop.f32.mrf.mxu0
      %v1175 = vadd.f32 0.0, %v1174
      %v1176 = vpop.f32.mrf.mxu0
      %1177 = vmatprep.mubr.bf16.mxu0 0
      %1178 = vmatmul.mubr.bf16.gmra.mxu0 %v1085
      %v1179 = vpop.f32.mrf.mxu0
      %v1180 = vadd.f32 0.0, %v1179
      %v1181 = vpop.f32.mrf.mxu0
      %v1182 = vpop.f32.mrf.mxu0
      %v1183 = vadd.f32 0.0, %v1182
      %v1184 = vpop.f32.mrf.mxu0
      %1185 = vmatprep.mubr.bf16.mxu0 0
      %1186 = vmatmul.mubr.bf16.gmra.mxu0 %v1088
      %v1187 = vpop.f32.mrf.mxu0
      %v1188 = vadd.f32 0.0, %v1187
      %v1189 = vpop.f32.mrf.mxu0
      %v1190 = vpop.f32.mrf.mxu0
      %v1191 = vadd.f32 0.0, %v1190
      %v1192 = vpop.f32.mrf.mxu0
      %1193 = vmatprep.mubr.bf16.mxu0 0
      %1194 = vmatmul.mubr.bf16.gmra.mxu0 %v1091
      %v1195 = vpop.f32.mrf.mxu0
      %v1196 = vadd.f32 0.0, %v1195
      %v1197 = vpop.f32.mrf.mxu0
      %v1198 = vpop.f32.mrf.mxu0
      %v1199 = vadd.f32 0.0, %v1198
      %v1200 = vpop.f32.mrf.mxu0
      %1201 = vmatprep.mubr.bf16.mxu0 0
      %1202 = vmatmul.mubr.bf16.gmra.mxu0 %v1094
      %v1203 = vpop.f32.mrf.mxu0
      %v1204 = vadd.f32 0.0, %v1203
      %v1205 = vpop.f32.mrf.mxu0
      %v1206 = vpop.f32.mrf.mxu0
      %v1207 = vadd.f32 0.0, %v1206
      %v1208 = vpop.f32.mrf.mxu0
      %1209 = vmatprep.mubr.bf16.mxu0 0
      %1210 = vmatmul.mubr.bf16.gmra.mxu0 %v1097
      %v1211 = vpop.f32.mrf.mxu0
      %v1212 = vadd.f32 0.0, %v1211
      %v1213 = vpop.f32.mrf.mxu0
      %v1214 = vpop.f32.mrf.mxu0
      %v1215 = vadd.f32 0.0, %v1214
      %v1216 = vpop.f32.mrf.mxu0
      %1217 = vmatprep.mubr.bf16.mxu0 0
      %1218 = vmatmul.mubr.bf16.gmra.mxu0 %v1100
      %v1219 = vpop.f32.mrf.mxu0
      %v1220 = vadd.f32 0.0, %v1219
      %v1221 = vpop.f32.mrf.mxu0
      %v1222 = vpop.f32.mrf.mxu0
      %v1223 = vpop.f32.mrf.mxu0
      %1224 = vdwg.mxu0
      %v1225 = vadd.f32 %v1014, %v1140
      %v1226 = vadd.f32 %v1015, %v1143
      %v1227 = vadd.f32 %v1016, %v1148
      %v1228 = vadd.f32 %v1017, %v1151
      %v1229 = vadd.f32 %v1018, %v1156
      %v1230 = vadd.f32 %v1019, %v1159
      %v1231 = vadd.f32 %v1020, %v1164
      %v1232 = vadd.f32 %v1021, %v1167
      %v1233 = vadd.f32 %v1022, %v1172
      %v1234 = vadd.f32 %v1023, %v1175
      %v1235 = vadd.f32 %v1024, %v1180
      %v1236 = vadd.f32 %v1025, %v1183
      %v1237 = vadd.f32 %v1026, %v1188
      %v1238 = vadd.f32 %v1027, %v1191
      %v1239 = vadd.f32 %v1028, %v1196
      %v1240 = vadd.f32 %v1029, %v1199
      %v1241 = vadd.f32 %v1030, %v1204
      %v1242 = vadd.f32 %v1031, %v1207
      %v1243 = vadd.f32 %v1032, %v1212
      %v1244 = vadd.f32 %v1033, %v1215
      %v1245 = vadd.f32 %v1034, %v1220
      %v1246 = vld [vmem:[%s220 + $0x10] sm:$0xff]
      %v1247 = vld [vmem:[%s220 + $0x18] sm:$0xff]
      %v1248 = vld [vmem:[%s220 + $0x20] sm:$0xff]
      %v1249 = vld [vmem:[%s220 + $0x28] sm:$0xff]
      %v1250 = vld [vmem:[%s220 + $0x30] sm:$0xff]
      %v1251 = vld [vmem:[%s220 + $0x38] sm:$0xff]
      %v1252 = vld [vmem:[%s220 + $0x40] sm:$0xff]
      %v1253 = vld [vmem:[%s220 + $0x48] sm:$0xff]
      %v1254 = vld [vmem:[%s220 + $0x50] sm:$0xff]
      %v1255 = vld [vmem:[%s220 + $0x58] sm:$0xff]
      %v1256 = vld [vmem:[%s220 + $0x60] sm:$0xff]
      %v1257 = vld [vmem:[%s220 + $0x68] sm:$0xff]
      %v1258 = vld [vmem:[%s220 + $0x70] sm:$0xff]
      %v1259 = vld [vmem:[%s220 + $0x78] sm:$0xff]
      %v1260 = vld [vmem:[%s220 + $0x80] sm:$0xff]
      %v1261 = vld [vmem:[%s220 + $0x88] sm:$0xff]
      %v1262 = vld [vmem:[%s220 + $0x90] sm:$0xff]
      %v1263 = vld [vmem:[%s220 + $0x98] sm:$0xff]
      %v1264 = vld [vmem:[%s220 + $0xa0] sm:$0xff]
      %v1265 = vld [vmem:[%s220 + $0xa8] sm:$0xff]
      %v1266 = vld [vmem:[%s220 + $0xb0] sm:$0xff]
      %v1267 = vpack.c.bf16 %v1247, %v1246
      %v1268 = vpack.c.bf16 %v1249, %v1248
      %v1269 = vpack.c.bf16 %v1251, %v1250
      %v1270 = vpack.c.bf16 %v1253, %v1252
      %v1271 = vpack.c.bf16 %v1255, %v1254
      %v1272 = vpack.c.bf16 %v1257, %v1256
      %v1273 = vpack.c.bf16 %v1259, %v1258
      %v1274 = vpack.c.bf16 %v1261, %v1260
      %v1275 = vpack.c.bf16 %v1263, %v1262
      %v1276 = vpack.c.bf16 %v1265, %v1264
      %v1277 = vpack.c.bf16 %v1266, %v1266
      %s1278 = scalar_lea.vmem %s1, 10
      %v1279 = vld [vmem:[%s1278] sm:$0x3]
      %v1281 = vsel %vm296, %v1267, 0
      %v1284 = vsel %vm296, %v1268, 0
      %v1287 = vsel %vm296, %v1269, 0
      %v1290 = vsel %vm296, %v1270, 0
      %v1293 = vsel %vm296, %v1271, 0
      %v1296 = vsel %vm296, %v1272, 0
      %v1299 = vsel %vm296, %v1273, 0
      %v1302 = vsel %vm296, %v1274, 0
      %v1305 = vsel %vm296, %v1275, 0
      %v1308 = vsel %vm296, %v1276, 0
      %v1311 = vsel %vm296, %v1277, 0
      %v1314 = vand.u32 %v1279, %v333
      %1316 = vmatprep.subr.bf16.mxu0 0
      %1317 = vmatpush1.bf16.msra.mxu0 0
      %1318 = vmatprep.subr.bf16.mxu0 0
      %1319 = vmatpush1.bf16.msra.mxu0 0
      %1320 = vmatprep.subr.bf16.mxu0 0
      %1321 = vmatpush1.bf16.msra.mxu0 0
      %1322 = vmatprep.subr.bf16.mxu0 0
      %1323 = vmatpush1.bf16.msra.mxu0 0
      %1324 = vmatprep.subr.bf16.mxu0 0
      %1325 = vmatpush1.bf16.msra.mxu0 0
      %1326 = vmatprep.subr.bf16.mxu0 0
      %1327 = vmatpush1.bf16.msra.mxu0 0
      %1328 = vmatprep.subr.bf16.mxu0 0
      %1329 = vmatpush1.bf16.msra.mxu0 0
      %1330 = vmatprep.subr.bf16.mxu0 0
      %1331 = vmatpush1.bf16.msra.mxu0 %v1314
      %1332 = vmatprep.subr.bf16.mxu0 0
      %1333 = vmatpush2.bf16.msra.mxu0 0
      %1334 = vmatprep.subr.bf16.mxu0 0
      %1335 = vmatpush2.bf16.msra.mxu0 0
      %1336 = vmatprep.subr.bf16.mxu0 0
      %1337 = vmatpush2.bf16.msra.mxu0 0
      %1338 = vmatprep.subr.bf16.mxu0 0
      %1339 = vmatpush2.bf16.msra.mxu0 0
      %1340 = vmatprep.subr.bf16.mxu0 0
      %1341 = vmatpush2.bf16.msra.mxu0 0
      %1342 = vmatprep.subr.bf16.mxu0 0
      %1343 = vmatpush2.bf16.msra.mxu0 0
      %1344 = vmatprep.subr.bf16.mxu0 0
      %1345 = vmatpush2.bf16.msra.mxu0 0
      %1346 = vmatprep.subr.bf16.mxu0 0
      %1347 = vmatpush2.bf16.msra.mxu0 0
      %1348 = vmatprep.mubr.bf16.mxu0 0
      %1349 = vmatmul.mubr.bf16.gmra.mxu0 %v1281
      %v1350 = vpop.f32.mrf.mxu0
      %v1351 = vadd.f32 0.0, %v1350
      %v1352 = vpop.f32.mrf.mxu0
      %v1353 = vpop.f32.mrf.mxu0
      %v1354 = vadd.f32 0.0, %v1353
      %v1355 = vpop.f32.mrf.mxu0
      %1356 = vmatprep.mubr.bf16.mxu0 0
      %1357 = vmatmul.mubr.bf16.gmra.mxu0 %v1284
      %v1358 = vpop.f32.mrf.mxu0
      %v1359 = vadd.f32 0.0, %v1358
      %v1360 = vpop.f32.mrf.mxu0
      %v1361 = vpop.f32.mrf.mxu0
      %v1362 = vadd.f32 0.0, %v1361
      %v1363 = vpop.f32.mrf.mxu0
      %1364 = vmatprep.mubr.bf16.mxu0 0
      %1365 = vmatmul.mubr.bf16.gmra.mxu0 %v1287
      %v1366 = vpop.f32.mrf.mxu0
      %v1367 = vadd.f32 0.0, %v1366
      %v1368 = vpop.f32.mrf.mxu0
      %v1369 = vpop.f32.mrf.mxu0
      %v1370 = vadd.f32 0.0, %v1369
      %v1371 = vpop.f32.mrf.mxu0
      %1372 = vmatprep.mubr.bf16.mxu0 0
      %1373 = vmatmul.mubr.bf16.gmra.mxu0 %v1290
      %v1374 = vpop.f32.mrf.mxu0
      %v1375 = vadd.f32 0.0, %v1374
      %v1376 = vpop.f32.mrf.mxu0
      %v1377 = vpop.f32.mrf.mxu0
      %v1378 = vadd.f32 0.0, %v1377
      %v1379 = vpop.f32.mrf.mxu0
      %1380 = vmatprep.mubr.bf16.mxu0 0
      %1381 = vmatmul.mubr.bf16.gmra.mxu0 %v1293
      %v1382 = vpop.f32.mrf.mxu0
      %v1383 = vadd.f32 0.0, %v1382
      %v1384 = vpop.f32.mrf.mxu0
      %v1385 = vpop.f32.mrf.mxu0
      %v1386 = vadd.f32 0.0, %v1385
      %v1387 = vpop.f32.mrf.mxu0
      %1388 = vmatprep.mubr.bf16.mxu0 0
      %1389 = vmatmul.mubr.bf16.gmra.mxu0 %v1296
      %v1390 = vpop.f32.mrf.mxu0
      %v1391 = vadd.f32 0.0, %v1390
      %v1392 = vpop.f32.mrf.mxu0
      %v1393 = vpop.f32.mrf.mxu0
      %v1394 = vadd.f32 0.0, %v1393
      %v1395 = vpop.f32.mrf.mxu0
      %1396 = vmatprep.mubr.bf16.mxu0 0
      %1397 = vmatmul.mubr.bf16.gmra.mxu0 %v1299
      %v1398 = vpop.f32.mrf.mxu0
      %v1399 = vadd.f32 0.0, %v1398
      %v1400 = vpop.f32.mrf.mxu0
      %v1401 = vpop.f32.mrf.mxu0
      %v1402 = vadd.f32 0.0, %v1401
      %v1403 = vpop.f32.mrf.mxu0
      %1404 = vmatprep.mubr.bf16.mxu0 0
      %1405 = vmatmul.mubr.bf16.gmra.mxu0 %v1302
      %v1406 = vpop.f32.mrf.mxu0
      %v1407 = vadd.f32 0.0, %v1406
      %v1408 = vpop.f32.mrf.mxu0
      %v1409 = vpop.f32.mrf.mxu0
      %v1410 = vadd.f32 0.0, %v1409
      %v1411 = vpop.f32.mrf.mxu0
      %1412 = vmatprep.mubr.bf16.mxu0 0
      %1413 = vmatmul.mubr.bf16.gmra.mxu0 %v1305
      %v1414 = vpop.f32.mrf.mxu0
      %v1415 = vadd.f32 0.0, %v1414
      %v1416 = vpop.f32.mrf.mxu0
      %v1417 = vpop.f32.mrf.mxu0
      %v1418 = vadd.f32 0.0, %v1417
      %v1419 = vpop.f32.mrf.mxu0
      %1420 = vmatprep.mubr.bf16.mxu0 0
      %1421 = vmatmul.mubr.bf16.gmra.mxu0 %v1308
      %v1422 = vpop.f32.mrf.mxu0
      %v1423 = vadd.f32 0.0, %v1422
      %v1424 = vpop.f32.mrf.mxu0
      %v1425 = vpop.f32.mrf.mxu0
      %v1426 = vadd.f32 0.0, %v1425
      %v1427 = vpop.f32.mrf.mxu0
      %1428 = vmatprep.mubr.bf16.mxu0 0
      %1429 = vmatmul.mubr.bf16.gmra.mxu0 %v1311
      %v1430 = vpop.f32.mrf.mxu0
      %v1431 = vadd.f32 0.0, %v1430
      %v1432 = vpop.f32.mrf.mxu0
      %v1433 = vpop.f32.mrf.mxu0
      %v1434 = vpop.f32.mrf.mxu0
      %1435 = vdwg.mxu0
      %v1436 = vadd.f32 %v1225, %v1351
      %v1437 = vadd.f32 %v1226, %v1354
      %v1438 = vadd.f32 %v1227, %v1359
      %v1439 = vadd.f32 %v1228, %v1362
      %v1440 = vadd.f32 %v1229, %v1367
      %v1441 = vadd.f32 %v1230, %v1370
      %v1442 = vadd.f32 %v1231, %v1375
      %v1443 = vadd.f32 %v1232, %v1378
      %v1444 = vadd.f32 %v1233, %v1383
      %v1445 = vadd.f32 %v1234, %v1386
      %v1446 = vadd.f32 %v1235, %v1391
      %v1447 = vadd.f32 %v1236, %v1394
      %v1448 = vadd.f32 %v1237, %v1399
      %v1449 = vadd.f32 %v1238, %v1402
      %v1450 = vadd.f32 %v1239, %v1407
      %v1451 = vadd.f32 %v1240, %v1410
      %v1452 = vadd.f32 %v1241, %v1415
      %v1453 = vadd.f32 %v1242, %v1418
      %v1454 = vadd.f32 %v1243, %v1423
      %v1455 = vadd.f32 %v1244, %v1426
      %v1456 = vadd.f32 %v1245, %v1431
      %v1457 = vld [vmem:[%s220 + $0x1c] sm:$0xff]
      %v1458 = vld [vmem:[%s220 + $0x24] sm:$0xff]
      %v1459 = vld [vmem:[%s220 + $0x2c] sm:$0xff]
      %v1460 = vld [vmem:[%s220 + $0x34] sm:$0xff]
      %v1461 = vld [vmem:[%s220 + $0x3c] sm:$0xff]
      %v1462 = vld [vmem:[%s220 + $0x44] sm:$0xff]
      %v1463 = vld [vmem:[%s220 + $0x4c] sm:$0xff]
      %v1464 = vld [vmem:[%s220 + $0x54] sm:$0xff]
      %v1465 = vld [vmem:[%s220 + $0x5c] sm:$0xff]
      %v1466 = vld [vmem:[%s220 + $0x64] sm:$0xff]
      %v1467 = vld [vmem:[%s220 + $0x6c] sm:$0xff]
      %v1468 = vld [vmem:[%s220 + $0x74] sm:$0xff]
      %v1469 = vld [vmem:[%s220 + $0x7c] sm:$0xff]
      %v1470 = vld [vmem:[%s220 + $0x84] sm:$0xff]
      %v1471 = vld [vmem:[%s220 + $0x8c] sm:$0xff]
      %v1472 = vld [vmem:[%s220 + $0x94] sm:$0xff]
      %v1473 = vld [vmem:[%s220 + $0x9c] sm:$0xff]
      %v1474 = vld [vmem:[%s220 + $0xa4] sm:$0xff]
      %v1475 = vld [vmem:[%s220 + $0xac] sm:$0xff]
      %v1476 = vld [vmem:[%s220 + $0xb4] sm:$0xff]
      %v1477 = vld [vmem:[%s220 + $0xbc] sm:$0xff]
      %v1478 = vpack.c.bf16 %v1458, %v1457
      %v1479 = vpack.c.bf16 %v1460, %v1459
      %v1480 = vpack.c.bf16 %v1462, %v1461
      %v1481 = vpack.c.bf16 %v1464, %v1463
      %v1482 = vpack.c.bf16 %v1466, %v1465
      %v1483 = vpack.c.bf16 %v1468, %v1467
      %v1484 = vpack.c.bf16 %v1470, %v1469
      %v1485 = vpack.c.bf16 %v1472, %v1471
      %v1486 = vpack.c.bf16 %v1474, %v1473
      %v1487 = vpack.c.bf16 %v1476, %v1475
      %v1488 = vpack.c.bf16 %v1477, %v1477
      %s1489 = scalar_lea.vmem %s1, 12
      %v1490 = vld [vmem:[%s1489] sm:$0x3]
      %v1492 = vsel %vm296, %v1478, 0
      %v1495 = vsel %vm296, %v1479, 0
      %v1498 = vsel %vm296, %v1480, 0
      %v1501 = vsel %vm296, %v1481, 0
      %v1504 = vsel %vm296, %v1482, 0
      %v1507 = vsel %vm296, %v1483, 0
      %v1510 = vsel %vm296, %v1484, 0
      %v1513 = vsel %vm296, %v1485, 0
      %v1516 = vsel %vm296, %v1486, 0
      %v1519 = vsel %vm296, %v1487, 0
      %v1522 = vsel %vm296, %v1488, 0
      %v1525 = vand.u32 %v1490, %v333
      %1527 = vmatprep.subr.bf16.mxu0 0
      %1528 = vmatpush1.bf16.msra.mxu0 0
      %1529 = vmatprep.subr.bf16.mxu0 0
      %1530 = vmatpush1.bf16.msra.mxu0 0
      %1531 = vmatprep.subr.bf16.mxu0 0
      %1532 = vmatpush1.bf16.msra.mxu0 0
      %1533 = vmatprep.subr.bf16.mxu0 0
      %1534 = vmatpush1.bf16.msra.mxu0 0
      %1535 = vmatprep.subr.bf16.mxu0 0
      %1536 = vmatpush1.bf16.msra.mxu0 0
      %1537 = vmatprep.subr.bf16.mxu0 0
      %1538 = vmatpush1.bf16.msra.mxu0 0
      %1539 = vmatprep.subr.bf16.mxu0 0
      %1540 = vmatpush1.bf16.msra.mxu0 0
      %1541 = vmatprep.subr.bf16.mxu0 0
      %1542 = vmatpush1.bf16.msra.mxu0 %v1525
      %1543 = vmatprep.subr.bf16.mxu0 0
      %1544 = vmatpush2.bf16.msra.mxu0 0
      %1545 = vmatprep.subr.bf16.mxu0 0
      %1546 = vmatpush2.bf16.msra.mxu0 0
      %1547 = vmatprep.subr.bf16.mxu0 0
      %1548 = vmatpush2.bf16.msra.mxu0 0
      %1549 = vmatprep.subr.bf16.mxu0 0
      %1550 = vmatpush2.bf16.msra.mxu0 0
      %1551 = vmatprep.subr.bf16.mxu0 0
      %1552 = vmatpush2.bf16.msra.mxu0 0
      %1553 = vmatprep.subr.bf16.mxu0 0
      %1554 = vmatpush2.bf16.msra.mxu0 0
      %1555 = vmatprep.subr.bf16.mxu0 0
      %1556 = vmatpush2.bf16.msra.mxu0 0
      %1557 = vmatprep.subr.bf16.mxu0 0
      %1558 = vmatpush2.bf16.msra.mxu0 0
      %1559 = vmatprep.mubr.bf16.mxu0 0
      %1560 = vmatmul.mubr.bf16.gmra.mxu0 %v1492
      %v1561 = vpop.f32.mrf.mxu0
      %v1562 = vadd.f32 0.0, %v1561
      %v1563 = vpop.f32.mrf.mxu0
      %v1564 = vpop.f32.mrf.mxu0
      %v1565 = vadd.f32 0.0, %v1564
      %v1566 = vpop.f32.mrf.mxu0
      %1567 = vmatprep.mubr.bf16.mxu0 0
      %1568 = vmatmul.mubr.bf16.gmra.mxu0 %v1495
      %v1569 = vpop.f32.mrf.mxu0
      %v1570 = vadd.f32 0.0, %v1569
      %v1571 = vpop.f32.mrf.mxu0
      %v1572 = vpop.f32.mrf.mxu0
      %v1573 = vadd.f32 0.0, %v1572
      %v1574 = vpop.f32.mrf.mxu0
      %1575 = vmatprep.mubr.bf16.mxu0 0
      %1576 = vmatmul.mubr.bf16.gmra.mxu0 %v1498
      %v1577 = vpop.f32.mrf.mxu0
      %v1578 = vadd.f32 0.0, %v1577
      %v1579 = vpop.f32.mrf.mxu0
      %v1580 = vpop.f32.mrf.mxu0
      %v1581 = vadd.f32 0.0, %v1580
      %v1582 = vpop.f32.mrf.mxu0
      %1583 = vmatprep.mubr.bf16.mxu0 0
      %1584 = vmatmul.mubr.bf16.gmra.mxu0 %v1501
      %v1585 = vpop.f32.mrf.mxu0
      %v1586 = vadd.f32 0.0, %v1585
      %v1587 = vpop.f32.mrf.mxu0
      %v1588 = vpop.f32.mrf.mxu0
      %v1589 = vadd.f32 0.0, %v1588
      %v1590 = vpop.f32.mrf.mxu0
      %1591 = vmatprep.mubr.bf16.mxu0 0
      %1592 = vmatmul.mubr.bf16.gmra.mxu0 %v1504
      %v1593 = vpop.f32.mrf.mxu0
      %v1594 = vadd.f32 0.0, %v1593
      %v1595 = vpop.f32.mrf.mxu0
      %v1596 = vpop.f32.mrf.mxu0
      %v1597 = vadd.f32 0.0, %v1596
      %v1598 = vpop.f32.mrf.mxu0
      %1599 = vmatprep.mubr.bf16.mxu0 0
      %1600 = vmatmul.mubr.bf16.gmra.mxu0 %v1507
      %v1601 = vpop.f32.mrf.mxu0
      %v1602 = vadd.f32 0.0, %v1601
      %v1603 = vpop.f32.mrf.mxu0
      %v1604 = vpop.f32.mrf.mxu0
      %v1605 = vadd.f32 0.0, %v1604
      %v1606 = vpop.f32.mrf.mxu0
      %1607 = vmatprep.mubr.bf16.mxu0 0
      %1608 = vmatmul.mubr.bf16.gmra.mxu0 %v1510
      %v1609 = vpop.f32.mrf.mxu0
      %v1610 = vadd.f32 0.0, %v1609
      %v1611 = vpop.f32.mrf.mxu0
      %v1612 = vpop.f32.mrf.mxu0
      %v1613 = vadd.f32 0.0, %v1612
      %v1614 = vpop.f32.mrf.mxu0
      %1615 = vmatprep.mubr.bf16.mxu0 0
      %1616 = vmatmul.mubr.bf16.gmra.mxu0 %v1513
      %v1617 = vpop.f32.mrf.mxu0
      %v1618 = vadd.f32 0.0, %v1617
      %v1619 = vpop.f32.mrf.mxu0
      %v1620 = vpop.f32.mrf.mxu0
      %v1621 = vadd.f32 0.0, %v1620
      %v1622 = vpop.f32.mrf.mxu0
      %1623 = vmatprep.mubr.bf16.mxu0 0
      %1624 = vmatmul.mubr.bf16.gmra.mxu0 %v1516
      %v1625 = vpop.f32.mrf.mxu0
      %v1626 = vadd.f32 0.0, %v1625
      %v1627 = vpop.f32.mrf.mxu0
      %v1628 = vpop.f32.mrf.mxu0
      %v1629 = vadd.f32 0.0, %v1628
      %v1630 = vpop.f32.mrf.mxu0
      %1631 = vmatprep.mubr.bf16.mxu0 0
      %1632 = vmatmul.mubr.bf16.gmra.mxu0 %v1519
      %v1633 = vpop.f32.mrf.mxu0
      %v1634 = vadd.f32 0.0, %v1633
      %v1635 = vpop.f32.mrf.mxu0
      %v1636 = vpop.f32.mrf.mxu0
      %v1637 = vadd.f32 0.0, %v1636
      %v1638 = vpop.f32.mrf.mxu0
      %1639 = vmatprep.mubr.bf16.mxu0 0
      %1640 = vmatmul.mubr.bf16.gmra.mxu0 %v1522
      %v1641 = vpop.f32.mrf.mxu0
      %v1642 = vadd.f32 0.0, %v1641
      %v1643 = vpop.f32.mrf.mxu0
      %v1644 = vpop.f32.mrf.mxu0
      %v1645 = vpop.f32.mrf.mxu0
      %1646 = vdwg.mxu0
      %v1647 = vadd.f32 %v1436, %v1562
      %v1648 = vadd.f32 %v1437, %v1565
      %v1649 = vadd.f32 %v1438, %v1570
      %v1650 = vadd.f32 %v1439, %v1573
      %v1651 = vadd.f32 %v1440, %v1578
      %v1652 = vadd.f32 %v1441, %v1581
      %v1653 = vadd.f32 %v1442, %v1586
      %v1654 = vadd.f32 %v1443, %v1589
      %v1655 = vadd.f32 %v1444, %v1594
      %v1656 = vadd.f32 %v1445, %v1597
      %v1657 = vadd.f32 %v1446, %v1602
      %v1658 = vadd.f32 %v1447, %v1605
      %v1659 = vadd.f32 %v1448, %v1610
      %v1660 = vadd.f32 %v1449, %v1613
      %v1661 = vadd.f32 %v1450, %v1618
      %v1662 = vadd.f32 %v1451, %v1621
      %v1663 = vadd.f32 %v1452, %v1626
      %v1664 = vadd.f32 %v1453, %v1629
      %v1665 = vadd.f32 %v1454, %v1634
      %v1666 = vadd.f32 %v1455, %v1637
      %v1667 = vadd.f32 %v1456, %v1642
      %v1668 = vld [vmem:[%s220 + $0x1d] sm:$0xff]
      %v1669 = vld [vmem:[%s220 + $0x25] sm:$0xff]
      %v1670 = vld [vmem:[%s220 + $0x2d] sm:$0xff]
      %v1671 = vld [vmem:[%s220 + $0x35] sm:$0xff]
      %v1672 = vld [vmem:[%s220 + $0x3d] sm:$0xff]
      %v1673 = vld [vmem:[%s220 + $0x45] sm:$0xff]
      %v1674 = vld [vmem:[%s220 + $0x4d] sm:$0xff]
      %v1675 = vld [vmem:[%s220 + $0x55] sm:$0xff]
      %v1676 = vld [vmem:[%s220 + $0x5d] sm:$0xff]
      %v1677 = vld [vmem:[%s220 + $0x65] sm:$0xff]
      %v1678 = vld [vmem:[%s220 + $0x6d] sm:$0xff]
      %v1679 = vld [vmem:[%s220 + $0x75] sm:$0xff]
      %v1680 = vld [vmem:[%s220 + $0x7d] sm:$0xff]
      %v1681 = vld [vmem:[%s220 + $0x85] sm:$0xff]
      %v1682 = vld [vmem:[%s220 + $0x8d] sm:$0xff]
      %v1683 = vld [vmem:[%s220 + $0x95] sm:$0xff]
      %v1684 = vld [vmem:[%s220 + $0x9d] sm:$0xff]
      %v1685 = vld [vmem:[%s220 + $0xa5] sm:$0xff]
      %v1686 = vld [vmem:[%s220 + $0xad] sm:$0xff]
      %v1687 = vld [vmem:[%s220 + $0xb5] sm:$0xff]
      %v1688 = vld [vmem:[%s220 + $0xbd] sm:$0xff]
      %v1689 = vpack.c.bf16 %v1669, %v1668
      %v1690 = vpack.c.bf16 %v1671, %v1670
      %v1691 = vpack.c.bf16 %v1673, %v1672
      %v1692 = vpack.c.bf16 %v1675, %v1674
      %v1693 = vpack.c.bf16 %v1677, %v1676
      %v1694 = vpack.c.bf16 %v1679, %v1678
      %v1695 = vpack.c.bf16 %v1681, %v1680
      %v1696 = vpack.c.bf16 %v1683, %v1682
      %v1697 = vpack.c.bf16 %v1685, %v1684
      %v1698 = vpack.c.bf16 %v1687, %v1686
      %v1699 = vpack.c.bf16 %v1688, %v1688
      %s1700 = scalar_lea.vmem %s1, 14
      %v1701 = vld [vmem:[%s1700] sm:$0x3]
      %v1703 = vsel %vm296, %v1689, 0
      %v1706 = vsel %vm296, %v1690, 0
      %v1709 = vsel %vm296, %v1691, 0
      %v1712 = vsel %vm296, %v1692, 0
      %v1715 = vsel %vm296, %v1693, 0
      %v1718 = vsel %vm296, %v1694, 0
      %v1721 = vsel %vm296, %v1695, 0
      %v1724 = vsel %vm296, %v1696, 0
      %v1727 = vsel %vm296, %v1697, 0
      %v1730 = vsel %vm296, %v1698, 0
      %v1733 = vsel %vm296, %v1699, 0
      %v1736 = vand.u32 %v1701, %v333
      %1738 = vmatprep.subr.bf16.mxu0 0
      %1739 = vmatpush1.bf16.msra.mxu0 0
      %1740 = vmatprep.subr.bf16.mxu0 0
      %1741 = vmatpush1.bf16.msra.mxu0 0
      %1742 = vmatprep.subr.bf16.mxu0 0
      %1743 = vmatpush1.bf16.msra.mxu0 0
      %1744 = vmatprep.subr.bf16.mxu0 0
      %1745 = vmatpush1.bf16.msra.mxu0 0
      %1746 = vmatprep.subr.bf16.mxu0 0
      %1747 = vmatpush1.bf16.msra.mxu0 0
      %1748 = vmatprep.subr.bf16.mxu0 0
      %1749 = vmatpush1.bf16.msra.mxu0 0
      %1750 = vmatprep.subr.bf16.mxu0 0
      %1751 = vmatpush1.bf16.msra.mxu0 0
      %1752 = vmatprep.subr.bf16.mxu0 0
      %1753 = vmatpush1.bf16.msra.mxu0 %v1736
      %1754 = vmatprep.subr.bf16.mxu0 0
      %1755 = vmatpush2.bf16.msra.mxu0 0
      %1756 = vmatprep.subr.bf16.mxu0 0
      %1757 = vmatpush2.bf16.msra.mxu0 0
      %1758 = vmatprep.subr.bf16.mxu0 0
      %1759 = vmatpush2.bf16.msra.mxu0 0
      %1760 = vmatprep.subr.bf16.mxu0 0
      %1761 = vmatpush2.bf16.msra.mxu0 0
      %1762 = vmatprep.subr.bf16.mxu0 0
      %1763 = vmatpush2.bf16.msra.mxu0 0
      %1764 = vmatprep.subr.bf16.mxu0 0
      %1765 = vmatpush2.bf16.msra.mxu0 0
      %1766 = vmatprep.subr.bf16.mxu0 0
      %1767 = vmatpush2.bf16.msra.mxu0 0
      %1768 = vmatprep.subr.bf16.mxu0 0
      %1769 = vmatpush2.bf16.msra.mxu0 0
      %1770 = vmatprep.mubr.bf16.mxu0 0
      %1771 = vmatmul.mubr.bf16.gmra.mxu0 %v1703
      %v1772 = vpop.f32.mrf.mxu0
      %v1773 = vadd.f32 0.0, %v1772
      %v1774 = vpop.f32.mrf.mxu0
      %v1775 = vpop.f32.mrf.mxu0
      %v1776 = vadd.f32 0.0, %v1775
      %v1777 = vpop.f32.mrf.mxu0
      %1778 = vmatprep.mubr.bf16.mxu0 0
      %1779 = vmatmul.mubr.bf16.gmra.mxu0 %v1706
      %v1780 = vpop.f32.mrf.mxu0
      %v1781 = vadd.f32 0.0, %v1780
      %v1782 = vpop.f32.mrf.mxu0
      %v1783 = vpop.f32.mrf.mxu0
      %v1784 = vadd.f32 0.0, %v1783
      %v1785 = vpop.f32.mrf.mxu0
      %1786 = vmatprep.mubr.bf16.mxu0 0
      %1787 = vmatmul.mubr.bf16.gmra.mxu0 %v1709
      %v1788 = vpop.f32.mrf.mxu0
      %v1789 = vadd.f32 0.0, %v1788
      %v1790 = vpop.f32.mrf.mxu0
      %v1791 = vpop.f32.mrf.mxu0
      %v1792 = vadd.f32 0.0, %v1791
      %v1793 = vpop.f32.mrf.mxu0
      %1794 = vmatprep.mubr.bf16.mxu0 0
      %1795 = vmatmul.mubr.bf16.gmra.mxu0 %v1712
      %v1796 = vpop.f32.mrf.mxu0
      %v1797 = vadd.f32 0.0, %v1796
      %v1798 = vpop.f32.mrf.mxu0
      %v1799 = vpop.f32.mrf.mxu0
      %v1800 = vadd.f32 0.0, %v1799
      %v1801 = vpop.f32.mrf.mxu0
      %1802 = vmatprep.mubr.bf16.mxu0 0
      %1803 = vmatmul.mubr.bf16.gmra.mxu0 %v1715
      %v1804 = vpop.f32.mrf.mxu0
      %v1805 = vadd.f32 0.0, %v1804
      %v1806 = vpop.f32.mrf.mxu0
      %v1807 = vpop.f32.mrf.mxu0
      %v1808 = vadd.f32 0.0, %v1807
      %v1809 = vpop.f32.mrf.mxu0
      %1810 = vmatprep.mubr.bf16.mxu0 0
      %1811 = vmatmul.mubr.bf16.gmra.mxu0 %v1718
      %v1812 = vpop.f32.mrf.mxu0
      %v1813 = vadd.f32 0.0, %v1812
      %v1814 = vpop.f32.mrf.mxu0
      %v1815 = vpop.f32.mrf.mxu0
      %v1816 = vadd.f32 0.0, %v1815
      %v1817 = vpop.f32.mrf.mxu0
      %1818 = vmatprep.mubr.bf16.mxu0 0
      %1819 = vmatmul.mubr.bf16.gmra.mxu0 %v1721
      %v1820 = vpop.f32.mrf.mxu0
      %v1821 = vadd.f32 0.0, %v1820
      %v1822 = vpop.f32.mrf.mxu0
      %v1823 = vpop.f32.mrf.mxu0
      %v1824 = vadd.f32 0.0, %v1823
      %v1825 = vpop.f32.mrf.mxu0
      %1826 = vmatprep.mubr.bf16.mxu0 0
      %1827 = vmatmul.mubr.bf16.gmra.mxu0 %v1724
      %v1828 = vpop.f32.mrf.mxu0
      %v1829 = vadd.f32 0.0, %v1828
      %v1830 = vpop.f32.mrf.mxu0
      %v1831 = vpop.f32.mrf.mxu0
      %v1832 = vadd.f32 0.0, %v1831
      %v1833 = vpop.f32.mrf.mxu0
      %1834 = vmatprep.mubr.bf16.mxu0 0
      %1835 = vmatmul.mubr.bf16.gmra.mxu0 %v1727
      %v1836 = vpop.f32.mrf.mxu0
      %v1837 = vadd.f32 0.0, %v1836
      %v1838 = vpop.f32.mrf.mxu0
      %v1839 = vpop.f32.mrf.mxu0
      %v1840 = vadd.f32 0.0, %v1839
      %v1841 = vpop.f32.mrf.mxu0
      %1842 = vmatprep.mubr.bf16.mxu0 0
      %1843 = vmatmul.mubr.bf16.gmra.mxu0 %v1730
      %v1844 = vpop.f32.mrf.mxu0
      %v1845 = vadd.f32 0.0, %v1844
      %v1846 = vpop.f32.mrf.mxu0
      %v1847 = vpop.f32.mrf.mxu0
      %v1848 = vadd.f32 0.0, %v1847
      %v1849 = vpop.f32.mrf.mxu0
      %1850 = vmatprep.mubr.bf16.mxu0 0
      %1851 = vmatmul.mubr.bf16.gmra.mxu0 %v1733
      %v1852 = vpop.f32.mrf.mxu0
      %v1853 = vadd.f32 0.0, %v1852
      %v1854 = vpop.f32.mrf.mxu0
      %v1855 = vpop.f32.mrf.mxu0
      %v1856 = vpop.f32.mrf.mxu0
      %1857 = vdwg.mxu0
      %v1858 = vadd.f32 %v1647, %v1773
      %v1859 = vadd.f32 %v1648, %v1776
      %v1860 = vadd.f32 %v1649, %v1781
      %v1861 = vadd.f32 %v1650, %v1784
      %v1862 = vadd.f32 %v1651, %v1789
      %v1863 = vadd.f32 %v1652, %v1792
      %v1864 = vadd.f32 %v1653, %v1797
      %v1865 = vadd.f32 %v1654, %v1800
      %v1866 = vadd.f32 %v1655, %v1805
      %v1867 = vadd.f32 %v1656, %v1808
      %v1868 = vadd.f32 %v1657, %v1813
      %v1869 = vadd.f32 %v1658, %v1816
      %v1870 = vadd.f32 %v1659, %v1821
      %v1871 = vadd.f32 %v1660, %v1824
      %v1872 = vadd.f32 %v1661, %v1829
      %v1873 = vadd.f32 %v1662, %v1832
      %v1874 = vadd.f32 %v1663, %v1837
      %v1875 = vadd.f32 %v1664, %v1840
      %v1876 = vadd.f32 %v1665, %v1845
      %v1877 = vadd.f32 %v1666, %v1848
      %v1878 = vadd.f32 %v1667, %v1853
      %v1879 = vld [vmem:[%s220 + $0x1e] sm:$0xff]
      %v1880 = vld [vmem:[%s220 + $0x26] sm:$0xff]
      %v1881 = vld [vmem:[%s220 + $0x2e] sm:$0xff]
      %v1882 = vld [vmem:[%s220 + $0x36] sm:$0xff]
      %v1883 = vld [vmem:[%s220 + $0x3e] sm:$0xff]
      %v1884 = vld [vmem:[%s220 + $0x46] sm:$0xff]
      %v1885 = vld [vmem:[%s220 + $0x4e] sm:$0xff]
      %v1886 = vld [vmem:[%s220 + $0x56] sm:$0xff]
      %v1887 = vld [vmem:[%s220 + $0x5e] sm:$0xff]
      %v1888 = vld [vmem:[%s220 + $0x66] sm:$0xff]
      %v1889 = vld [vmem:[%s220 + $0x6e] sm:$0xff]
      %v1890 = vld [vmem:[%s220 + $0x76] sm:$0xff]
      %v1891 = vld [vmem:[%s220 + $0x7e] sm:$0xff]
      %v1892 = vld [vmem:[%s220 + $0x86] sm:$0xff]
      %v1893 = vld [vmem:[%s220 + $0x8e] sm:$0xff]
      %v1894 = vld [vmem:[%s220 + $0x96] sm:$0xff]
      %v1895 = vld [vmem:[%s220 + $0x9e] sm:$0xff]
      %v1896 = vld [vmem:[%s220 + $0xa6] sm:$0xff]
      %v1897 = vld [vmem:[%s220 + $0xae] sm:$0xff]
      %v1898 = vld [vmem:[%s220 + $0xb6] sm:$0xff]
      %v1899 = vld [vmem:[%s220 + $0xbe] sm:$0xff]
      %v1900 = vpack.c.bf16 %v1880, %v1879
      %v1901 = vpack.c.bf16 %v1882, %v1881
      %v1902 = vpack.c.bf16 %v1884, %v1883
      %v1903 = vpack.c.bf16 %v1886, %v1885
      %v1904 = vpack.c.bf16 %v1888, %v1887
      %v1905 = vpack.c.bf16 %v1890, %v1889
      %v1906 = vpack.c.bf16 %v1892, %v1891
      %v1907 = vpack.c.bf16 %v1894, %v1893
      %v1908 = vpack.c.bf16 %v1896, %v1895
      %v1909 = vpack.c.bf16 %v1898, %v1897
      %v1910 = vpack.c.bf16 %v1899, %v1899
      %s1911 = scalar_lea.vmem %s1, 16
      %v1912 = vld [vmem:[%s1911] sm:$0x3]
      %v1914 = vsel %vm296, %v1900, 0
      %v1917 = vsel %vm296, %v1901, 0
      %v1920 = vsel %vm296, %v1902, 0
      %v1923 = vsel %vm296, %v1903, 0
      %v1926 = vsel %vm296, %v1904, 0
      %v1929 = vsel %vm296, %v1905, 0
      %v1932 = vsel %vm296, %v1906, 0
      %v1935 = vsel %vm296, %v1907, 0
      %v1938 = vsel %vm296, %v1908, 0
      %v1941 = vsel %vm296, %v1909, 0
      %v1944 = vsel %vm296, %v1910, 0
      %v1947 = vand.u32 %v1912, %v333
      %1949 = vmatprep.subr.bf16.mxu0 0
      %1950 = vmatpush1.bf16.msra.mxu0 0
      %1951 = vmatprep.subr.bf16.mxu0 0
      %1952 = vmatpush1.bf16.msra.mxu0 0
      %1953 = vmatprep.subr.bf16.mxu0 0
      %1954 = vmatpush1.bf16.msra.mxu0 0
      %1955 = vmatprep.subr.bf16.mxu0 0
      %1956 = vmatpush1.bf16.msra.mxu0 0
      %1957 = vmatprep.subr.bf16.mxu0 0
      %1958 = vmatpush1.bf16.msra.mxu0 0
      %1959 = vmatprep.subr.bf16.mxu0 0
      %1960 = vmatpush1.bf16.msra.mxu0 0
      %1961 = vmatprep.subr.bf16.mxu0 0
      %1962 = vmatpush1.bf16.msra.mxu0 0
      %1963 = vmatprep.subr.bf16.mxu0 0
      %1964 = vmatpush1.bf16.msra.mxu0 %v1947
      %1965 = vmatprep.subr.bf16.mxu0 0
      %1966 = vmatpush2.bf16.msra.mxu0 0
      %1967 = vmatprep.subr.bf16.mxu0 0
      %1968 = vmatpush2.bf16.msra.mxu0 0
      %1969 = vmatprep.subr.bf16.mxu0 0
      %1970 = vmatpush2.bf16.msra.mxu0 0
      %1971 = vmatprep.subr.bf16.mxu0 0
      %1972 = vmatpush2.bf16.msra.mxu0 0
      %1973 = vmatprep.subr.bf16.mxu0 0
      %1974 = vmatpush2.bf16.msra.mxu0 0
      %1975 = vmatprep.subr.bf16.mxu0 0
      %1976 = vmatpush2.bf16.msra.mxu0 0
      %1977 = vmatprep.subr.bf16.mxu0 0
      %1978 = vmatpush2.bf16.msra.mxu0 0
      %1979 = vmatprep.subr.bf16.mxu0 0
      %1980 = vmatpush2.bf16.msra.mxu0 0
      %1981 = vmatprep.mubr.bf16.mxu0 0
      %1982 = vmatmul.mubr.bf16.gmra.mxu0 %v1914
      %v1983 = vpop.f32.mrf.mxu0
      %v1984 = vadd.f32 0.0, %v1983
      %v1985 = vpop.f32.mrf.mxu0
      %v1986 = vpop.f32.mrf.mxu0
      %v1987 = vadd.f32 0.0, %v1986
      %v1988 = vpop.f32.mrf.mxu0
      %1989 = vmatprep.mubr.bf16.mxu0 0
      %1990 = vmatmul.mubr.bf16.gmra.mxu0 %v1917
      %v1991 = vpop.f32.mrf.mxu0
      %v1992 = vadd.f32 0.0, %v1991
      %v1993 = vpop.f32.mrf.mxu0
      %v1994 = vpop.f32.mrf.mxu0
      %v1995 = vadd.f32 0.0, %v1994
      %v1996 = vpop.f32.mrf.mxu0
      %1997 = vmatprep.mubr.bf16.mxu0 0
      %1998 = vmatmul.mubr.bf16.gmra.mxu0 %v1920
      %v1999 = vpop.f32.mrf.mxu0
      %v2000 = vadd.f32 0.0, %v1999
      %v2001 = vpop.f32.mrf.mxu0
      %v2002 = vpop.f32.mrf.mxu0
      %v2003 = vadd.f32 0.0, %v2002
      %v2004 = vpop.f32.mrf.mxu0
      %2005 = vmatprep.mubr.bf16.mxu0 0
      %2006 = vmatmul.mubr.bf16.gmra.mxu0 %v1923
      %v2007 = vpop.f32.mrf.mxu0
      %v2008 = vadd.f32 0.0, %v2007
      %v2009 = vpop.f32.mrf.mxu0
      %v2010 = vpop.f32.mrf.mxu0
      %v2011 = vadd.f32 0.0, %v2010
      %v2012 = vpop.f32.mrf.mxu0
      %2013 = vmatprep.mubr.bf16.mxu0 0
      %2014 = vmatmul.mubr.bf16.gmra.mxu0 %v1926
      %v2015 = vpop.f32.mrf.mxu0
      %v2016 = vadd.f32 0.0, %v2015
      %v2017 = vpop.f32.mrf.mxu0
      %v2018 = vpop.f32.mrf.mxu0
      %v2019 = vadd.f32 0.0, %v2018
      %v2020 = vpop.f32.mrf.mxu0
      %2021 = vmatprep.mubr.bf16.mxu0 0
      %2022 = vmatmul.mubr.bf16.gmra.mxu0 %v1929
      %v2023 = vpop.f32.mrf.mxu0
      %v2024 = vadd.f32 0.0, %v2023
      %v2025 = vpop.f32.mrf.mxu0
      %v2026 = vpop.f32.mrf.mxu0
      %v2027 = vadd.f32 0.0, %v2026
      %v2028 = vpop.f32.mrf.mxu0
      %2029 = vmatprep.mubr.bf16.mxu0 0
      %2030 = vmatmul.mubr.bf16.gmra.mxu0 %v1932
      %v2031 = vpop.f32.mrf.mxu0
      %v2032 = vadd.f32 0.0, %v2031
      %v2033 = vpop.f32.mrf.mxu0
      %v2034 = vpop.f32.mrf.mxu0
      %v2035 = vadd.f32 0.0, %v2034
      %v2036 = vpop.f32.mrf.mxu0
      %2037 = vmatprep.mubr.bf16.mxu0 0
      %2038 = vmatmul.mubr.bf16.gmra.mxu0 %v1935
      %v2039 = vpop.f32.mrf.mxu0
      %v2040 = vadd.f32 0.0, %v2039
      %v2041 = vpop.f32.mrf.mxu0
      %v2042 = vpop.f32.mrf.mxu0
      %v2043 = vadd.f32 0.0, %v2042
      %v2044 = vpop.f32.mrf.mxu0
      %2045 = vmatprep.mubr.bf16.mxu0 0
      %2046 = vmatmul.mubr.bf16.gmra.mxu0 %v1938
      %v2047 = vpop.f32.mrf.mxu0
      %v2048 = vadd.f32 0.0, %v2047
      %v2049 = vpop.f32.mrf.mxu0
      %v2050 = vpop.f32.mrf.mxu0
      %v2051 = vadd.f32 0.0, %v2050
      %v2052 = vpop.f32.mrf.mxu0
      %2053 = vmatprep.mubr.bf16.mxu0 0
      %2054 = vmatmul.mubr.bf16.gmra.mxu0 %v1941
      %v2055 = vpop.f32.mrf.mxu0
      %v2056 = vadd.f32 0.0, %v2055
      %v2057 = vpop.f32.mrf.mxu0
      %v2058 = vpop.f32.mrf.mxu0
      %v2059 = vadd.f32 0.0, %v2058
      %v2060 = vpop.f32.mrf.mxu0
      %2061 = vmatprep.mubr.bf16.mxu0 0
      %2062 = vmatmul.mubr.bf16.gmra.mxu0 %v1944
      %v2063 = vpop.f32.mrf.mxu0
      %v2064 = vadd.f32 0.0, %v2063
      %v2065 = vpop.f32.mrf.mxu0
      %v2066 = vpop.f32.mrf.mxu0
      %v2067 = vpop.f32.mrf.mxu0
      %2068 = vdwg.mxu0
      %v2069 = vadd.f32 %v1858, %v1984
      %v2070 = vadd.f32 %v1859, %v1987
      %v2071 = vadd.f32 %v1860, %v1992
      %v2072 = vadd.f32 %v1861, %v1995
      %v2073 = vadd.f32 %v1862, %v2000
      %v2074 = vadd.f32 %v1863, %v2003
      %v2075 = vadd.f32 %v1864, %v2008
      %v2076 = vadd.f32 %v1865, %v2011
      %v2077 = vadd.f32 %v1866, %v2016
      %v2078 = vadd.f32 %v1867, %v2019
      %v2079 = vadd.f32 %v1868, %v2024
      %v2080 = vadd.f32 %v1869, %v2027
      %v2081 = vadd.f32 %v1870, %v2032
      %v2082 = vadd.f32 %v1871, %v2035
      %v2083 = vadd.f32 %v1872, %v2040
      %v2084 = vadd.f32 %v1873, %v2043
      %v2085 = vadd.f32 %v1874, %v2048
      %v2086 = vadd.f32 %v1875, %v2051
      %v2087 = vadd.f32 %v1876, %v2056
      %v2088 = vadd.f32 %v1877, %v2059
      %v2089 = vadd.f32 %v1878, %v2064
      %v2090 = vld [vmem:[%s2] sm:$0x1]
      %v2092 = vlaneseq
      %v2093 = vshrl.u32 %v2092, 7
      %v2094 = vsub.s32 0, %v2093
      %v2095 = vrot.slane %v2090, %v2094
      %v2097 = vadd.f32 %v2069, %v2095
      %v2098 = vadd.f32 %v2070, %v2095
      %v2099 = vadd.f32 %v2071, %v2095
      %v2100 = vadd.f32 %v2072, %v2095
      %v2101 = vadd.f32 %v2073, %v2095
      %v2102 = vadd.f32 %v2074, %v2095
      %v2103 = vadd.f32 %v2075, %v2095
      %v2104 = vadd.f32 %v2076, %v2095
      %v2105 = vadd.f32 %v2077, %v2095
      %v2106 = vadd.f32 %v2078, %v2095
      %v2107 = vadd.f32 %v2079, %v2095
      %v2108 = vadd.f32 %v2080, %v2095
      %v2109 = vadd.f32 %v2081, %v2095
      %v2110 = vadd.f32 %v2082, %v2095
      %v2111 = vadd.f32 %v2083, %v2095
      %v2112 = vadd.f32 %v2084, %v2095
      %v2113 = vadd.f32 %v2085, %v2095
      %v2114 = vadd.f32 %v2086, %v2095
      %v2115 = vadd.f32 %v2087, %v2095
      %v2116 = vadd.f32 %v2088, %v2095
      %v2117 = vadd.f32 %v2089, %v2095
      %vm2118 = vcmp.gt.f32.partialorder %v2097, 0.0
      %vm2119 = vcmp.gt.f32.partialorder %v2098, 0.0
      %vm2120 = vcmp.gt.f32.partialorder %v2099, 0.0
      %vm2121 = vcmp.gt.f32.partialorder %v2100, 0.0
      %vm2122 = vcmp.gt.f32.partialorder %v2101, 0.0
      %vm2123 = vcmp.gt.f32.partialorder %v2102, 0.0
      %vm2124 = vcmp.gt.f32.partialorder %v2103, 0.0
      %vm2125 = vcmp.gt.f32.partialorder %v2104, 0.0
      %vm2126 = vcmp.gt.f32.partialorder %v2105, 0.0
      %vm2127 = vcmp.gt.f32.partialorder %v2106, 0.0
      %vm2128 = vcmp.gt.f32.partialorder %v2107, 0.0
      %vm2129 = vcmp.gt.f32.partialorder %v2108, 0.0
      %vm2130 = vcmp.gt.f32.partialorder %v2109, 0.0
      %vm2131 = vcmp.gt.f32.partialorder %v2110, 0.0
      %vm2132 = vcmp.gt.f32.partialorder %v2111, 0.0
      %vm2133 = vcmp.gt.f32.partialorder %v2112, 0.0
      %vm2134 = vcmp.gt.f32.partialorder %v2113, 0.0
      %vm2135 = vcmp.gt.f32.partialorder %v2114, 0.0
      %vm2136 = vcmp.gt.f32.partialorder %v2115, 0.0
      %vm2137 = vcmp.gt.f32.partialorder %v2116, 0.0
      %vm2138 = vcmp.gt.f32.partialorder %v2117, 0.0
      %v2139 = vmul.f32 %v2097, 0.01
      %v2140 = vmul.f32 %v2098, 0.01
      %v2141 = vmul.f32 %v2099, 0.01
      %v2142 = vmul.f32 %v2100, 0.01
      %v2143 = vmul.f32 %v2101, 0.01
      %v2144 = vmul.f32 %v2102, 0.01
      %v2145 = vmul.f32 %v2103, 0.01
      %v2146 = vmul.f32 %v2104, 0.01
      %v2147 = vmul.f32 %v2105, 0.01
      %v2148 = vmul.f32 %v2106, 0.01
      %v2149 = vmul.f32 %v2107, 0.01
      %v2150 = vmul.f32 %v2108, 0.01
      %v2151 = vmul.f32 %v2109, 0.01
      %v2152 = vmul.f32 %v2110, 0.01
      %v2153 = vmul.f32 %v2111, 0.01
      %v2154 = vmul.f32 %v2112, 0.01
      %v2155 = vmul.f32 %v2113, 0.01
      %v2156 = vmul.f32 %v2114, 0.01
      %v2157 = vmul.f32 %v2115, 0.01
      %v2158 = vmul.f32 %v2116, 0.01
      %v2159 = vmul.f32 %v2117, 0.01
      %v2160 = vsel %vm2118, %v2097, %v2139
      %v2161 = vsel %vm2119, %v2098, %v2140
      %v2162 = vsel %vm2120, %v2099, %v2141
      %v2163 = vsel %vm2121, %v2100, %v2142
      %v2164 = vsel %vm2122, %v2101, %v2143
      %v2165 = vsel %vm2123, %v2102, %v2144
      %v2166 = vsel %vm2124, %v2103, %v2145
      %v2167 = vsel %vm2125, %v2104, %v2146
      %v2168 = vsel %vm2126, %v2105, %v2147
      %v2169 = vsel %vm2127, %v2106, %v2148
      %v2170 = vsel %vm2128, %v2107, %v2149
      %v2171 = vsel %vm2129, %v2108, %v2150
      %v2172 = vsel %vm2130, %v2109, %v2151
      %v2173 = vsel %vm2131, %v2110, %v2152
      %v2174 = vsel %vm2132, %v2111, %v2153
      %v2175 = vsel %vm2133, %v2112, %v2154
      %v2176 = vsel %vm2134, %v2113, %v2155
      %v2177 = vsel %vm2135, %v2114, %v2156
      %v2178 = vsel %vm2136, %v2115, %v2157
      %v2179 = vsel %vm2137, %v2116, %v2158
      %v2180 = vsel %vm2138, %v2117, %v2159
      %vm2181 = vcmask 261120
      %2182 = vst.msk [vmem:[#allocation2] sm:$0xff] %vm2181, %v2160
      %2183 = vst.msk [vmem:[#allocation2 + $0x8] sm:$0xff] %vm2181, %v2161
      %2184 = vst.msk [vmem:[#allocation2 + $0x10] sm:$0xff] %vm2181, %v2162
      %2185 = vst.msk [vmem:[#allocation2 + $0x18] sm:$0xff] %vm2181, %v2163
      %2186 = vst.msk [vmem:[#allocation2 + $0x20] sm:$0xff] %vm2181, %v2164
      %2187 = vst.msk [vmem:[#allocation2 + $0x28] sm:$0xff] %vm2181, %v2165
      %2188 = vst.msk [vmem:[#allocation2 + $0x30] sm:$0xff] %vm2181, %v2166
      %2189 = vst.msk [vmem:[#allocation2 + $0x38] sm:$0xff] %vm2181, %v2167
      %2190 = vst.msk [vmem:[#allocation2 + $0x40] sm:$0xff] %vm2181, %v2168
      %2191 = vst.msk [vmem:[#allocation2 + $0x48] sm:$0xff] %vm2181, %v2169
      %2192 = vst.msk [vmem:[#allocation2 + $0x50] sm:$0xff] %vm2181, %v2170
      %2193 = vst.msk [vmem:[#allocation2 + $0x58] sm:$0xff] %vm2181, %v2171
      %2194 = vst.msk [vmem:[#allocation2 + $0x60] sm:$0xff] %vm2181, %v2172
      %2195 = vst.msk [vmem:[#allocation2 + $0x68] sm:$0xff] %vm2181, %v2173
      %2196 = vst.msk [vmem:[#allocation2 + $0x70] sm:$0xff] %vm2181, %v2174
      %2197 = vst.msk [vmem:[#allocation2 + $0x78] sm:$0xff] %vm2181, %v2175
      %2198 = vst.msk [vmem:[#allocation2 + $0x80] sm:$0xff] %vm2181, %v2176
      %2199 = vst.msk [vmem:[#allocation2 + $0x88] sm:$0xff] %vm2181, %v2177
      %2200 = vst.msk [vmem:[#allocation2 + $0x90] sm:$0xff] %vm2181, %v2178
      %2201 = vst.msk [vmem:[#allocation2 + $0x98] sm:$0xff] %vm2181, %v2179
      %2202 = vst.msk [vmem:[#allocation2 + $0xa0] sm:$0xff] %vm2181, %v2180
      %2203 = vst.msk [vmem:[#allocation3] sm:$0xff] %vm2181, 0.0
      %2204 = vst.msk [vmem:[#allocation3 + $0x8] sm:$0xff] %vm2181, 0.0
      %2205 = vst.msk [vmem:[#allocation3 + $0x10] sm:$0xff] %vm2181, 0.0
      %2206 = vst.msk [vmem:[#allocation3 + $0x18] sm:$0xff] %vm2181, 0.0
      %2207 = vst.msk [vmem:[#allocation3 + $0x20] sm:$0xff] %vm2181, 0.0
      %2208 = vst.msk [vmem:[#allocation3 + $0x28] sm:$0xff] %vm2181, 0.0
      %2209 = vst.msk [vmem:[#allocation3 + $0x30] sm:$0xff] %vm2181, 0.0
      %2210 = vst.msk [vmem:[#allocation3 + $0x38] sm:$0xff] %vm2181, 0.0
      %2211 = vst.msk [vmem:[#allocation3 + $0x40] sm:$0xff] %vm2181, 0.0
      %2212 = vst.msk [vmem:[#allocation3 + $0x48] sm:$0xff] %vm2181, 0.0
      %2213 = vst.msk [vmem:[#allocation3 + $0x50] sm:$0xff] %vm2181, 0.0
      %2214 = vst.msk [vmem:[#allocation3 + $0x58] sm:$0xff] %vm2181, 0.0
      %2215 = vst.msk [vmem:[#allocation3 + $0x60] sm:$0xff] %vm2181, 0.0
      %2216 = vst.msk [vmem:[#allocation3 + $0x68] sm:$0xff] %vm2181, 0.0
      %2217 = vst.msk [vmem:[#allocation3 + $0x70] sm:$0xff] %vm2181, 0.0
      %2218 = vst.msk [vmem:[#allocation3 + $0x78] sm:$0xff] %vm2181, 0.0
      %v2219 = vld [vmem:[#allocation2] ss:$2 sm:$0x3f]
      %s2220 = scalar_lea.vmem [#allocation2], 1
      %v2221 = vld [vmem:[%s2220] ss:$2 sm:$0x3f]
      %s2222 = scalar_lea.vmem [#allocation2], 14
      %v2223 = vld [vmem:[%s2222] ss:$2 sm:$0x3f]
      %s2224 = scalar_lea.vmem [#allocation2], 15
      %v2225 = vld [vmem:[%s2224] ss:$2 sm:$0x3f]
      %v2226 = vmax.f32 %v2219, %v2221
      %v2227 = vmax.f32 %v2223, %v2225
      %v2228 = vmax.f32 %v2226, %v2227
      %vm2229 = vcmask 259072
      %2230 = vst.msk [vmem:[#allocation3 + $0x16] sm:$0x3f] %vm2229, %v2228
      %s2231 = scalar_lea.vmem [#allocation2], 28
      %v2232 = vld [vmem:[%s2231] ss:$2 sm:$0x3f]
      %s2233 = scalar_lea.vmem [#allocation2], 29
      %v2234 = vld [vmem:[%s2233] ss:$2 sm:$0x3f]
      %s2235 = scalar_lea.vmem [#allocation2], 42
      %v2236 = vld [vmem:[%s2235] ss:$2 sm:$0x3f]
      %s2237 = scalar_lea.vmem [#allocation2], 43
      %v2238 = vld [vmem:[%s2237] ss:$2 sm:$0x3f]
      %v2239 = vmax.f32 %v2232, %v2234
      %v2240 = vmax.f32 %v2236, %v2238
      %v2241 = vmax.f32 %v2239, %v2240
      %2242 = vst.msk [vmem:[#allocation3 + $0x20] sm:$0x3f] %vm2229, %v2241
      %s2243 = scalar_lea.vmem [#allocation2], 56
      %v2244 = vld [vmem:[%s2243] ss:$2 sm:$0x3f]
      %s2245 = scalar_lea.vmem [#allocation2], 57
      %v2246 = vld [vmem:[%s2245] ss:$2 sm:$0x3f]
      %s2247 = scalar_lea.vmem [#allocation2], 70
      %v2248 = vld [vmem:[%s2247] ss:$2 sm:$0x3f]
      %s2249 = scalar_lea.vmem [#allocation2], 71
      %v2250 = vld [vmem:[%s2249] ss:$2 sm:$0x3f]
      %v2251 = vmax.f32 %v2244, %v2246
      %v2252 = vmax.f32 %v2248, %v2250
      %v2253 = vmax.f32 %v2251, %v2252
      %2254 = vst.msk [vmem:[#allocation3 + $0x2a] sm:$0x3f] %vm2229, %v2253
      %s2255 = scalar_lea.vmem [#allocation2], 84
      %v2256 = vld [vmem:[%s2255] ss:$2 sm:$0x3f]
      %s2257 = scalar_lea.vmem [#allocation2], 85
      %v2258 = vld [vmem:[%s2257] ss:$2 sm:$0x3f]
      %s2259 = scalar_lea.vmem [#allocation2], 98
      %v2260 = vld [vmem:[%s2259] ss:$2 sm:$0x3f]
      %s2261 = scalar_lea.vmem [#allocation2], 99
      %v2262 = vld [vmem:[%s2261] ss:$2 sm:$0x3f]
      %v2263 = vmax.f32 %v2256, %v2258
      %v2264 = vmax.f32 %v2260, %v2262
      %v2265 = vmax.f32 %v2263, %v2264
      %2266 = vst.msk [vmem:[#allocation3 + $0x34] sm:$0x3f] %vm2229, %v2265
      %s2267 = scalar_lea.vmem [#allocation2], 112
      %v2268 = vld [vmem:[%s2267] ss:$2 sm:$0x3f]
      %s2269 = scalar_lea.vmem [#allocation2], 113
      %v2270 = vld [vmem:[%s2269] ss:$2 sm:$0x3f]
      %s2271 = scalar_lea.vmem [#allocation2], 126
      %v2272 = vld [vmem:[%s2271] ss:$2 sm:$0x3f]
      %s2273 = scalar_lea.vmem [#allocation2], 127
      %v2274 = vld [vmem:[%s2273] ss:$2 sm:$0x3f]
      %v2275 = vmax.f32 %v2268, %v2270
      %v2276 = vmax.f32 %v2272, %v2274
      %v2277 = vmax.f32 %v2275, %v2276
      %2278 = vst.msk [vmem:[#allocation3 + $0x3e] sm:$0x3f] %vm2229, %v2277
      %s2279 = scalar_lea.vmem [#allocation2], 140
      %v2280 = vld [vmem:[%s2279] ss:$2 sm:$0x3f]
      %s2281 = scalar_lea.vmem [#allocation2], 141
      %v2282 = vld [vmem:[%s2281] ss:$2 sm:$0x3f]
      %s2283 = scalar_lea.vmem [#allocation2], 154
      %v2284 = vld [vmem:[%s2283] ss:$2 sm:$0x3f]
      %s2285 = scalar_lea.vmem [#allocation2], 155
      %v2286 = vld [vmem:[%s2285] ss:$2 sm:$0x3f]
      %v2287 = vmax.f32 %v2280, %v2282
      %v2288 = vmax.f32 %v2284, %v2286
      %v2289 = vmax.f32 %v2287, %v2288
      %2290 = vst.msk [vmem:[#allocation3 + $0x48] sm:$0x3f] %vm2229, %v2289
      %v2291 = vld [vmem:[#allocation3] sm:$0xff]
      %v2292 = vld [vmem:[#allocation3 + $0x8] sm:$0xff]
      %v2293 = vld [vmem:[#allocation3 + $0x10] sm:$0xff]
      %v2294 = vld [vmem:[#allocation3 + $0x18] sm:$0xff]
      %v2295 = vld [vmem:[#allocation3 + $0x20] sm:$0xff]
      %v2296 = vld [vmem:[#allocation3 + $0x28] sm:$0xff]
      %v2297 = vld [vmem:[#allocation3 + $0x30] sm:$0xff]
      %v2298 = vld [vmem:[#allocation3 + $0x38] sm:$0xff]
      %v2299 = vld [vmem:[#allocation3 + $0x40] sm:$0xff]
      %v2300 = vld [vmem:[#allocation3 + $0x48] sm:$0xff]
      %v2301 = vld [vmem:[#allocation3 + $0x50] sm:$0xff]
      %v2302 = vld [vmem:[#allocation3 + $0x58] sm:$0xff]
      %v2303 = vld [vmem:[#allocation3 + $0x60] sm:$0xff]
      %v2304 = vpack.c.bf16 %v2292, %v2291
      %v2305 = vpack.c.bf16 %v2294, %v2293
      %v2306 = vpack.c.bf16 %v2296, %v2295
      %v2307 = vpack.c.bf16 %v2298, %v2297
      %v2308 = vpack.c.bf16 %v2300, %v2299
      %v2309 = vpack.c.bf16 %v2302, %v2301
      %v2310 = vpack.c.bf16 %v2303, %v2303
      %v2311 = vld [vmem:[%s3] sm:$0xf]
      %v2312 = vld [vmem:[%s3 + $0x4] sm:$0xf]
      %v2313 = vld [vmem:[%s3 + $0x8] sm:$0xf]
      %v2314 = vld [vmem:[%s3 + $0xc] sm:$0xf]
      %v2315 = vld [vmem:[#allocation3 + $0x1] sm:$0xff]
      %v2316 = vld [vmem:[#allocation3 + $0x9] sm:$0xff]
      %v2317 = vld [vmem:[#allocation3 + $0x11] sm:$0xff]
      %v2318 = vld [vmem:[#allocation3 + $0x19] sm:$0xff]
      %v2319 = vld [vmem:[#allocation3 + $0x21] sm:$0xff]
      %v2320 = vld [vmem:[#allocation3 + $0x29] sm:$0xff]
      %v2321 = vld [vmem:[#allocation3 + $0x31] sm:$0xff]
      %v2322 = vld [vmem:[#allocation3 + $0x39] sm:$0xff]
      %v2323 = vld [vmem:[#allocation3 + $0x41] sm:$0xff]
      %v2324 = vld [vmem:[#allocation3 + $0x49] sm:$0xff]
      %v2325 = vld [vmem:[#allocation3 + $0x51] sm:$0xff]
      %v2326 = vld [vmem:[#allocation3 + $0x59] sm:$0xff]
      %v2327 = vld [vmem:[#allocation3 + $0x61] sm:$0xff]
      %v2328 = vpack.c.bf16 %v2316, %v2315
      %v2329 = vpack.c.bf16 %v2318, %v2317
      %v2330 = vpack.c.bf16 %v2320, %v2319
      %v2331 = vpack.c.bf16 %v2322, %v2321
      %v2332 = vpack.c.bf16 %v2324, %v2323
      %v2333 = vpack.c.bf16 %v2326, %v2325
      %v2334 = vpack.c.bf16 %v2327, %v2327
      %s2335 = scalar_lea.vmem %s3, 16
      %v2336 = vld [vmem:[%s2335] sm:$0xf]
      %v2337 = vld [vmem:[%s2335 + $0x4] sm:$0xf]
      %v2338 = vld [vmem:[%s2335 + $0x8] sm:$0xf]
      %v2339 = vld [vmem:[%s2335 + $0xc] sm:$0xf]
      %v2344 = vunpack.c.l.b16 %v2336
      %v2345 = vunpack.c.l.b16 %v2337
      %v2346 = vunpack.c.l.b16 %v2338
      %v2347 = vunpack.c.l.b16 %v2339
      %v2348 = vpack.c.b16 %v2345, %v2344
      %v2349 = vpack.c.b16 %v2347, %v2346
      %v2353 = vsel %vm2181, %v2328, 0
      %v2356 = vsel %vm2181, %v2329, 0
      %v2359 = vsel %vm2181, %v2330, 0
      %v2362 = vsel %vm2181, %v2331, 0
      %v2365 = vsel %vm2181, %v2332, 0
      %v2368 = vsel %vm2181, %v2333, 0
      %v2371 = vsel %vm2181, %v2334, 0
      %2373 = vmatprep.subr.bf16.mxu0 0
      %2374 = vmatpush1.bf16.msra.mxu0 0
      %2375 = vmatprep.subr.bf16.mxu0 0
      %2376 = vmatpush1.bf16.msra.mxu0 0
      %2377 = vmatprep.subr.bf16.mxu0 0
      %2378 = vmatpush1.bf16.msra.mxu0 0
      %2379 = vmatprep.subr.bf16.mxu0 0
      %2380 = vmatpush1.bf16.msra.mxu0 0
      %2381 = vmatprep.subr.bf16.mxu0 0
      %2382 = vmatpush1.bf16.msra.mxu0 0
      %2383 = vmatprep.subr.bf16.mxu0 0
      %2384 = vmatpush1.bf16.msra.mxu0 0
      %2385 = vmatprep.subr.bf16.mxu0 0
      %2386 = vmatpush1.bf16.msra.mxu0 %v2349
      %2387 = vmatprep.subr.bf16.mxu0 0
      %2388 = vmatpush1.bf16.msra.mxu0 %v2348
      %2389 = vmatprep.subr.bf16.mxu0 0
      %2390 = vmatpush2.bf16.msra.mxu0 0
      %2391 = vmatprep.subr.bf16.mxu0 0
      %2392 = vmatpush2.bf16.msra.mxu0 0
      %2393 = vmatprep.subr.bf16.mxu0 0
      %2394 = vmatpush2.bf16.msra.mxu0 0
      %2395 = vmatprep.subr.bf16.mxu0 0
      %2396 = vmatpush2.bf16.msra.mxu0 0
      %2397 = vmatprep.subr.bf16.mxu0 0
      %2398 = vmatpush2.bf16.msra.mxu0 0
      %2399 = vmatprep.subr.bf16.mxu0 0
      %2400 = vmatpush2.bf16.msra.mxu0 0
      %2401 = vmatprep.subr.bf16.mxu0 0
      %2402 = vmatpush2.bf16.msra.mxu0 0
      %2403 = vmatprep.subr.bf16.mxu0 0
      %2404 = vmatpush2.bf16.msra.mxu0 0
      %2405 = vmatprep.mubr.bf16.mxu0 0
      %2406 = vmatmul.mubr.bf16.gmra.mxu0 %v2353
      %v2407 = vpop.f32.mrf.mxu0
      %v2408 = vadd.f32 0.0, %v2407
      %v2409 = vpop.f32.mrf.mxu0
      %v2410 = vpop.f32.mrf.mxu0
      %v2411 = vadd.f32 0.0, %v2410
      %v2412 = vpop.f32.mrf.mxu0
      %2413 = vmatprep.mubr.bf16.mxu0 0
      %2414 = vmatmul.mubr.bf16.gmra.mxu0 %v2356
      %v2415 = vpop.f32.mrf.mxu0
      %v2416 = vadd.f32 0.0, %v2415
      %v2417 = vpop.f32.mrf.mxu0
      %v2418 = vpop.f32.mrf.mxu0
      %v2419 = vadd.f32 0.0, %v2418
      %v2420 = vpop.f32.mrf.mxu0
      %2421 = vmatprep.mubr.bf16.mxu0 0
      %2422 = vmatmul.mubr.bf16.gmra.mxu0 %v2359
      %v2423 = vpop.f32.mrf.mxu0
      %v2424 = vadd.f32 0.0, %v2423
      %v2425 = vpop.f32.mrf.mxu0
      %v2426 = vpop.f32.mrf.mxu0
      %v2427 = vadd.f32 0.0, %v2426
      %v2428 = vpop.f32.mrf.mxu0
      %2429 = vmatprep.mubr.bf16.mxu0 0
      %2430 = vmatmul.mubr.bf16.gmra.mxu0 %v2362
      %v2431 = vpop.f32.mrf.mxu0
      %v2432 = vadd.f32 0.0, %v2431
      %v2433 = vpop.f32.mrf.mxu0
      %v2434 = vpop.f32.mrf.mxu0
      %v2435 = vadd.f32 0.0, %v2434
      %v2436 = vpop.f32.mrf.mxu0
      %2437 = vmatprep.mubr.bf16.mxu0 0
      %2438 = vmatmul.mubr.bf16.gmra.mxu0 %v2365
      %v2439 = vpop.f32.mrf.mxu0
      %v2440 = vadd.f32 0.0, %v2439
      %v2441 = vpop.f32.mrf.mxu0
      %v2442 = vpop.f32.mrf.mxu0
      %v2443 = vadd.f32 0.0, %v2442
      %v2444 = vpop.f32.mrf.mxu0
      %2445 = vmatprep.mubr.bf16.mxu0 0
      %2446 = vmatmul.mubr.bf16.gmra.mxu0 %v2368
      %v2447 = vpop.f32.mrf.mxu0
      %v2448 = vadd.f32 0.0, %v2447
      %v2449 = vpop.f32.mrf.mxu0
      %v2450 = vpop.f32.mrf.mxu0
      %v2451 = vadd.f32 0.0, %v2450
      %v2452 = vpop.f32.mrf.mxu0
      %2453 = vmatprep.mubr.bf16.mxu0 0
      %2454 = vmatmul.mubr.bf16.gmra.mxu0 %v2371
      %v2455 = vpop.f32.mrf.mxu0
      %v2456 = vadd.f32 0.0, %v2455
      %v2457 = vpop.f32.mrf.mxu0
      %v2458 = vpop.f32.mrf.mxu0
      %v2459 = vpop.f32.mrf.mxu0
      %2460 = vdwg.mxu0
      %v2465 = vunpack.c.l.b16 %v2311
      %v2466 = vunpack.c.l.b16 %v2312
      %v2467 = vunpack.c.l.b16 %v2313
      %v2468 = vunpack.c.l.b16 %v2314
      %v2469 = vpack.c.b16 %v2466, %v2465
      %v2470 = vpack.c.b16 %v2468, %v2467
      %v2474 = vsel %vm2181, %v2304, 0
      %v2477 = vsel %vm2181, %v2305, 0
      %v2480 = vsel %vm2181, %v2306, 0
      %v2483 = vsel %vm2181, %v2307, 0
      %v2486 = vsel %vm2181, %v2308, 0
      %v2489 = vsel %vm2181, %v2309, 0
      %v2492 = vsel %vm2181, %v2310, 0
      %2494 = vmatprep.subr.bf16.mxu0 0
      %2495 = vmatpush1.bf16.msra.mxu0 0
      %2496 = vmatprep.subr.bf16.mxu0 0
      %2497 = vmatpush1.bf16.msra.mxu0 0
      %2498 = vmatprep.subr.bf16.mxu0 0
      %2499 = vmatpush1.bf16.msra.mxu0 0
      %2500 = vmatprep.subr.bf16.mxu0 0
      %2501 = vmatpush1.bf16.msra.mxu0 0
      %2502 = vmatprep.subr.bf16.mxu0 0
      %2503 = vmatpush1.bf16.msra.mxu0 0
      %2504 = vmatprep.subr.bf16.mxu0 0
      %2505 = vmatpush1.bf16.msra.mxu0 0
      %2506 = vmatprep.subr.bf16.mxu0 0
      %2507 = vmatpush1.bf16.msra.mxu0 %v2470
      %2508 = vmatprep.subr.bf16.mxu0 0
      %2509 = vmatpush1.bf16.msra.mxu0 %v2469
      %2510 = vmatprep.subr.bf16.mxu0 0
      %2511 = vmatpush2.bf16.msra.mxu0 0
      %2512 = vmatprep.subr.bf16.mxu0 0
      %2513 = vmatpush2.bf16.msra.mxu0 0
      %2514 = vmatprep.subr.bf16.mxu0 0
      %2515 = vmatpush2.bf16.msra.mxu0 0
      %2516 = vmatprep.subr.bf16.mxu0 0
      %2517 = vmatpush2.bf16.msra.mxu0 0
      %2518 = vmatprep.subr.bf16.mxu0 0
      %2519 = vmatpush2.bf16.msra.mxu0 0
      %2520 = vmatprep.subr.bf16.mxu0 0
      %2521 = vmatpush2.bf16.msra.mxu0 0
      %2522 = vmatprep.subr.bf16.mxu0 0
      %2523 = vmatpush2.bf16.msra.mxu0 0
      %2524 = vmatprep.subr.bf16.mxu0 0
      %2525 = vmatpush2.bf16.msra.mxu0 0
      %2526 = vmatprep.mubr.bf16.mxu0 0
      %2527 = vmatmul.mubr.bf16.gmra.mxu0 %v2474
      %v2528 = vpop.f32.mrf.mxu0
      %v2529 = vadd.f32 %v2408, %v2528
      %v2530 = vpop.f32.mrf.mxu0
      %v2531 = vpop.f32.mrf.mxu0
      %v2532 = vadd.f32 %v2411, %v2531
      %v2533 = vpop.f32.mrf.mxu0
      %2534 = vmatprep.mubr.bf16.mxu0 0
      %2535 = vmatmul.mubr.bf16.gmra.mxu0 %v2477
      %v2536 = vpop.f32.mrf.mxu0
      %v2537 = vadd.f32 %v2416, %v2536
      %v2538 = vpop.f32.mrf.mxu0
      %v2539 = vpop.f32.mrf.mxu0
      %v2540 = vadd.f32 %v2419, %v2539
      %v2541 = vpop.f32.mrf.mxu0
      %2542 = vmatprep.mubr.bf16.mxu0 0
      %2543 = vmatmul.mubr.bf16.gmra.mxu0 %v2480
      %v2544 = vpop.f32.mrf.mxu0
      %v2545 = vadd.f32 %v2424, %v2544
      %v2546 = vpop.f32.mrf.mxu0
      %v2547 = vpop.f32.mrf.mxu0
      %v2548 = vadd.f32 %v2427, %v2547
      %v2549 = vpop.f32.mrf.mxu0
      %2550 = vmatprep.mubr.bf16.mxu0 0
      %2551 = vmatmul.mubr.bf16.gmra.mxu0 %v2483
      %v2552 = vpop.f32.mrf.mxu0
      %v2553 = vadd.f32 %v2432, %v2552
      %v2554 = vpop.f32.mrf.mxu0
      %v2555 = vpop.f32.mrf.mxu0
      %v2556 = vadd.f32 %v2435, %v2555
      %v2557 = vpop.f32.mrf.mxu0
      %2558 = vmatprep.mubr.bf16.mxu0 0
      %2559 = vmatmul.mubr.bf16.gmra.mxu0 %v2486
      %v2560 = vpop.f32.mrf.mxu0
      %v2561 = vadd.f32 %v2440, %v2560
      %v2562 = vpop.f32.mrf.mxu0
      %v2563 = vpop.f32.mrf.mxu0
      %v2564 = vadd.f32 %v2443, %v2563
      %v2565 = vpop.f32.mrf.mxu0
      %2566 = vmatprep.mubr.bf16.mxu0 0
      %2567 = vmatmul.mubr.bf16.gmra.mxu0 %v2489
      %v2568 = vpop.f32.mrf.mxu0
      %v2569 = vadd.f32 %v2448, %v2568
      %v2570 = vpop.f32.mrf.mxu0
      %v2571 = vpop.f32.mrf.mxu0
      %v2572 = vadd.f32 %v2451, %v2571
      %v2573 = vpop.f32.mrf.mxu0
      %2574 = vmatprep.mubr.bf16.mxu0 0
      %2575 = vmatmul.mubr.bf16.gmra.mxu0 %v2492
      %v2576 = vpop.f32.mrf.mxu0
      %v2577 = vadd.f32 %v2456, %v2576
      %v2578 = vpop.f32.mrf.mxu0
      %v2579 = vpop.f32.mrf.mxu0
      %v2580 = vpop.f32.mrf.mxu0
      %2581 = vdwg.mxu0
      %v2582 = vld [vmem:[#allocation3 + $0x2] sm:$0xff]
      %v2583 = vld [vmem:[#allocation3 + $0xa] sm:$0xff]
      %v2584 = vld [vmem:[#allocation3 + $0x12] sm:$0xff]
      %v2585 = vld [vmem:[#allocation3 + $0x1a] sm:$0xff]
      %v2586 = vld [vmem:[#allocation3 + $0x22] sm:$0xff]
      %v2587 = vld [vmem:[#allocation3 + $0x2a] sm:$0xff]
      %v2588 = vld [vmem:[#allocation3 + $0x32] sm:$0xff]
      %v2589 = vld [vmem:[#allocation3 + $0x3a] sm:$0xff]
      %v2590 = vld [vmem:[#allocation3 + $0x42] sm:$0xff]
      %v2591 = vld [vmem:[#allocation3 + $0x4a] sm:$0xff]
      %v2592 = vld [vmem:[#allocation3 + $0x52] sm:$0xff]
      %v2593 = vld [vmem:[#allocation3 + $0x5a] sm:$0xff]
      %v2594 = vld [vmem:[#allocation3 + $0x62] sm:$0xff]
      %v2595 = vpack.c.bf16 %v2583, %v2582
      %v2596 = vpack.c.bf16 %v2585, %v2584
      %v2597 = vpack.c.bf16 %v2587, %v2586
      %v2598 = vpack.c.bf16 %v2589, %v2588
      %v2599 = vpack.c.bf16 %v2591, %v2590
      %v2600 = vpack.c.bf16 %v2593, %v2592
      %v2601 = vpack.c.bf16 %v2594, %v2594
      %s2602 = scalar_lea.vmem %s3, 32
      %v2603 = vld [vmem:[%s2602] sm:$0xf]
      %v2604 = vld [vmem:[%s2602 + $0x4] sm:$0xf]
      %v2605 = vld [vmem:[%s2602 + $0x8] sm:$0xf]
      %v2606 = vld [vmem:[%s2602 + $0xc] sm:$0xf]
      %v2611 = vunpack.c.l.b16 %v2603
      %v2612 = vunpack.c.l.b16 %v2604
      %v2613 = vunpack.c.l.b16 %v2605
      %v2614 = vunpack.c.l.b16 %v2606
      %v2615 = vpack.c.b16 %v2612, %v2611
      %v2616 = vpack.c.b16 %v2614, %v2613
      %v2620 = vsel %vm2181, %v2595, 0
      %v2623 = vsel %vm2181, %v2596, 0
      %v2626 = vsel %vm2181, %v2597, 0
      %v2629 = vsel %vm2181, %v2598, 0
      %v2632 = vsel %vm2181, %v2599, 0
      %v2635 = vsel %vm2181, %v2600, 0
      %v2638 = vsel %vm2181, %v2601, 0
      %2640 = vmatprep.subr.bf16.mxu0 0
      %2641 = vmatpush1.bf16.msra.mxu0 0
      %2642 = vmatprep.subr.bf16.mxu0 0
      %2643 = vmatpush1.bf16.msra.mxu0 0
      %2644 = vmatprep.subr.bf16.mxu0 0
      %2645 = vmatpush1.bf16.msra.mxu0 0
      %2646 = vmatprep.subr.bf16.mxu0 0
      %2647 = vmatpush1.bf16.msra.mxu0 0
      %2648 = vmatprep.subr.bf16.mxu0 0
      %2649 = vmatpush1.bf16.msra.mxu0 0
      %2650 = vmatprep.subr.bf16.mxu0 0
      %2651 = vmatpush1.bf16.msra.mxu0 0
      %2652 = vmatprep.subr.bf16.mxu0 0
      %2653 = vmatpush1.bf16.msra.mxu0 %v2616
      %2654 = vmatprep.subr.bf16.mxu0 0
      %2655 = vmatpush1.bf16.msra.mxu0 %v2615
      %2656 = vmatprep.subr.bf16.mxu0 0
      %2657 = vmatpush2.bf16.msra.mxu0 0
      %2658 = vmatprep.subr.bf16.mxu0 0
      %2659 = vmatpush2.bf16.msra.mxu0 0
      %2660 = vmatprep.subr.bf16.mxu0 0
      %2661 = vmatpush2.bf16.msra.mxu0 0
      %2662 = vmatprep.subr.bf16.mxu0 0
      %2663 = vmatpush2.bf16.msra.mxu0 0
      %2664 = vmatprep.subr.bf16.mxu0 0
      %2665 = vmatpush2.bf16.msra.mxu0 0
      %2666 = vmatprep.subr.bf16.mxu0 0
      %2667 = vmatpush2.bf16.msra.mxu0 0
      %2668 = vmatprep.subr.bf16.mxu0 0
      %2669 = vmatpush2.bf16.msra.mxu0 0
      %2670 = vmatprep.subr.bf16.mxu0 0
      %2671 = vmatpush2.bf16.msra.mxu0 0
      %2672 = vmatprep.mubr.bf16.mxu0 0
      %2673 = vmatmul.mubr.bf16.gmra.mxu0 %v2620
      %v2674 = vpop.f32.mrf.mxu0
      %v2675 = vadd.f32 0.0, %v2674
      %v2676 = vpop.f32.mrf.mxu0
      %v2677 = vpop.f32.mrf.mxu0
      %v2678 = vadd.f32 0.0, %v2677
      %v2679 = vpop.f32.mrf.mxu0
      %2680 = vmatprep.mubr.bf16.mxu0 0
      %2681 = vmatmul.mubr.bf16.gmra.mxu0 %v2623
      %v2682 = vpop.f32.mrf.mxu0
      %v2683 = vadd.f32 0.0, %v2682
      %v2684 = vpop.f32.mrf.mxu0
      %v2685 = vpop.f32.mrf.mxu0
      %v2686 = vadd.f32 0.0, %v2685
      %v2687 = vpop.f32.mrf.mxu0
      %2688 = vmatprep.mubr.bf16.mxu0 0
      %2689 = vmatmul.mubr.bf16.gmra.mxu0 %v2626
      %v2690 = vpop.f32.mrf.mxu0
      %v2691 = vadd.f32 0.0, %v2690
      %v2692 = vpop.f32.mrf.mxu0
      %v2693 = vpop.f32.mrf.mxu0
      %v2694 = vadd.f32 0.0, %v2693
      %v2695 = vpop.f32.mrf.mxu0
      %2696 = vmatprep.mubr.bf16.mxu0 0
      %2697 = vmatmul.mubr.bf16.gmra.mxu0 %v2629
      %v2698 = vpop.f32.mrf.mxu0
      %v2699 = vadd.f32 0.0, %v2698
      %v2700 = vpop.f32.mrf.mxu0
      %v2701 = vpop.f32.mrf.mxu0
      %v2702 = vadd.f32 0.0, %v2701
      %v2703 = vpop.f32.mrf.mxu0
      %2704 = vmatprep.mubr.bf16.mxu0 0
      %2705 = vmatmul.mubr.bf16.gmra.mxu0 %v2632
      %v2706 = vpop.f32.mrf.mxu0
      %v2707 = vadd.f32 0.0, %v2706
      %v2708 = vpop.f32.mrf.mxu0
      %v2709 = vpop.f32.mrf.mxu0
      %v2710 = vadd.f32 0.0, %v2709
      %v2711 = vpop.f32.mrf.mxu0
      %2712 = vmatprep.mubr.bf16.mxu0 0
      %2713 = vmatmul.mubr.bf16.gmra.mxu0 %v2635
      %v2714 = vpop.f32.mrf.mxu0
      %v2715 = vadd.f32 0.0, %v2714
      %v2716 = vpop.f32.mrf.mxu0
      %v2717 = vpop.f32.mrf.mxu0
      %v2718 = vadd.f32 0.0, %v2717
      %v2719 = vpop.f32.mrf.mxu0
      %2720 = vmatprep.mubr.bf16.mxu0 0
      %2721 = vmatmul.mubr.bf16.gmra.mxu0 %v2638
      %v2722 = vpop.f32.mrf.mxu0
      %v2723 = vadd.f32 0.0, %v2722
      %v2724 = vpop.f32.mrf.mxu0
      %v2725 = vpop.f32.mrf.mxu0
      %v2726 = vpop.f32.mrf.mxu0
      %2727 = vdwg.mxu0
      %v2728 = vadd.f32 %v2529, %v2675
      %v2729 = vadd.f32 %v2532, %v2678
      %v2730 = vadd.f32 %v2537, %v2683
      %v2731 = vadd.f32 %v2540, %v2686
      %v2732 = vadd.f32 %v2545, %v2691
      %v2733 = vadd.f32 %v2548, %v2694
      %v2734 = vadd.f32 %v2553, %v2699
      %v2735 = vadd.f32 %v2556, %v2702
      %v2736 = vadd.f32 %v2561, %v2707
      %v2737 = vadd.f32 %v2564, %v2710
      %v2738 = vadd.f32 %v2569, %v2715
      %v2739 = vadd.f32 %v2572, %v2718
      %v2740 = vadd.f32 %v2577, %v2723
      %v2741 = vld [vmem:[#allocation3 + $0xa] sm:$0xff]
      %v2742 = vld [vmem:[#allocation3 + $0x12] sm:$0xff]
      %v2743 = vld [vmem:[#allocation3 + $0x1a] sm:$0xff]
      %v2744 = vld [vmem:[#allocation3 + $0x22] sm:$0xff]
      %v2745 = vld [vmem:[#allocation3 + $0x2a] sm:$0xff]
      %v2746 = vld [vmem:[#allocation3 + $0x32] sm:$0xff]
      %v2747 = vld [vmem:[#allocation3 + $0x3a] sm:$0xff]
      %v2748 = vld [vmem:[#allocation3 + $0x42] sm:$0xff]
      %v2749 = vld [vmem:[#allocation3 + $0x4a] sm:$0xff]
      %v2750 = vld [vmem:[#allocation3 + $0x52] sm:$0xff]
      %v2751 = vld [vmem:[#allocation3 + $0x5a] sm:$0xff]
      %v2752 = vld [vmem:[#allocation3 + $0x62] sm:$0xff]
      %v2753 = vld [vmem:[#allocation3 + $0x6a] sm:$0xff]
      %v2754 = vpack.c.bf16 %v2742, %v2741
      %v2755 = vpack.c.bf16 %v2744, %v2743
      %v2756 = vpack.c.bf16 %v2746, %v2745
      %v2757 = vpack.c.bf16 %v2748, %v2747
      %v2758 = vpack.c.bf16 %v2750, %v2749
      %v2759 = vpack.c.bf16 %v2752, %v2751
      %v2760 = vpack.c.bf16 %v2753, %v2753
      %s2761 = scalar_lea.vmem %s3, 48
      %v2762 = vld [vmem:[%s2761] sm:$0xf]
      %v2763 = vld [vmem:[%s2761 + $0x4] sm:$0xf]
      %v2764 = vld [vmem:[%s2761 + $0x8] sm:$0xf]
      %v2765 = vld [vmem:[%s2761 + $0xc] sm:$0xf]
      %v2770 = vunpack.c.l.b16 %v2762
      %v2771 = vunpack.c.l.b16 %v2763
      %v2772 = vunpack.c.l.b16 %v2764
      %v2773 = vunpack.c.l.b16 %v2765
      %v2774 = vpack.c.b16 %v2771, %v2770
      %v2775 = vpack.c.b16 %v2773, %v2772
      %v2779 = vsel %vm2181, %v2754, 0
      %v2782 = vsel %vm2181, %v2755, 0
      %v2785 = vsel %vm2181, %v2756, 0
      %v2788 = vsel %vm2181, %v2757, 0
      %v2791 = vsel %vm2181, %v2758, 0
      %v2794 = vsel %vm2181, %v2759, 0
      %v2797 = vsel %vm2181, %v2760, 0
      %2799 = vmatprep.subr.bf16.mxu0 0
      %2800 = vmatpush1.bf16.msra.mxu0 0
      %2801 = vmatprep.subr.bf16.mxu0 0
      %2802 = vmatpush1.bf16.msra.mxu0 0
      %2803 = vmatprep.subr.bf16.mxu0 0
      %2804 = vmatpush1.bf16.msra.mxu0 0
      %2805 = vmatprep.subr.bf16.mxu0 0
      %2806 = vmatpush1.bf16.msra.mxu0 0
      %2807 = vmatprep.subr.bf16.mxu0 0
      %2808 = vmatpush1.bf16.msra.mxu0 0
      %2809 = vmatprep.subr.bf16.mxu0 0
      %2810 = vmatpush1.bf16.msra.mxu0 0
      %2811 = vmatprep.subr.bf16.mxu0 0
      %2812 = vmatpush1.bf16.msra.mxu0 %v2775
      %2813 = vmatprep.subr.bf16.mxu0 0
      %2814 = vmatpush1.bf16.msra.mxu0 %v2774
      %2815 = vmatprep.subr.bf16.mxu0 0
      %2816 = vmatpush2.bf16.msra.mxu0 0
      %2817 = vmatprep.subr.bf16.mxu0 0
      %2818 = vmatpush2.bf16.msra.mxu0 0
      %2819 = vmatprep.subr.bf16.mxu0 0
      %2820 = vmatpush2.bf16.msra.mxu0 0
      %2821 = vmatprep.subr.bf16.mxu0 0
      %2822 = vmatpush2.bf16.msra.mxu0 0
      %2823 = vmatprep.subr.bf16.mxu0 0
      %2824 = vmatpush2.bf16.msra.mxu0 0
      %2825 = vmatprep.subr.bf16.mxu0 0
      %2826 = vmatpush2.bf16.msra.mxu0 0
      %2827 = vmatprep.subr.bf16.mxu0 0
      %2828 = vmatpush2.bf16.msra.mxu0 0
      %2829 = vmatprep.subr.bf16.mxu0 0
      %2830 = vmatpush2.bf16.msra.mxu0 0
      %2831 = vmatprep.mubr.bf16.mxu0 0
      %2832 = vmatmul.mubr.bf16.gmra.mxu0 %v2779
      %v2833 = vpop.f32.mrf.mxu0
      %v2834 = vadd.f32 0.0, %v2833
      %v2835 = vpop.f32.mrf.mxu0
      %v2836 = vpop.f32.mrf.mxu0
      %v2837 = vadd.f32 0.0, %v2836
      %v2838 = vpop.f32.mrf.mxu0
      %2839 = vmatprep.mubr.bf16.mxu0 0
      %2840 = vmatmul.mubr.bf16.gmra.mxu0 %v2782
      %v2841 = vpop.f32.mrf.mxu0
      %v2842 = vadd.f32 0.0, %v2841
      %v2843 = vpop.f32.mrf.mxu0
      %v2844 = vpop.f32.mrf.mxu0
      %v2845 = vadd.f32 0.0, %v2844
      %v2846 = vpop.f32.mrf.mxu0
      %2847 = vmatprep.mubr.bf16.mxu0 0
      %2848 = vmatmul.mubr.bf16.gmra.mxu0 %v2785
      %v2849 = vpop.f32.mrf.mxu0
      %v2850 = vadd.f32 0.0, %v2849
      %v2851 = vpop.f32.mrf.mxu0
      %v2852 = vpop.f32.mrf.mxu0
      %v2853 = vadd.f32 0.0, %v2852
      %v2854 = vpop.f32.mrf.mxu0
      %2855 = vmatprep.mubr.bf16.mxu0 0
      %2856 = vmatmul.mubr.bf16.gmra.mxu0 %v2788
      %v2857 = vpop.f32.mrf.mxu0
      %v2858 = vadd.f32 0.0, %v2857
      %v2859 = vpop.f32.mrf.mxu0
      %v2860 = vpop.f32.mrf.mxu0
      %v2861 = vadd.f32 0.0, %v2860
      %v2862 = vpop.f32.mrf.mxu0
      %2863 = vmatprep.mubr.bf16.mxu0 0
      %2864 = vmatmul.mubr.bf16.gmra.mxu0 %v2791
      %v2865 = vpop.f32.mrf.mxu0
      %v2866 = vadd.f32 0.0, %v2865
      %v2867 = vpop.f32.mrf.mxu0
      %v2868 = vpop.f32.mrf.mxu0
      %v2869 = vadd.f32 0.0, %v2868
      %v2870 = vpop.f32.mrf.mxu0
      %2871 = vmatprep.mubr.bf16.mxu0 0
      %2872 = vmatmul.mubr.bf16.gmra.mxu0 %v2794
      %v2873 = vpop.f32.mrf.mxu0
      %v2874 = vadd.f32 0.0, %v2873
      %v2875 = vpop.f32.mrf.mxu0
      %v2876 = vpop.f32.mrf.mxu0
      %v2877 = vadd.f32 0.0, %v2876
      %v2878 = vpop.f32.mrf.mxu0
      %2879 = vmatprep.mubr.bf16.mxu0 0
      %2880 = vmatmul.mubr.bf16.gmra.mxu0 %v2797
      %v2881 = vpop.f32.mrf.mxu0
      %v2882 = vadd.f32 0.0, %v2881
      %v2883 = vpop.f32.mrf.mxu0
      %v2884 = vpop.f32.mrf.mxu0
      %v2885 = vpop.f32.mrf.mxu0
      %2886 = vdwg.mxu0
      %v2887 = vadd.f32 %v2728, %v2834
      %v2888 = vadd.f32 %v2729, %v2837
      %v2889 = vadd.f32 %v2730, %v2842
      %v2890 = vadd.f32 %v2731, %v2845
      %v2891 = vadd.f32 %v2732, %v2850
      %v2892 = vadd.f32 %v2733, %v2853
      %v2893 = vadd.f32 %v2734, %v2858
      %v2894 = vadd.f32 %v2735, %v2861
      %v2895 = vadd.f32 %v2736, %v2866
      %v2896 = vadd.f32 %v2737, %v2869
      %v2897 = vadd.f32 %v2738, %v2874
      %v2898 = vadd.f32 %v2739, %v2877
      %v2899 = vadd.f32 %v2740, %v2882
      %v2900 = vld [vmem:[#allocation3 + $0xb] sm:$0xff]
      %v2901 = vld [vmem:[#allocation3 + $0x13] sm:$0xff]
      %v2902 = vld [vmem:[#allocation3 + $0x1b] sm:$0xff]
      %v2903 = vld [vmem:[#allocation3 + $0x23] sm:$0xff]
      %v2904 = vld [vmem:[#allocation3 + $0x2b] sm:$0xff]
      %v2905 = vld [vmem:[#allocation3 + $0x33] sm:$0xff]
      %v2906 = vld [vmem:[#allocation3 + $0x3b] sm:$0xff]
      %v2907 = vld [vmem:[#allocation3 + $0x43] sm:$0xff]
      %v2908 = vld [vmem:[#allocation3 + $0x4b] sm:$0xff]
      %v2909 = vld [vmem:[#allocation3 + $0x53] sm:$0xff]
      %v2910 = vld [vmem:[#allocation3 + $0x5b] sm:$0xff]
      %v2911 = vld [vmem:[#allocation3 + $0x63] sm:$0xff]
      %v2912 = vld [vmem:[#allocation3 + $0x6b] sm:$0xff]
      %v2913 = vpack.c.bf16 %v2901, %v2900
      %v2914 = vpack.c.bf16 %v2903, %v2902
      %v2915 = vpack.c.bf16 %v2905, %v2904
      %v2916 = vpack.c.bf16 %v2907, %v2906
      %v2917 = vpack.c.bf16 %v2909, %v2908
      %v2918 = vpack.c.bf16 %v2911, %v2910
      %v2919 = vpack.c.bf16 %v2912, %v2912
      %s2920 = scalar_lea.vmem %s3, 64
      %v2921 = vld [vmem:[%s2920] sm:$0xf]
      %v2922 = vld [vmem:[%s2920 + $0x4] sm:$0xf]
      %v2923 = vld [vmem:[%s2920 + $0x8] sm:$0xf]
      %v2924 = vld [vmem:[%s2920 + $0xc] sm:$0xf]
      %v2929 = vunpack.c.l.b16 %v2921
      %v2930 = vunpack.c.l.b16 %v2922
      %v2931 = vunpack.c.l.b16 %v2923
      %v2932 = vunpack.c.l.b16 %v2924
      %v2933 = vpack.c.b16 %v2930, %v2929
      %v2934 = vpack.c.b16 %v2932, %v2931
      %v2938 = vsel %vm2181, %v2913, 0
      %v2941 = vsel %vm2181, %v2914, 0
      %v2944 = vsel %vm2181, %v2915, 0
      %v2947 = vsel %vm2181, %v2916, 0
      %v2950 = vsel %vm2181, %v2917, 0
      %v2953 = vsel %vm2181, %v2918, 0
      %v2956 = vsel %vm2181, %v2919, 0
      %2958 = vmatprep.subr.bf16.mxu0 0
      %2959 = vmatpush1.bf16.msra.mxu0 0
      %2960 = vmatprep.subr.bf16.mxu0 0
      %2961 = vmatpush1.bf16.msra.mxu0 0
      %2962 = vmatprep.subr.bf16.mxu0 0
      %2963 = vmatpush1.bf16.msra.mxu0 0
      %2964 = vmatprep.subr.bf16.mxu0 0
      %2965 = vmatpush1.bf16.msra.mxu0 0
      %2966 = vmatprep.subr.bf16.mxu0 0
      %2967 = vmatpush1.bf16.msra.mxu0 0
      %2968 = vmatprep.subr.bf16.mxu0 0
      %2969 = vmatpush1.bf16.msra.mxu0 0
      %2970 = vmatprep.subr.bf16.mxu0 0
      %2971 = vmatpush1.bf16.msra.mxu0 %v2934
      %2972 = vmatprep.subr.bf16.mxu0 0
      %2973 = vmatpush1.bf16.msra.mxu0 %v2933
      %2974 = vmatprep.subr.bf16.mxu0 0
      %2975 = vmatpush2.bf16.msra.mxu0 0
      %2976 = vmatprep.subr.bf16.mxu0 0
      %2977 = vmatpush2.bf16.msra.mxu0 0
      %2978 = vmatprep.subr.bf16.mxu0 0
      %2979 = vmatpush2.bf16.msra.mxu0 0
      %2980 = vmatprep.subr.bf16.mxu0 0
      %2981 = vmatpush2.bf16.msra.mxu0 0
      %2982 = vmatprep.subr.bf16.mxu0 0
      %2983 = vmatpush2.bf16.msra.mxu0 0
      %2984 = vmatprep.subr.bf16.mxu0 0
      %2985 = vmatpush2.bf16.msra.mxu0 0
      %2986 = vmatprep.subr.bf16.mxu0 0
      %2987 = vmatpush2.bf16.msra.mxu0 0
      %2988 = vmatprep.subr.bf16.mxu0 0
      %2989 = vmatpush2.bf16.msra.mxu0 0
      %2990 = vmatprep.mubr.bf16.mxu0 0
      %2991 = vmatmul.mubr.bf16.gmra.mxu0 %v2938
      %v2992 = vpop.f32.mrf.mxu0
      %v2993 = vadd.f32 0.0, %v2992
      %v2994 = vpop.f32.mrf.mxu0
      %v2995 = vpop.f32.mrf.mxu0
      %v2996 = vadd.f32 0.0, %v2995
      %v2997 = vpop.f32.mrf.mxu0
      %2998 = vmatprep.mubr.bf16.mxu0 0
      %2999 = vmatmul.mubr.bf16.gmra.mxu0 %v2941
      %v3000 = vpop.f32.mrf.mxu0
      %v3001 = vadd.f32 0.0, %v3000
      %v3002 = vpop.f32.mrf.mxu0
      %v3003 = vpop.f32.mrf.mxu0
      %v3004 = vadd.f32 0.0, %v3003
      %v3005 = vpop.f32.mrf.mxu0
      %3006 = vmatprep.mubr.bf16.mxu0 0
      %3007 = vmatmul.mubr.bf16.gmra.mxu0 %v2944
      %v3008 = vpop.f32.mrf.mxu0
      %v3009 = vadd.f32 0.0, %v3008
      %v3010 = vpop.f32.mrf.mxu0
      %v3011 = vpop.f32.mrf.mxu0
      %v3012 = vadd.f32 0.0, %v3011
      %v3013 = vpop.f32.mrf.mxu0
      %3014 = vmatprep.mubr.bf16.mxu0 0
      %3015 = vmatmul.mubr.bf16.gmra.mxu0 %v2947
      %v3016 = vpop.f32.mrf.mxu0
      %v3017 = vadd.f32 0.0, %v3016
      %v3018 = vpop.f32.mrf.mxu0
      %v3019 = vpop.f32.mrf.mxu0
      %v3020 = vadd.f32 0.0, %v3019
      %v3021 = vpop.f32.mrf.mxu0
      %3022 = vmatprep.mubr.bf16.mxu0 0
      %3023 = vmatmul.mubr.bf16.gmra.mxu0 %v2950
      %v3024 = vpop.f32.mrf.mxu0
      %v3025 = vadd.f32 0.0, %v3024
      %v3026 = vpop.f32.mrf.mxu0
      %v3027 = vpop.f32.mrf.mxu0
      %v3028 = vadd.f32 0.0, %v3027
      %v3029 = vpop.f32.mrf.mxu0
      %3030 = vmatprep.mubr.bf16.mxu0 0
      %3031 = vmatmul.mubr.bf16.gmra.mxu0 %v2953
      %v3032 = vpop.f32.mrf.mxu0
      %v3033 = vadd.f32 0.0, %v3032
      %v3034 = vpop.f32.mrf.mxu0
      %v3035 = vpop.f32.mrf.mxu0
      %v3036 = vadd.f32 0.0, %v3035
      %v3037 = vpop.f32.mrf.mxu0
      %3038 = vmatprep.mubr.bf16.mxu0 0
      %3039 = vmatmul.mubr.bf16.gmra.mxu0 %v2956
      %v3040 = vpop.f32.mrf.mxu0
      %v3041 = vadd.f32 0.0, %v3040
      %v3042 = vpop.f32.mrf.mxu0
      %v3043 = vpop.f32.mrf.mxu0
      %v3044 = vpop.f32.mrf.mxu0
      %3045 = vdwg.mxu0
      %v3046 = vadd.f32 %v2887, %v2993
      %v3047 = vadd.f32 %v2888, %v2996
      %v3048 = vadd.f32 %v2889, %v3001
      %v3049 = vadd.f32 %v2890, %v3004
      %v3050 = vadd.f32 %v2891, %v3009
      %v3051 = vadd.f32 %v2892, %v3012
      %v3052 = vadd.f32 %v2893, %v3017
      %v3053 = vadd.f32 %v2894, %v3020
      %v3054 = vadd.f32 %v2895, %v3025
      %v3055 = vadd.f32 %v2896, %v3028
      %v3056 = vadd.f32 %v2897, %v3033
      %v3057 = vadd.f32 %v2898, %v3036
      %v3058 = vadd.f32 %v2899, %v3041
      %v3059 = vld [vmem:[#allocation3 + $0xc] sm:$0xff]
      %v3060 = vld [vmem:[#allocation3 + $0x14] sm:$0xff]
      %v3061 = vld [vmem:[#allocation3 + $0x1c] sm:$0xff]
      %v3062 = vld [vmem:[#allocation3 + $0x24] sm:$0xff]
      %v3063 = vld [vmem:[#allocation3 + $0x2c] sm:$0xff]
      %v3064 = vld [vmem:[#allocation3 + $0x34] sm:$0xff]
      %v3065 = vld [vmem:[#allocation3 + $0x3c] sm:$0xff]
      %v3066 = vld [vmem:[#allocation3 + $0x44] sm:$0xff]
      %v3067 = vld [vmem:[#allocation3 + $0x4c] sm:$0xff]
      %v3068 = vld [vmem:[#allocation3 + $0x54] sm:$0xff]
      %v3069 = vld [vmem:[#allocation3 + $0x5c] sm:$0xff]
      %v3070 = vld [vmem:[#allocation3 + $0x64] sm:$0xff]
      %v3071 = vld [vmem:[#allocation3 + $0x6c] sm:$0xff]
      %v3072 = vpack.c.bf16 %v3060, %v3059
      %v3073 = vpack.c.bf16 %v3062, %v3061
      %v3074 = vpack.c.bf16 %v3064, %v3063
      %v3075 = vpack.c.bf16 %v3066, %v3065
      %v3076 = vpack.c.bf16 %v3068, %v3067
      %v3077 = vpack.c.bf16 %v3070, %v3069
      %v3078 = vpack.c.bf16 %v3071, %v3071
      %s3079 = scalar_lea.vmem %s3, 80
      %v3080 = vld [vmem:[%s3079] sm:$0xf]
      %v3081 = vld [vmem:[%s3079 + $0x4] sm:$0xf]
      %v3082 = vld [vmem:[%s3079 + $0x8] sm:$0xf]
      %v3083 = vld [vmem:[%s3079 + $0xc] sm:$0xf]
      %v3088 = vunpack.c.l.b16 %v3080
      %v3089 = vunpack.c.l.b16 %v3081
      %v3090 = vunpack.c.l.b16 %v3082
      %v3091 = vunpack.c.l.b16 %v3083
      %v3092 = vpack.c.b16 %v3089, %v3088
      %v3093 = vpack.c.b16 %v3091, %v3090
      %v3097 = vsel %vm2181, %v3072, 0
      %v3100 = vsel %vm2181, %v3073, 0
      %v3103 = vsel %vm2181, %v3074, 0
      %v3106 = vsel %vm2181, %v3075, 0
      %v3109 = vsel %vm2181, %v3076, 0
      %v3112 = vsel %vm2181, %v3077, 0
      %v3115 = vsel %vm2181, %v3078, 0
      %3117 = vmatprep.subr.bf16.mxu0 0
      %3118 = vmatpush1.bf16.msra.mxu0 0
      %3119 = vmatprep.subr.bf16.mxu0 0
      %3120 = vmatpush1.bf16.msra.mxu0 0
      %3121 = vmatprep.subr.bf16.mxu0 0
      %3122 = vmatpush1.bf16.msra.mxu0 0
      %3123 = vmatprep.subr.bf16.mxu0 0
      %3124 = vmatpush1.bf16.msra.mxu0 0
      %3125 = vmatprep.subr.bf16.mxu0 0
      %3126 = vmatpush1.bf16.msra.mxu0 0
      %3127 = vmatprep.subr.bf16.mxu0 0
      %3128 = vmatpush1.bf16.msra.mxu0 0
      %3129 = vmatprep.subr.bf16.mxu0 0
      %3130 = vmatpush1.bf16.msra.mxu0 %v3093
      %3131 = vmatprep.subr.bf16.mxu0 0
      %3132 = vmatpush1.bf16.msra.mxu0 %v3092
      %3133 = vmatprep.subr.bf16.mxu0 0
      %3134 = vmatpush2.bf16.msra.mxu0 0
      %3135 = vmatprep.subr.bf16.mxu0 0
      %3136 = vmatpush2.bf16.msra.mxu0 0
      %3137 = vmatprep.subr.bf16.mxu0 0
      %3138 = vmatpush2.bf16.msra.mxu0 0
      %3139 = vmatprep.subr.bf16.mxu0 0
      %3140 = vmatpush2.bf16.msra.mxu0 0
      %3141 = vmatprep.subr.bf16.mxu0 0
      %3142 = vmatpush2.bf16.msra.mxu0 0
      %3143 = vmatprep.subr.bf16.mxu0 0
      %3144 = vmatpush2.bf16.msra.mxu0 0
      %3145 = vmatprep.subr.bf16.mxu0 0
      %3146 = vmatpush2.bf16.msra.mxu0 0
      %3147 = vmatprep.subr.bf16.mxu0 0
      %3148 = vmatpush2.bf16.msra.mxu0 0
      %3149 = vmatprep.mubr.bf16.mxu0 0
      %3150 = vmatmul.mubr.bf16.gmra.mxu0 %v3097
      %v3151 = vpop.f32.mrf.mxu0
      %v3152 = vadd.f32 0.0, %v3151
      %v3153 = vpop.f32.mrf.mxu0
      %v3154 = vpop.f32.mrf.mxu0
      %v3155 = vadd.f32 0.0, %v3154
      %v3156 = vpop.f32.mrf.mxu0
      %3157 = vmatprep.mubr.bf16.mxu0 0
      %3158 = vmatmul.mubr.bf16.gmra.mxu0 %v3100
      %v3159 = vpop.f32.mrf.mxu0
      %v3160 = vadd.f32 0.0, %v3159
      %v3161 = vpop.f32.mrf.mxu0
      %v3162 = vpop.f32.mrf.mxu0
      %v3163 = vadd.f32 0.0, %v3162
      %v3164 = vpop.f32.mrf.mxu0
      %3165 = vmatprep.mubr.bf16.mxu0 0
      %3166 = vmatmul.mubr.bf16.gmra.mxu0 %v3103
      %v3167 = vpop.f32.mrf.mxu0
      %v3168 = vadd.f32 0.0, %v3167
      %v3169 = vpop.f32.mrf.mxu0
      %v3170 = vpop.f32.mrf.mxu0
      %v3171 = vadd.f32 0.0, %v3170
      %v3172 = vpop.f32.mrf.mxu0
      %3173 = vmatprep.mubr.bf16.mxu0 0
      %3174 = vmatmul.mubr.bf16.gmra.mxu0 %v3106
      %v3175 = vpop.f32.mrf.mxu0
      %v3176 = vadd.f32 0.0, %v3175
      %v3177 = vpop.f32.mrf.mxu0
      %v3178 = vpop.f32.mrf.mxu0
      %v3179 = vadd.f32 0.0, %v3178
      %v3180 = vpop.f32.mrf.mxu0
      %3181 = vmatprep.mubr.bf16.mxu0 0
      %3182 = vmatmul.mubr.bf16.gmra.mxu0 %v3109
      %v3183 = vpop.f32.mrf.mxu0
      %v3184 = vadd.f32 0.0, %v3183
      %v3185 = vpop.f32.mrf.mxu0
      %v3186 = vpop.f32.mrf.mxu0
      %v3187 = vadd.f32 0.0, %v3186
      %v3188 = vpop.f32.mrf.mxu0
      %3189 = vmatprep.mubr.bf16.mxu0 0
      %3190 = vmatmul.mubr.bf16.gmra.mxu0 %v3112
      %v3191 = vpop.f32.mrf.mxu0
      %v3192 = vadd.f32 0.0, %v3191
      %v3193 = vpop.f32.mrf.mxu0
      %v3194 = vpop.f32.mrf.mxu0
      %v3195 = vadd.f32 0.0, %v3194
      %v3196 = vpop.f32.mrf.mxu0
      %3197 = vmatprep.mubr.bf16.mxu0 0
      %3198 = vmatmul.mubr.bf16.gmra.mxu0 %v3115
      %v3199 = vpop.f32.mrf.mxu0
      %v3200 = vadd.f32 0.0, %v3199
      %v3201 = vpop.f32.mrf.mxu0
      %v3202 = vpop.f32.mrf.mxu0
      %v3203 = vpop.f32.mrf.mxu0
      %3204 = vdwg.mxu0
      %v3205 = vadd.f32 %v3046, %v3152
      %v3206 = vadd.f32 %v3047, %v3155
      %v3207 = vadd.f32 %v3048, %v3160
      %v3208 = vadd.f32 %v3049, %v3163
      %v3209 = vadd.f32 %v3050, %v3168
      %v3210 = vadd.f32 %v3051, %v3171
      %v3211 = vadd.f32 %v3052, %v3176
      %v3212 = vadd.f32 %v3053, %v3179
      %v3213 = vadd.f32 %v3054, %v3184
      %v3214 = vadd.f32 %v3055, %v3187
      %v3215 = vadd.f32 %v3056, %v3192
      %v3216 = vadd.f32 %v3057, %v3195
      %v3217 = vadd.f32 %v3058, %v3200
      %v3218 = vld [vmem:[#allocation3 + $0x14] sm:$0xff]
      %v3219 = vld [vmem:[#allocation3 + $0x1c] sm:$0xff]
      %v3220 = vld [vmem:[#allocation3 + $0x24] sm:$0xff]
      %v3221 = vld [vmem:[#allocation3 + $0x2c] sm:$0xff]
      %v3222 = vld [vmem:[#allocation3 + $0x34] sm:$0xff]
      %v3223 = vld [vmem:[#allocation3 + $0x3c] sm:$0xff]
      %v3224 = vld [vmem:[#allocation3 + $0x44] sm:$0xff]
      %v3225 = vld [vmem:[#allocation3 + $0x4c] sm:$0xff]
      %v3226 = vld [vmem:[#allocation3 + $0x54] sm:$0xff]
      %v3227 = vld [vmem:[#allocation3 + $0x5c] sm:$0xff]
      %v3228 = vld [vmem:[#allocation3 + $0x64] sm:$0xff]
      %v3229 = vld [vmem:[#allocation3 + $0x6c] sm:$0xff]
      %v3230 = vld [vmem:[#allocation3 + $0x74] sm:$0xff]
      %v3231 = vpack.c.bf16 %v3219, %v3218
      %v3232 = vpack.c.bf16 %v3221, %v3220
      %v3233 = vpack.c.bf16 %v3223, %v3222
      %v3234 = vpack.c.bf16 %v3225, %v3224
      %v3235 = vpack.c.bf16 %v3227, %v3226
      %v3236 = vpack.c.bf16 %v3229, %v3228
      %v3237 = vpack.c.bf16 %v3230, %v3230
      %s3238 = scalar_lea.vmem %s3, 96
      %v3239 = vld [vmem:[%s3238] sm:$0xf]
      %v3240 = vld [vmem:[%s3238 + $0x4] sm:$0xf]
      %v3241 = vld [vmem:[%s3238 + $0x8] sm:$0xf]
      %v3242 = vld [vmem:[%s3238 + $0xc] sm:$0xf]
      %v3247 = vunpack.c.l.b16 %v3239
      %v3248 = vunpack.c.l.b16 %v3240
      %v3249 = vunpack.c.l.b16 %v3241
      %v3250 = vunpack.c.l.b16 %v3242
      %v3251 = vpack.c.b16 %v3248, %v3247
      %v3252 = vpack.c.b16 %v3250, %v3249
      %v3256 = vsel %vm2181, %v3231, 0
      %v3259 = vsel %vm2181, %v3232, 0
      %v3262 = vsel %vm2181, %v3233, 0
      %v3265 = vsel %vm2181, %v3234, 0
      %v3268 = vsel %vm2181, %v3235, 0
      %v3271 = vsel %vm2181, %v3236, 0
      %v3274 = vsel %vm2181, %v3237, 0
      %3276 = vmatprep.subr.bf16.mxu0 0
      %3277 = vmatpush1.bf16.msra.mxu0 0
      %3278 = vmatprep.subr.bf16.mxu0 0
      %3279 = vmatpush1.bf16.msra.mxu0 0
      %3280 = vmatprep.subr.bf16.mxu0 0
      %3281 = vmatpush1.bf16.msra.mxu0 0
      %3282 = vmatprep.subr.bf16.mxu0 0
      %3283 = vmatpush1.bf16.msra.mxu0 0
      %3284 = vmatprep.subr.bf16.mxu0 0
      %3285 = vmatpush1.bf16.msra.mxu0 0
      %3286 = vmatprep.subr.bf16.mxu0 0
      %3287 = vmatpush1.bf16.msra.mxu0 0
      %3288 = vmatprep.subr.bf16.mxu0 0
      %3289 = vmatpush1.bf16.msra.mxu0 %v3252
      %3290 = vmatprep.subr.bf16.mxu0 0
      %3291 = vmatpush1.bf16.msra.mxu0 %v3251
      %3292 = vmatprep.subr.bf16.mxu0 0
      %3293 = vmatpush2.bf16.msra.mxu0 0
      %3294 = vmatprep.subr.bf16.mxu0 0
      %3295 = vmatpush2.bf16.msra.mxu0 0
      %3296 = vmatprep.subr.bf16.mxu0 0
      %3297 = vmatpush2.bf16.msra.mxu0 0
      %3298 = vmatprep.subr.bf16.mxu0 0
      %3299 = vmatpush2.bf16.msra.mxu0 0
      %3300 = vmatprep.subr.bf16.mxu0 0
      %3301 = vmatpush2.bf16.msra.mxu0 0
      %3302 = vmatprep.subr.bf16.mxu0 0
      %3303 = vmatpush2.bf16.msra.mxu0 0
      %3304 = vmatprep.subr.bf16.mxu0 0
      %3305 = vmatpush2.bf16.msra.mxu0 0
      %3306 = vmatprep.subr.bf16.mxu0 0
      %3307 = vmatpush2.bf16.msra.mxu0 0
      %3308 = vmatprep.mubr.bf16.mxu0 0
      %3309 = vmatmul.mubr.bf16.gmra.mxu0 %v3256
      %v3310 = vpop.f32.mrf.mxu0
      %v3311 = vadd.f32 0.0, %v3310
      %v3312 = vpop.f32.mrf.mxu0
      %v3313 = vpop.f32.mrf.mxu0
      %v3314 = vadd.f32 0.0, %v3313
      %v3315 = vpop.f32.mrf.mxu0
      %3316 = vmatprep.mubr.bf16.mxu0 0
      %3317 = vmatmul.mubr.bf16.gmra.mxu0 %v3259
      %v3318 = vpop.f32.mrf.mxu0
      %v3319 = vadd.f32 0.0, %v3318
      %v3320 = vpop.f32.mrf.mxu0
      %v3321 = vpop.f32.mrf.mxu0
      %v3322 = vadd.f32 0.0, %v3321
      %v3323 = vpop.f32.mrf.mxu0
      %3324 = vmatprep.mubr.bf16.mxu0 0
      %3325 = vmatmul.mubr.bf16.gmra.mxu0 %v3262
      %v3326 = vpop.f32.mrf.mxu0
      %v3327 = vadd.f32 0.0, %v3326
      %v3328 = vpop.f32.mrf.mxu0
      %v3329 = vpop.f32.mrf.mxu0
      %v3330 = vadd.f32 0.0, %v3329
      %v3331 = vpop.f32.mrf.mxu0
      %3332 = vmatprep.mubr.bf16.mxu0 0
      %3333 = vmatmul.mubr.bf16.gmra.mxu0 %v3265
      %v3334 = vpop.f32.mrf.mxu0
      %v3335 = vadd.f32 0.0, %v3334
      %v3336 = vpop.f32.mrf.mxu0
      %v3337 = vpop.f32.mrf.mxu0
      %v3338 = vadd.f32 0.0, %v3337
      %v3339 = vpop.f32.mrf.mxu0
      %3340 = vmatprep.mubr.bf16.mxu0 0
      %3341 = vmatmul.mubr.bf16.gmra.mxu0 %v3268
      %v3342 = vpop.f32.mrf.mxu0
      %v3343 = vadd.f32 0.0, %v3342
      %v3344 = vpop.f32.mrf.mxu0
      %v3345 = vpop.f32.mrf.mxu0
      %v3346 = vadd.f32 0.0, %v3345
      %v3347 = vpop.f32.mrf.mxu0
      %3348 = vmatprep.mubr.bf16.mxu0 0
      %3349 = vmatmul.mubr.bf16.gmra.mxu0 %v3271
      %v3350 = vpop.f32.mrf.mxu0
      %v3351 = vadd.f32 0.0, %v3350
      %v3352 = vpop.f32.mrf.mxu0
      %v3353 = vpop.f32.mrf.mxu0
      %v3354 = vadd.f32 0.0, %v3353
      %v3355 = vpop.f32.mrf.mxu0
      %3356 = vmatprep.mubr.bf16.mxu0 0
      %3357 = vmatmul.mubr.bf16.gmra.mxu0 %v3274
      %v3358 = vpop.f32.mrf.mxu0
      %v3359 = vadd.f32 0.0, %v3358
      %v3360 = vpop.f32.mrf.mxu0
      %v3361 = vpop.f32.mrf.mxu0
      %v3362 = vpop.f32.mrf.mxu0
      %3363 = vdwg.mxu0
      %v3364 = vadd.f32 %v3205, %v3311
      %v3365 = vadd.f32 %v3206, %v3314
      %v3366 = vadd.f32 %v3207, %v3319
      %v3367 = vadd.f32 %v3208, %v3322
      %v3368 = vadd.f32 %v3209, %v3327
      %v3369 = vadd.f32 %v3210, %v3330
      %v3370 = vadd.f32 %v3211, %v3335
      %v3371 = vadd.f32 %v3212, %v3338
      %v3372 = vadd.f32 %v3213, %v3343
      %v3373 = vadd.f32 %v3214, %v3346
      %v3374 = vadd.f32 %v3215, %v3351
      %v3375 = vadd.f32 %v3216, %v3354
      %v3376 = vadd.f32 %v3217, %v3359
      %v3377 = vld [vmem:[#allocation3 + $0x15] sm:$0xff]
      %v3378 = vld [vmem:[#allocation3 + $0x1d] sm:$0xff]
      %v3379 = vld [vmem:[#allocation3 + $0x25] sm:$0xff]
      %v3380 = vld [vmem:[#allocation3 + $0x2d] sm:$0xff]
      %v3381 = vld [vmem:[#allocation3 + $0x35] sm:$0xff]
      %v3382 = vld [vmem:[#allocation3 + $0x3d] sm:$0xff]
      %v3383 = vld [vmem:[#allocation3 + $0x45] sm:$0xff]
      %v3384 = vld [vmem:[#allocation3 + $0x4d] sm:$0xff]
      %v3385 = vld [vmem:[#allocation3 + $0x55] sm:$0xff]
      %v3386 = vld [vmem:[#allocation3 + $0x5d] sm:$0xff]
      %v3387 = vld [vmem:[#allocation3 + $0x65] sm:$0xff]
      %v3388 = vld [vmem:[#allocation3 + $0x6d] sm:$0xff]
      %v3389 = vld [vmem:[#allocation3 + $0x75] sm:$0xff]
      %v3390 = vpack.c.bf16 %v3378, %v3377
      %v3391 = vpack.c.bf16 %v3380, %v3379
      %v3392 = vpack.c.bf16 %v3382, %v3381
      %v3393 = vpack.c.bf16 %v3384, %v3383
      %v3394 = vpack.c.bf16 %v3386, %v3385
      %v3395 = vpack.c.bf16 %v3388, %v3387
      %v3396 = vpack.c.bf16 %v3389, %v3389
      %s3397 = scalar_lea.vmem %s3, 112
      %v3398 = vld [vmem:[%s3397] sm:$0xf]
      %v3399 = vld [vmem:[%s3397 + $0x4] sm:$0xf]
      %v3400 = vld [vmem:[%s3397 + $0x8] sm:$0xf]
      %v3401 = vld [vmem:[%s3397 + $0xc] sm:$0xf]
      %v3406 = vunpack.c.l.b16 %v3398
      %v3407 = vunpack.c.l.b16 %v3399
      %v3408 = vunpack.c.l.b16 %v3400
      %v3409 = vunpack.c.l.b16 %v3401
      %v3410 = vpack.c.b16 %v3407, %v3406
      %v3411 = vpack.c.b16 %v3409, %v3408
      %v3415 = vsel %vm2181, %v3390, 0
      %v3418 = vsel %vm2181, %v3391, 0
      %v3421 = vsel %vm2181, %v3392, 0
      %v3424 = vsel %vm2181, %v3393, 0
      %v3427 = vsel %vm2181, %v3394, 0
      %v3430 = vsel %vm2181, %v3395, 0
      %v3433 = vsel %vm2181, %v3396, 0
      %3435 = vmatprep.subr.bf16.mxu0 0
      %3436 = vmatpush1.bf16.msra.mxu0 0
      %3437 = vmatprep.subr.bf16.mxu0 0
      %3438 = vmatpush1.bf16.msra.mxu0 0
      %3439 = vmatprep.subr.bf16.mxu0 0
      %3440 = vmatpush1.bf16.msra.mxu0 0
      %3441 = vmatprep.subr.bf16.mxu0 0
      %3442 = vmatpush1.bf16.msra.mxu0 0
      %3443 = vmatprep.subr.bf16.mxu0 0
      %3444 = vmatpush1.bf16.msra.mxu0 0
      %3445 = vmatprep.subr.bf16.mxu0 0
      %3446 = vmatpush1.bf16.msra.mxu0 0
      %3447 = vmatprep.subr.bf16.mxu0 0
      %3448 = vmatpush1.bf16.msra.mxu0 %v3411
      %3449 = vmatprep.subr.bf16.mxu0 0
      %3450 = vmatpush1.bf16.msra.mxu0 %v3410
      %3451 = vmatprep.subr.bf16.mxu0 0
      %3452 = vmatpush2.bf16.msra.mxu0 0
      %3453 = vmatprep.subr.bf16.mxu0 0
      %3454 = vmatpush2.bf16.msra.mxu0 0
      %3455 = vmatprep.subr.bf16.mxu0 0
      %3456 = vmatpush2.bf16.msra.mxu0 0
      %3457 = vmatprep.subr.bf16.mxu0 0
      %3458 = vmatpush2.bf16.msra.mxu0 0
      %3459 = vmatprep.subr.bf16.mxu0 0
      %3460 = vmatpush2.bf16.msra.mxu0 0
      %3461 = vmatprep.subr.bf16.mxu0 0
      %3462 = vmatpush2.bf16.msra.mxu0 0
      %3463 = vmatprep.subr.bf16.mxu0 0
      %3464 = vmatpush2.bf16.msra.mxu0 0
      %3465 = vmatprep.subr.bf16.mxu0 0
      %3466 = vmatpush2.bf16.msra.mxu0 0
      %3467 = vmatprep.mubr.bf16.mxu0 0
      %3468 = vmatmul.mubr.bf16.gmra.mxu0 %v3415
      %v3469 = vpop.f32.mrf.mxu0
      %v3470 = vadd.f32 0.0, %v3469
      %v3471 = vpop.f32.mrf.mxu0
      %v3472 = vpop.f32.mrf.mxu0
      %v3473 = vadd.f32 0.0, %v3472
      %v3474 = vpop.f32.mrf.mxu0
      %3475 = vmatprep.mubr.bf16.mxu0 0
      %3476 = vmatmul.mubr.bf16.gmra.mxu0 %v3418
      %v3477 = vpop.f32.mrf.mxu0
      %v3478 = vadd.f32 0.0, %v3477
      %v3479 = vpop.f32.mrf.mxu0
      %v3480 = vpop.f32.mrf.mxu0
      %v3481 = vadd.f32 0.0, %v3480
      %v3482 = vpop.f32.mrf.mxu0
      %3483 = vmatprep.mubr.bf16.mxu0 0
      %3484 = vmatmul.mubr.bf16.gmra.mxu0 %v3421
      %v3485 = vpop.f32.mrf.mxu0
      %v3486 = vadd.f32 0.0, %v3485
      %v3487 = vpop.f32.mrf.mxu0
      %v3488 = vpop.f32.mrf.mxu0
      %v3489 = vadd.f32 0.0, %v3488
      %v3490 = vpop.f32.mrf.mxu0
      %3491 = vmatprep.mubr.bf16.mxu0 0
      %3492 = vmatmul.mubr.bf16.gmra.mxu0 %v3424
      %v3493 = vpop.f32.mrf.mxu0
      %v3494 = vadd.f32 0.0, %v3493
      %v3495 = vpop.f32.mrf.mxu0
      %v3496 = vpop.f32.mrf.mxu0
      %v3497 = vadd.f32 0.0, %v3496
      %v3498 = vpop.f32.mrf.mxu0
      %3499 = vmatprep.mubr.bf16.mxu0 0
      %3500 = vmatmul.mubr.bf16.gmra.mxu0 %v3427
      %v3501 = vpop.f32.mrf.mxu0
      %v3502 = vadd.f32 0.0, %v3501
      %v3503 = vpop.f32.mrf.mxu0
      %v3504 = vpop.f32.mrf.mxu0
      %v3505 = vadd.f32 0.0, %v3504
      %v3506 = vpop.f32.mrf.mxu0
      %3507 = vmatprep.mubr.bf16.mxu0 0
      %3508 = vmatmul.mubr.bf16.gmra.mxu0 %v3430
      %v3509 = vpop.f32.mrf.mxu0
      %v3510 = vadd.f32 0.0, %v3509
      %v3511 = vpop.f32.mrf.mxu0
      %v3512 = vpop.f32.mrf.mxu0
      %v3513 = vadd.f32 0.0, %v3512
      %v3514 = vpop.f32.mrf.mxu0
      %3515 = vmatprep.mubr.bf16.mxu0 0
      %3516 = vmatmul.mubr.bf16.gmra.mxu0 %v3433
      %v3517 = vpop.f32.mrf.mxu0
      %v3518 = vadd.f32 0.0, %v3517
      %v3519 = vpop.f32.mrf.mxu0
      %v3520 = vpop.f32.mrf.mxu0
      %v3521 = vpop.f32.mrf.mxu0
      %3522 = vdwg.mxu0
      %v3523 = vadd.f32 %v3364, %v3470
      %v3524 = vadd.f32 %v3365, %v3473
      %v3525 = vadd.f32 %v3366, %v3478
      %v3526 = vadd.f32 %v3367, %v3481
      %v3527 = vadd.f32 %v3368, %v3486
      %v3528 = vadd.f32 %v3369, %v3489
      %v3529 = vadd.f32 %v3370, %v3494
      %v3530 = vadd.f32 %v3371, %v3497
      %v3531 = vadd.f32 %v3372, %v3502
      %v3532 = vadd.f32 %v3373, %v3505
      %v3533 = vadd.f32 %v3374, %v3510
      %v3534 = vadd.f32 %v3375, %v3513
      %v3535 = vadd.f32 %v3376, %v3518
      %v3536 = vld [vmem:[#allocation3 + $0x16] sm:$0xff]
      %v3537 = vld [vmem:[#allocation3 + $0x1e] sm:$0xff]
      %v3538 = vld [vmem:[#allocation3 + $0x26] sm:$0xff]
      %v3539 = vld [vmem:[#allocation3 + $0x2e] sm:$0xff]
      %v3540 = vld [vmem:[#allocation3 + $0x36] sm:$0xff]
      %v3541 = vld [vmem:[#allocation3 + $0x3e] sm:$0xff]
      %v3542 = vld [vmem:[#allocation3 + $0x46] sm:$0xff]
      %v3543 = vld [vmem:[#allocation3 + $0x4e] sm:$0xff]
      %v3544 = vld [vmem:[#allocation3 + $0x56] sm:$0xff]
      %v3545 = vld [vmem:[#allocation3 + $0x5e] sm:$0xff]
      %v3546 = vld [vmem:[#allocation3 + $0x66] sm:$0xff]
      %v3547 = vld [vmem:[#allocation3 + $0x6e] sm:$0xff]
      %v3548 = vld [vmem:[#allocation3 + $0x76] sm:$0xff]
      %v3549 = vpack.c.bf16 %v3537, %v3536
      %v3550 = vpack.c.bf16 %v3539, %v3538
      %v3551 = vpack.c.bf16 %v3541, %v3540
      %v3552 = vpack.c.bf16 %v3543, %v3542
      %v3553 = vpack.c.bf16 %v3545, %v3544
      %v3554 = vpack.c.bf16 %v3547, %v3546
      %v3555 = vpack.c.bf16 %v3548, %v3548
      %s3556 = scalar_lea.vmem %s3, 128
      %v3557 = vld [vmem:[%s3556] sm:$0xf]
      %v3558 = vld [vmem:[%s3556 + $0x4] sm:$0xf]
      %v3559 = vld [vmem:[%s3556 + $0x8] sm:$0xf]
      %v3560 = vld [vmem:[%s3556 + $0xc] sm:$0xf]
      %v3565 = vunpack.c.l.b16 %v3557
      %v3566 = vunpack.c.l.b16 %v3558
      %v3567 = vunpack.c.l.b16 %v3559
      %v3568 = vunpack.c.l.b16 %v3560
      %v3569 = vpack.c.b16 %v3566, %v3565
      %v3570 = vpack.c.b16 %v3568, %v3567
      %v3574 = vsel %vm2181, %v3549, 0
      %v3577 = vsel %vm2181, %v3550, 0
      %v3580 = vsel %vm2181, %v3551, 0
      %v3583 = vsel %vm2181, %v3552, 0
      %v3586 = vsel %vm2181, %v3553, 0
      %v3589 = vsel %vm2181, %v3554, 0
      %v3592 = vsel %vm2181, %v3555, 0
      %3594 = vmatprep.subr.bf16.mxu0 0
      %3595 = vmatpush1.bf16.msra.mxu0 0
      %3596 = vmatprep.subr.bf16.mxu0 0
      %3597 = vmatpush1.bf16.msra.mxu0 0
      %3598 = vmatprep.subr.bf16.mxu0 0
      %3599 = vmatpush1.bf16.msra.mxu0 0
      %3600 = vmatprep.subr.bf16.mxu0 0
      %3601 = vmatpush1.bf16.msra.mxu0 0
      %3602 = vmatprep.subr.bf16.mxu0 0
      %3603 = vmatpush1.bf16.msra.mxu0 0
      %3604 = vmatprep.subr.bf16.mxu0 0
      %3605 = vmatpush1.bf16.msra.mxu0 0
      %3606 = vmatprep.subr.bf16.mxu0 0
      %3607 = vmatpush1.bf16.msra.mxu0 %v3570
      %3608 = vmatprep.subr.bf16.mxu0 0
      %3609 = vmatpush1.bf16.msra.mxu0 %v3569
      %3610 = vmatprep.subr.bf16.mxu0 0
      %3611 = vmatpush2.bf16.msra.mxu0 0
      %3612 = vmatprep.subr.bf16.mxu0 0
      %3613 = vmatpush2.bf16.msra.mxu0 0
      %3614 = vmatprep.subr.bf16.mxu0 0
      %3615 = vmatpush2.bf16.msra.mxu0 0
      %3616 = vmatprep.subr.bf16.mxu0 0
      %3617 = vmatpush2.bf16.msra.mxu0 0
      %3618 = vmatprep.subr.bf16.mxu0 0
      %3619 = vmatpush2.bf16.msra.mxu0 0
      %3620 = vmatprep.subr.bf16.mxu0 0
      %3621 = vmatpush2.bf16.msra.mxu0 0
      %3622 = vmatprep.subr.bf16.mxu0 0
      %3623 = vmatpush2.bf16.msra.mxu0 0
      %3624 = vmatprep.subr.bf16.mxu0 0
      %3625 = vmatpush2.bf16.msra.mxu0 0
      %3626 = vmatprep.mubr.bf16.mxu0 0
      %3627 = vmatmul.mubr.bf16.gmra.mxu0 %v3574
      %v3628 = vpop.f32.mrf.mxu0
      %v3629 = vadd.f32 0.0, %v3628
      %v3630 = vpop.f32.mrf.mxu0
      %v3631 = vpop.f32.mrf.mxu0
      %v3632 = vadd.f32 0.0, %v3631
      %v3633 = vpop.f32.mrf.mxu0
      %3634 = vmatprep.mubr.bf16.mxu0 0
      %3635 = vmatmul.mubr.bf16.gmra.mxu0 %v3577
      %v3636 = vpop.f32.mrf.mxu0
      %v3637 = vadd.f32 0.0, %v3636
      %v3638 = vpop.f32.mrf.mxu0
      %v3639 = vpop.f32.mrf.mxu0
      %v3640 = vadd.f32 0.0, %v3639
      %v3641 = vpop.f32.mrf.mxu0
      %3642 = vmatprep.mubr.bf16.mxu0 0
      %3643 = vmatmul.mubr.bf16.gmra.mxu0 %v3580
      %v3644 = vpop.f32.mrf.mxu0
      %v3645 = vadd.f32 0.0, %v3644
      %v3646 = vpop.f32.mrf.mxu0
      %v3647 = vpop.f32.mrf.mxu0
      %v3648 = vadd.f32 0.0, %v3647
      %v3649 = vpop.f32.mrf.mxu0
      %3650 = vmatprep.mubr.bf16.mxu0 0
      %3651 = vmatmul.mubr.bf16.gmra.mxu0 %v3583
      %v3652 = vpop.f32.mrf.mxu0
      %v3653 = vadd.f32 0.0, %v3652
      %v3654 = vpop.f32.mrf.mxu0
      %v3655 = vpop.f32.mrf.mxu0
      %v3656 = vadd.f32 0.0, %v3655
      %v3657 = vpop.f32.mrf.mxu0
      %3658 = vmatprep.mubr.bf16.mxu0 0
      %3659 = vmatmul.mubr.bf16.gmra.mxu0 %v3586
      %v3660 = vpop.f32.mrf.mxu0
      %v3661 = vadd.f32 0.0, %v3660
      %v3662 = vpop.f32.mrf.mxu0
      %v3663 = vpop.f32.mrf.mxu0
      %v3664 = vadd.f32 0.0, %v3663
      %v3665 = vpop.f32.mrf.mxu0
      %3666 = vmatprep.mubr.bf16.mxu0 0
      %3667 = vmatmul.mubr.bf16.gmra.mxu0 %v3589
      %v3668 = vpop.f32.mrf.mxu0
      %v3669 = vadd.f32 0.0, %v3668
      %v3670 = vpop.f32.mrf.mxu0
      %v3671 = vpop.f32.mrf.mxu0
      %v3672 = vadd.f32 0.0, %v3671
      %v3673 = vpop.f32.mrf.mxu0
      %3674 = vmatprep.mubr.bf16.mxu0 0
      %3675 = vmatmul.mubr.bf16.gmra.mxu0 %v3592
      %v3676 = vpop.f32.mrf.mxu0
      %v3677 = vadd.f32 0.0, %v3676
      %v3678 = vpop.f32.mrf.mxu0
      %v3679 = vpop.f32.mrf.mxu0
      %v3680 = vpop.f32.mrf.mxu0
      %3681 = vdwg.mxu0
      %v3682 = vadd.f32 %v3523, %v3629
      %v3683 = vadd.f32 %v3524, %v3632
      %v3684 = vadd.f32 %v3525, %v3637
      %v3685 = vadd.f32 %v3526, %v3640
      %v3686 = vadd.f32 %v3527, %v3645
      %v3687 = vadd.f32 %v3528, %v3648
      %v3688 = vadd.f32 %v3529, %v3653
      %v3689 = vadd.f32 %v3530, %v3656
      %v3690 = vadd.f32 %v3531, %v3661
      %v3691 = vadd.f32 %v3532, %v3664
      %v3692 = vadd.f32 %v3533, %v3669
      %v3693 = vadd.f32 %v3534, %v3672
      %v3694 = vadd.f32 %v3535, %v3677
      %v3695 = vld [vmem:[%s4] sm:$0x1]
      %v3697 = vlaneseq
      %v3698 = vshrl.u32 %v3697, 7
      %v3699 = vsub.s32 0, %v3698
      %v3700 = vrot.slane %v3695, %v3699
      %v3702 = vadd.f32 %v3682, %v3700
      %v3703 = vadd.f32 %v3683, %v3700
      %v3704 = vadd.f32 %v3684, %v3700
      %v3705 = vadd.f32 %v3685, %v3700
      %v3706 = vadd.f32 %v3686, %v3700
      %v3707 = vadd.f32 %v3687, %v3700
      %v3708 = vadd.f32 %v3688, %v3700
      %v3709 = vadd.f32 %v3689, %v3700
      %v3710 = vadd.f32 %v3690, %v3700
      %v3711 = vadd.f32 %v3691, %v3700
      %v3712 = vadd.f32 %v3692, %v3700
      %v3713 = vadd.f32 %v3693, %v3700
      %v3714 = vadd.f32 %v3694, %v3700
      %vm3715 = vcmp.gt.f32.partialorder %v3702, 0.0
      %vm3716 = vcmp.gt.f32.partialorder %v3703, 0.0
      %vm3717 = vcmp.gt.f32.partialorder %v3704, 0.0
      %vm3718 = vcmp.gt.f32.partialorder %v3705, 0.0
      %vm3719 = vcmp.gt.f32.partialorder %v3706, 0.0
      %vm3720 = vcmp.gt.f32.partialorder %v3707, 0.0
      %vm3721 = vcmp.gt.f32.partialorder %v3708, 0.0
      %vm3722 = vcmp.gt.f32.partialorder %v3709, 0.0
      %vm3723 = vcmp.gt.f32.partialorder %v3710, 0.0
      %vm3724 = vcmp.gt.f32.partialorder %v3711, 0.0
      %vm3725 = vcmp.gt.f32.partialorder %v3712, 0.0
      %vm3726 = vcmp.gt.f32.partialorder %v3713, 0.0
      %vm3727 = vcmp.gt.f32.partialorder %v3714, 0.0
      %v3728 = vmul.f32 %v3702, 0.01
      %v3729 = vmul.f32 %v3703, 0.01
      %v3730 = vmul.f32 %v3704, 0.01
      %v3731 = vmul.f32 %v3705, 0.01
      %v3732 = vmul.f32 %v3706, 0.01
      %v3733 = vmul.f32 %v3707, 0.01
      %v3734 = vmul.f32 %v3708, 0.01
      %v3735 = vmul.f32 %v3709, 0.01
      %v3736 = vmul.f32 %v3710, 0.01
      %v3737 = vmul.f32 %v3711, 0.01
      %v3738 = vmul.f32 %v3712, 0.01
      %v3739 = vmul.f32 %v3713, 0.01
      %v3740 = vmul.f32 %v3714, 0.01
      %v3741 = vsel %vm3715, %v3702, %v3728
      %v3742 = vsel %vm3716, %v3703, %v3729
      %v3743 = vsel %vm3717, %v3704, %v3730
      %v3744 = vsel %vm3718, %v3705, %v3731
      %v3745 = vsel %vm3719, %v3706, %v3732
      %v3746 = vsel %vm3720, %v3707, %v3733
      %v3747 = vsel %vm3721, %v3708, %v3734
      %v3748 = vsel %vm3722, %v3709, %v3735
      %v3749 = vsel %vm3723, %v3710, %v3736
      %v3750 = vsel %vm3724, %v3711, %v3737
      %v3751 = vsel %vm3725, %v3712, %v3738
      %v3752 = vsel %vm3726, %v3713, %v3739
      %v3753 = vsel %vm3727, %v3714, %v3740
      %3754 = vst.msk [vmem:[%s226] sm:$0xff] %vm2181, %v3741
      %3755 = vst.msk [vmem:[%s226 + $0x8] sm:$0xff] %vm2181, %v3742
      %3756 = vst.msk [vmem:[%s226 + $0x10] sm:$0xff] %vm2181, %v3743
      %3757 = vst.msk [vmem:[%s226 + $0x18] sm:$0xff] %vm2181, %v3744
      %3758 = vst.msk [vmem:[%s226 + $0x20] sm:$0xff] %vm2181, %v3745
      %3759 = vst.msk [vmem:[%s226 + $0x28] sm:$0xff] %vm2181, %v3746
      %3760 = vst.msk [vmem:[%s226 + $0x30] sm:$0xff] %vm2181, %v3747
      %3761 = vst.msk [vmem:[%s226 + $0x38] sm:$0xff] %vm2181, %v3748
      %3762 = vst.msk [vmem:[%s226 + $0x40] sm:$0xff] %vm2181, %v3749
      %3763 = vst.msk [vmem:[%s226 + $0x48] sm:$0xff] %vm2181, %v3750
      %3764 = vst.msk [vmem:[%s226 + $0x50] sm:$0xff] %vm2181, %v3751
      %3765 = vst.msk [vmem:[%s226 + $0x58] sm:$0xff] %vm2181, %v3752
      %3766 = vst.msk [vmem:[%s226 + $0x60] sm:$0xff] %vm2181, %v3753
      %s3767 = smul.u32 13, %s16
      %p3768 = scmp.lt.s32.totalorder %s3767, 25
      %s3769 = scalar_select %p3768, %s3767, 25
      %s3770 = smul.addr %s3769, 8
      %s3771 = scalar_lea.vmem %s5, %s3770
      // Predicated region
      $region41: #{loc_net_forward.1} parent=39 // pred_check
        %p3772 = pneg %p144
      $region42: #{loc_net_forward.1} parent=39 // pred_check_branch
        %3774 = sbr.rel (%p3772) target = $region44
      $region43: #{loc_net_forward.1} parent=39 // pred_region
        %s3775 = smul.u32 13, %s16
      $region44: #{loc_net_forward.1} parent=39 // pred_fallthru
        _
    $region40: #{loc_net_forward.1} parent=5 // pred_fallthru
      _
    %p3776 = scmp.le.s32.totalorder 2, %s11
    // Predicated region
    $region45: #{loc_net_forward.1} parent=5 // pred_check
      %p3777 = pneg %p3776
    $region46: #{loc_net_forward.1} parent=5 // pred_check_branch
      %3779 = sbr.rel (%p3777) target = $region48
    $region47: #{loc_net_forward.1} parent=5 // pred_region
      %s3780 = ssub.s32 %s11, 2
      // Predicated region
      $region49: #{loc_net_forward.1} parent=47 // pred_check
        %p3781 = pneg %p150
      $region50: #{loc_net_forward.1} parent=47 // pred_check_branch
        %3783 = sbr.rel (%p3781) target = $region52
      $region51: #{loc_net_forward.1} parent=47 // pred_region
        %s3784 = smul.u32 13, %s17
        %p3785 = scmp.lt.s32.totalorder %s3784, 25
        %s3786 = scalar_select %p3785, %s3784, 25
        %s3787 = smul.addr %s3786, 8
        %s3788 = scalar_lea.vmem %s5, %s3787
      $region52: #{loc_net_forward.1} parent=47 // pred_fallthru
        _
    $region48: #{loc_net_forward.1} parent=5 // pred_fallthru
      _
  $region6: #{loc_net_forward.1} parent=0 // loop_footer
    %s15 = sadd.s32 1, %s11
  $region7: #{loc_net_forward.1} parent=0 // loop_footer_branch
    %10 = sbr.rel target = $region3
  $region8: #{loc_net_forward.1} parent=0 // loop_exit
    _

</llo_original>
